<compile_context>
chip_gen: v5e
topology: v5e:2x2
jax: 0.10.0
libtpu: 0.0.40
codegen_flags: <defaults>
</compile_context>

<pallas_src>
import functools
import numpy as np
import jax
import jax.numpy as jnp
from jax.experimental import pallas as pl
from jax.experimental.pallas import tpu as pltpu

NEG_INF = -1e30
OUT_PAD = 128          # lane-aligned width of the final logits slab

_VMEM = pl.BlockSpec(memory_space=pltpu.MemorySpace.VMEM)
_SMEM = pl.BlockSpec(memory_space=pltpu.MemorySpace.SMEM)


# ---------------------------------------------------------------------------
# Fused kernel
# ---------------------------------------------------------------------------
def _gat_layer(xin, wl_ref, bl_ref, wr_ref, br_ref, attblk_ref, bias_ref,
               adjb, cat_ref, col_off, *, heads, out_ch, n):
    """One GATv2Conv (+ tanh).  All heads share one [N, N, H*C] pairwise tensor; the
    per-head score reduction is a single MXU matmul against a block-diagonal attention
    matrix; per-head aggregations are written directly into disjoint lane slices of
    `cat_ref` (VMEM scratch)."""
    hc = heads * out_ch
    xl = jnp.dot(xin, wl_ref[...], preferred_element_type=jnp.float32) + bl_ref[...]  # source
    xr = jnp.dot(xin, wr_ref[...], preferred_element_type=jnp.float32) + br_ref[...]  # target

    # Pairwise features for all heads at once: [N_i, N_j, H*C]  (96/128 lanes used)
    z = xr[:, None, :] + xl[None, :, :]
    z = jnp.where(z > 0, z, 0.2 * z)                           # leaky_relu(0.2), once

    # Attention scores on the MXU: [N*N, H*C] @ [H*C, H] -> [N*N, H]
    s = jnp.dot(z.reshape(n * n, hc), attblk_ref[...],
                preferred_element_type=jnp.float32).reshape(n, n, heads)
    s = s + adjb[:, :, None]                                   # additive edge mask
    s = s - jnp.max(s, axis=1, keepdims=True)                  # softmax over sources j
    e = jnp.exp(s)
    alpha = e * pl.reciprocal(jnp.sum(e, axis=1, keepdims=True), approx=True)

    bias = bias_ref[...]                                        # [1, H*C]
    for h in range(heads):                                      # tiny static loop
        lo, hi = h * out_ch, (h + 1) * out_ch
        agg = jnp.dot(alpha[:, :, h], xl[:, lo:hi],
                      preferred_element_type=jnp.float32)       # [N, C] on MXU
        cat_ref[:, col_off + lo:col_off + hi] = jnp.tanh(agg + bias[:, lo:hi])

    return cat_ref[:, col_off:col_off + hc]                     # tanh'd layer output


def _net2_kernel(idx_ref,                                       # SMEM: [B] int32
                 x_ref, adjb_ref,
                 wl0_ref, bl0_ref, wr0_ref, br0_ref, att0_ref, cb0_ref,
                 wl1_ref, bl1_ref, wr1_ref, br1_ref, att1_ref, cb1_ref,
                 w1_ref, b1_ref, w2_ref, b2_ref,
                 out_ref,                                       # [B, OUT_PAD]
                 cat_scr, pool_scr,                             # VMEM scratch
                 *, heads, latent_dim, n_nodes, n_graphs):
    adjb = adjb_ref[...]
    hc0 = heads * latent_dim[0]

    h0 = _gat_layer(x_ref[...], wl0_ref, bl0_ref, wr0_ref, br0_ref, att0_ref, cb0_ref,
                    adjb, cat_scr, 0, heads=heads, out_ch=latent_dim[0], n=n_nodes)
    _gat_layer(h0, wl1_ref, bl1_ref, wr1_ref, br1_ref, att1_ref, cb1_ref,
               adjb, cat_scr, hc0, heads=heads, out_ch=latent_dim[1], n=n_nodes)

    # First-node-per-graph readout from VMEM, indices from SMEM (no HBM round-trip).
    cat = cat_scr[...]                                          # [N, sum(latent)*H]
    col_ids = jax.lax.broadcasted_iota(jnp.int32, (1, n_nodes), 1)
    for b in range(n_graphs):                                   # static, tiny
        sel = (col_ids == idx_ref[b]).astype(jnp.float32)       # [1, N] one-hot
        pool_scr[pl.ds(b, 1), :] = jnp.dot(sel, cat, preferred_element_type=jnp.float32)

    # MLP head: linear1 -> relu -> linear2 -> log_softmax.
    pooled = pool_scr[...]                                      # [B, 192]
    hidden = jnp.dot(pooled, w1_ref[...], preferred_element_type=jnp.float32) + b1_ref[...]
    hidden = jnp.maximum(hidden, 0.0)
    # w2/b2 are lane-padded to OUT_PAD; padded columns sit at -1e30 so they contribute
    # nothing to the softmax, and the final store is a full 128-lane (unmasked) vst.
    logits = jnp.dot(hidden, w2_ref[...], preferred_element_type=jnp.float32) + b2_ref[...]
    zc = logits - jnp.max(logits, axis=1, keepdims=True)
    lse = jnp.log(jnp.sum(jnp.exp(zc), axis=1, keepdims=True))
    out_ref[...] = zc - lse


# ---------------------------------------------------------------------------
# Wrapper
# ---------------------------------------------------------------------------
def net2_forward(x, adj, first_node_idx, params, *, heads, latent_dim):
    n = x.shape[0]
    n_graphs = first_node_idx.shape[0]
    cat_dim = heads * sum(latent_dim)

    # Cheap parameter prep (done once per call here; in practice precompute once).
    adjb = jnp.where(adj > 0, 0.0, NEG_INF).astype(jnp.float32)    # additive edge bias

    def att_blockdiag(att, c):                                     # [H, C] -> [H*C, H]
        m = jnp.zeros((heads * c, heads), jnp.float32)
        for h in range(heads):
            m = m.at[h * c:(h + 1) * c, h].set(att[h])
        return m

    att0 = att_blockdiag(params["conv0"]["att"], latent_dim[0])
    att1 = att_blockdiag(params["conv1"]["att"], latent_dim[1])
    w2p = jnp.zeros((params["w2"].shape[0], OUT_PAD), jnp.float32).at[:, :2].set(params["w2"])
    b2p = jnp.full((1, OUT_PAD), NEG_INF, jnp.float32).at[:, :2].set(params["b2"])

    kernel = functools.partial(_net2_kernel, heads=heads, latent_dim=tuple(latent_dim),
                               n_nodes=n, n_graphs=n_graphs)
    out = pl.pallas_call(
        kernel,
        out_shape=jax.ShapeDtypeStruct((n_graphs, OUT_PAD), jnp.float32),
        in_specs=[_SMEM] + [_VMEM] * 18,
        out_specs=_VMEM,
        scratch_shapes=[pltpu.VMEM((n, cat_dim), jnp.float32),        # conv0|conv1 concat
                        pltpu.VMEM((n_graphs, cat_dim), jnp.float32)],  # pooled rows
    )(first_node_idx.astype(jnp.int32), x, adjb,
      params["conv0"]["wl"], params["conv0"]["bl"], params["conv0"]["wr"],
      params["conv0"]["br"], att0, params["conv0"]["bias"],
      params["conv1"]["wl"], params["conv1"]["bl"], params["conv1"]["wr"],
      params["conv1"]["br"], att1, params["conv1"]["bias"],
      params["w1"], params["b1"], w2p, b2p)
    return out[:, :2]                                              # drop lane padding


# ---------------------------------------------------------------------------
# Pure-JAX reference (same math) for a correctness check
# ---------------------------------------------------------------------------
def _gatv2_ref(x, wl, bl, wr, br, att, adj, bias, heads, out_ch):
    xl = x @ wl + bl
    xr = x @ wr + br
    outs = []
    for h in range(heads):
        L = xl[:, h * out_ch:(h + 1) * out_ch]
        R = xr[:, h * out_ch:(h + 1) * out_ch]
        z = R[:, None, :] + L[None, :, :]
        z = jnp.where(z > 0, z, 0.2 * z)
        s = (z * att[h][None, None, :]).sum(-1)
        s = jnp.where(adj > 0, s, NEG_INF)
        outs.append(jax.nn.softmax(s, axis=-1) @ L)
    return jnp.tanh(jnp.concatenate(outs, 1) + bias)


def _net2_ref(x, adj, idx, params, heads, latent_dim):
    cur = x
    cats = []
    for lv in range(len(latent_dim)):
        p = params[f"conv{lv}"]
        cur = _gatv2_ref(cur, p["wl"], p["bl"], p["wr"], p["br"], p["att"],
                         adj, p["bias"], heads, latent_dim[lv])
        cats.append(cur)
    pooled = jnp.concatenate(cats, 1)[idx, :]
    h = jnp.maximum(pooled @ params["w1"] + params["b1"], 0.0)
    logits = h @ params["w2"] + params["b2"]
    return jax.nn.log_softmax(logits, axis=1)


# ---------------------------------------------------------------------------
# Main
# ---------------------------------------------------------------------------
if __name__ == "__main__":
    input_dim = 8
    hidden_size = 32
    latent_dim = [32, 32]
    heads = 3
    num_graphs = 2
    nodes_per_graph = 8
    N = num_graphs * nodes_per_graph            # 16 nodes total

    key = jax.random.PRNGKey(0)

    def init_conv(key, fin, c, h):
        ks = jax.random.split(key, 4)
        return {
            "wl": 0.1 * jax.random.normal(ks[0], (fin, h * c), jnp.float32),
            "bl": jnp.zeros((1, h * c), jnp.float32),
            "wr": 0.1 * jax.random.normal(ks[1], (fin, h * c), jnp.float32),
            "br": jnp.zeros((1, h * c), jnp.float32),
            "att": 0.1 * jax.random.normal(ks[2], (h, c), jnp.float32),
            "bias": 0.1 * jax.random.normal(ks[3], (1, h * c), jnp.float32),
        }

    k0, k1, k2, k3, kx = jax.random.split(key, 5)
    params = {
        "conv0": init_conv(k0, input_dim, latent_dim[0], heads),
        "conv1": init_conv(k1, latent_dim[0] * heads, latent_dim[1], heads),
        "w1": 0.1 * jax.random.normal(k2, (sum(latent_dim) * heads, hidden_size), jnp.float32),
        "b1": jnp.zeros((1, hidden_size), jnp.float32),
        "w2": 0.1 * jax.random.normal(k3, (hidden_size, 2), jnp.float32),
        "b2": jnp.zeros((1, 2), jnp.float32),
    }

    # Node features.
    x = jax.random.normal(kx, (N, input_dim), jnp.float32)

    # Edge_index (bidirectional chain inside each graph) and batch vector.
    src, dst = [], []
    for g in range(num_graphs):
        base = g * nodes_per_graph
        for i in range(nodes_per_graph - 1):
            src += [base + i, base + i + 1]
            dst += [base + i + 1, base + i]
    edge_index = np.array([src, dst], dtype=np.int64)
    batch_np = np.repeat(np.arange(num_graphs), nodes_per_graph)

    # Dense adjacency mask: adj[i, j] = 1 iff edge j -> i; self loops (PyG default).
    adj_np = np.zeros((N, N), dtype=np.float32)
    adj_np[edge_index[1], edge_index[0]] = 1.0
    np.fill_diagonal(adj_np, 1.0)
    adj = jnp.asarray(adj_np)

    # First-node-per-graph readout indices (matches the torch batch-unique loop).
    first_idx = jnp.asarray(
        np.array([int(np.argmax(batch_np == b)) for b in np.unique(batch_np)], dtype=np.int32))

    logits = net2_forward(x, adj, first_idx, params, heads=heads, latent_dim=latent_dim)
    logits = jax.block_until_ready(logits)

    ref = _net2_ref(x, adj, first_idx, params, heads, latent_dim)
    # Slightly loose tolerance: the kernel uses the EUP approximate reciprocal for the
    # attention softmax; real bugs would show up orders of magnitude above this.
    np.testing.assert_allclose(np.asarray(logits), np.asarray(ref), rtol=5e-3, atol=5e-3)
    assert logits.shape == (num_graphs, 2)

    print("KERNEL_OK")
</pallas_src>

<mosaic_0001>
module attributes {stable_mosaic.version = 11 : i64} {
  func.func @_net2_kernel(%arg0: memref<2xi32, #tpu.memory_space<smem>>, %arg1: memref<16x8xf32, #tpu.memory_space<vmem>>, %arg2: memref<16x16xf32, #tpu.memory_space<vmem>>, %arg3: memref<8x96xf32, #tpu.memory_space<vmem>>, %arg4: memref<1x96xf32, #tpu.memory_space<vmem>>, %arg5: memref<8x96xf32, #tpu.memory_space<vmem>>, %arg6: memref<1x96xf32, #tpu.memory_space<vmem>>, %arg7: memref<96x3xf32, #tpu.memory_space<vmem>>, %arg8: memref<1x96xf32, #tpu.memory_space<vmem>>, %arg9: memref<96x96xf32, #tpu.memory_space<vmem>>, %arg10: memref<1x96xf32, #tpu.memory_space<vmem>>, %arg11: memref<96x96xf32, #tpu.memory_space<vmem>>, %arg12: memref<1x96xf32, #tpu.memory_space<vmem>>, %arg13: memref<96x3xf32, #tpu.memory_space<vmem>>, %arg14: memref<1x96xf32, #tpu.memory_space<vmem>>, %arg15: memref<192x32xf32, #tpu.memory_space<vmem>>, %arg16: memref<1x32xf32, #tpu.memory_space<vmem>>, %arg17: memref<32x128xf32, #tpu.memory_space<vmem>>, %arg18: memref<1x128xf32, #tpu.memory_space<vmem>>, %arg19: memref<2x128xf32, #tpu.memory_space<vmem>>, %arg20: memref<16x192xf32, #tpu.memory_space<vmem>>, %arg21: memref<2x192xf32, #tpu.memory_space<vmem>>) attributes {dimension_semantics = [], scalar_prefetch = 0 : i64, scratch_operands = 2 : i64, tpu.core_type = #tpu.core_type<tc>} {
    %c0 = arith.constant 0 : index
    %c0_0 = arith.constant 0 : index
    %0 = vector.load %arg2[%c0, %c0_0] : memref<16x16xf32, #tpu.memory_space<vmem>>, vector<16x16xf32>
    %c0_1 = arith.constant 0 : index
    %c0_2 = arith.constant 0 : index
    %1 = vector.load %arg1[%c0_1, %c0_2] : memref<16x8xf32, #tpu.memory_space<vmem>>, vector<16x8xf32>
    %c0_3 = arith.constant 0 : index
    %c0_4 = arith.constant 0 : index
    %2 = vector.load %arg3[%c0_3, %c0_4] : memref<8x96xf32, #tpu.memory_space<vmem>>, vector<8x96xf32>
    %cst = arith.constant dense<0.000000e+00> : vector<16x96xf32>
    %3 = tpu.matmul %1, %2, %cst {dimension_numbers = #tpu.dot_dimension_numbers<[1], [0], [0], [1], [0, 0, 1, 1], [], []>} : vector<16x8xf32>, vector<8x96xf32>, vector<16x96xf32> -> vector<16x96xf32>
    %c0_5 = arith.constant 0 : index
    %c0_6 = arith.constant 0 : index
    %4 = vector.load %arg4[%c0_5, %c0_6] : memref<1x96xf32, #tpu.memory_space<vmem>>, vector<1x96xf32>
    %5 = vector.broadcast %4 : vector<1x96xf32> to vector<16x96xf32>
    %6 = arith.addf %3, %5 : vector<16x96xf32>
    %c0_7 = arith.constant 0 : index
    %c0_8 = arith.constant 0 : index
    %7 = vector.load %arg5[%c0_7, %c0_8] : memref<8x96xf32, #tpu.memory_space<vmem>>, vector<8x96xf32>
    %cst_9 = arith.constant dense<0.000000e+00> : vector<16x96xf32>
    %8 = tpu.matmul %1, %7, %cst_9 {dimension_numbers = #tpu.dot_dimension_numbers<[1], [0], [0], [1], [0, 0, 1, 1], [], []>} : vector<16x8xf32>, vector<8x96xf32>, vector<16x96xf32> -> vector<16x96xf32>
    %c0_10 = arith.constant 0 : index
    %c0_11 = arith.constant 0 : index
    %9 = vector.load %arg6[%c0_10, %c0_11] : memref<1x96xf32, #tpu.memory_space<vmem>>, vector<1x96xf32>
    %10 = vector.broadcast %9 : vector<1x96xf32> to vector<16x96xf32>
    %11 = arith.addf %8, %10 : vector<16x96xf32>
    %12 = vector.shape_cast %11 : vector<16x96xf32> to vector<16x1x96xf32>
    %13 = vector.shape_cast %6 : vector<16x96xf32> to vector<1x16x96xf32>
    %14 = vector.broadcast %12 : vector<16x1x96xf32> to vector<16x16x96xf32>
    %15 = vector.broadcast %13 : vector<1x16x96xf32> to vector<16x16x96xf32>
    %16 = arith.addf %14, %15 : vector<16x16x96xf32>
    %cst_12 = arith.constant 0.000000e+00 : f32
    %17 = vector.broadcast %cst_12 : f32 to vector<16x16x96xf32>
    %18 = arith.cmpf ogt, %16, %17 : vector<16x16x96xf32>
    %cst_13 = arith.constant 2.000000e-01 : f32
    %19 = vector.broadcast %cst_13 : f32 to vector<16x16x96xf32>
    %20 = arith.mulf %19, %16 : vector<16x16x96xf32>
    %21 = arith.select %18, %16, %20 : vector<16x16x96xi1>, vector<16x16x96xf32>
    %22 = vector.shape_cast %21 : vector<16x16x96xf32> to vector<256x96xf32>
    %c0_14 = arith.constant 0 : index
    %c0_15 = arith.constant 0 : index
    %23 = vector.load %arg7[%c0_14, %c0_15] : memref<96x3xf32, #tpu.memory_space<vmem>>, vector<96x3xf32>
    %cst_16 = arith.constant dense<0.000000e+00> : vector<256x3xf32>
    %24 = tpu.matmul %22, %23, %cst_16 {dimension_numbers = #tpu.dot_dimension_numbers<[1], [0], [0], [1], [0, 0, 1, 1], [], []>} : vector<256x96xf32>, vector<96x3xf32>, vector<256x3xf32> -> vector<256x3xf32>
    %25 = vector.shape_cast %24 : vector<256x3xf32> to vector<16x16x3xf32>
    %26 = vector.shape_cast %0 : vector<16x16xf32> to vector<16x16x1xf32>
    %27 = vector.broadcast %26 : vector<16x16x1xf32> to vector<16x16x3xf32>
    %28 = arith.addf %25, %27 : vector<16x16x3xf32>
    %cst_17 = arith.constant dense<0xFF800000> : vector<16x3xf32>
    %29 = vector.multi_reduction <maximumf>, %28, %cst_17 [1] : vector<16x16x3xf32> to vector<16x3xf32>
    %30 = vector.shape_cast %29 : vector<16x3xf32> to vector<16x1x3xf32>
    %31 = vector.broadcast %30 : vector<16x1x3xf32> to vector<16x16x3xf32>
    %32 = arith.subf %28, %31 : vector<16x16x3xf32>
    %33 = math.exp %32 : vector<16x16x3xf32>
    %cst_18 = arith.constant dense<0.000000e+00> : vector<16x3xf32>
    %34 = vector.multi_reduction <add>, %33, %cst_18 [1] : vector<16x16x3xf32> to vector<16x3xf32>
    %35 = vector.shape_cast %34 : vector<16x3xf32> to vector<16x1x3xf32>
    %36 = tpu.reciprocal %35 {approx = true} : vector<16x1x3xf32> -> vector<16x1x3xf32>
    %37 = vector.broadcast %36 : vector<16x1x3xf32> to vector<16x16x3xf32>
    %38 = arith.mulf %33, %37 : vector<16x16x3xf32>
    %c0_19 = arith.constant 0 : index
    %c0_20 = arith.constant 0 : index
    %39 = vector.load %arg8[%c0_19, %c0_20] : memref<1x96xf32, #tpu.memory_space<vmem>>, vector<1x96xf32>
    %40 = vector.extract_strided_slice %38 {offsets = [0, 0, 0], sizes = [16, 16, 1], strides = [1, 1, 1]} : vector<16x16x3xf32> to vector<16x16x1xf32>
    %41 = vector.shape_cast %40 : vector<16x16x1xf32> to vector<16x16xf32>
    %42 = vector.extract_strided_slice %6 {offsets = [0, 0], sizes = [16, 32], strides = [1, 1]} : vector<16x96xf32> to vector<16x32xf32>
    %cst_21 = arith.constant dense<0.000000e+00> : vector<16x32xf32>
    %43 = tpu.matmul %41, %42, %cst_21 {dimension_numbers = #tpu.dot_dimension_numbers<[1], [0], [0], [1], [0, 0, 1, 1], [], []>} : vector<16x16xf32>, vector<16x32xf32>, vector<16x32xf32> -> vector<16x32xf32>
    %44 = vector.extract_strided_slice %39 {offsets = [0, 0], sizes = [1, 32], strides = [1, 1]} : vector<1x96xf32> to vector<1x32xf32>
    %45 = vector.broadcast %44 : vector<1x32xf32> to vector<16x32xf32>
    %46 = arith.addf %43, %45 : vector<16x32xf32>
    %47 = math.tanh %46 : vector<16x32xf32>
    %c0_22 = arith.constant 0 : index
    %c0_23 = arith.constant 0 : index
    %48 = vector.load %arg20[%c0_22, %c0_23] : memref<16x192xf32, #tpu.memory_space<vmem>>, vector<16x32xf32>
    tpu.vector_store %arg20[%c0_22, %c0_23], %47 {strides = array<i32>} : memref<16x192xf32, #tpu.memory_space<vmem>>, vector<16x32xf32>,
    %49 = vector.extract_strided_slice %38 {offsets = [0, 0, 1], sizes = [16, 16, 1], strides = [1, 1, 1]} : vector<16x16x3xf32> to vector<16x16x1xf32>
    %50 = vector.shape_cast %49 : vector<16x16x1xf32> to vector<16x16xf32>
    %51 = vector.extract_strided_slice %6 {offsets = [0, 32], sizes = [16, 32], strides = [1, 1]} : vector<16x96xf32> to vector<16x32xf32>
    %cst_24 = arith.constant dense<0.000000e+00> : vector<16x32xf32>
    %52 = tpu.matmul %50, %51, %cst_24 {dimension_numbers = #tpu.dot_dimension_numbers<[1], [0], [0], [1], [0, 0, 1, 1], [], []>} : vector<16x16xf32>, vector<16x32xf32>, vector<16x32xf32> -> vector<16x32xf32>
    %53 = vector.extract_strided_slice %39 {offsets = [0, 32], sizes = [1, 32], strides = [1, 1]} : vector<1x96xf32> to vector<1x32xf32>
    %54 = vector.broadcast %53 : vector<1x32xf32> to vector<16x32xf32>
    %55 = arith.addf %52, %54 : vector<16x32xf32>
    %56 = math.tanh %55 : vector<16x32xf32>
    %c0_25 = arith.constant 0 : index
    %c32 = arith.constant 32 : index
    %57 = vector.load %arg20[%c0_25, %c32] : memref<16x192xf32, #tpu.memory_space<vmem>>, vector<16x32xf32>
    tpu.vector_store %arg20[%c0_25, %c32], %56 {strides = array<i32>} : memref<16x192xf32, #tpu.memory_space<vmem>>, vector<16x32xf32>,
    %58 = vector.extract_strided_slice %38 {offsets = [0, 0, 2], sizes = [16, 16, 1], strides = [1, 1, 1]} : vector<16x16x3xf32> to vector<16x16x1xf32>
    %59 = vector.shape_cast %58 : vector<16x16x1xf32> to vector<16x16xf32>
    %60 = vector.extract_strided_slice %6 {offsets = [0, 64], sizes = [16, 32], strides = [1, 1]} : vector<16x96xf32> to vector<16x32xf32>
    %cst_26 = arith.constant dense<0.000000e+00> : vector<16x32xf32>
    %61 = tpu.matmul %59, %60, %cst_26 {dimension_numbers = #tpu.dot_dimension_numbers<[1], [0], [0], [1], [0, 0, 1, 1], [], []>} : vector<16x16xf32>, vector<16x32xf32>, vector<16x32xf32> -> vector<16x32xf32>
    %62 = vector.extract_strided_slice %39 {offsets = [0, 64], sizes = [1, 32], strides = [1, 1]} : vector<1x96xf32> to vector<1x32xf32>
    %63 = vector.broadcast %62 : vector<1x32xf32> to vector<16x32xf32>
    %64 = arith.addf %61, %63 : vector<16x32xf32>
    %65 = math.tanh %64 : vector<16x32xf32>
    %c0_27 = arith.constant 0 : index
    %c64 = arith.constant 64 : index
    %66 = vector.load %arg20[%c0_27, %c64] : memref<16x192xf32, #tpu.memory_space<vmem>>, vector<16x32xf32>
    tpu.vector_store %arg20[%c0_27, %c64], %65 {strides = array<i32>} : memref<16x192xf32, #tpu.memory_space<vmem>>, vector<16x32xf32>,
    %c0_28 = arith.constant 0 : index
    %c0_29 = arith.constant 0 : index
    %67 = vector.load %arg20[%c0_28, %c0_29] : memref<16x192xf32, #tpu.memory_space<vmem>>, vector<16x96xf32>
    %c0_30 = arith.constant 0 : index
    %c0_31 = arith.constant 0 : index
    %68 = vector.load %arg9[%c0_30, %c0_31] : memref<96x96xf32, #tpu.memory_space<vmem>>, vector<96x96xf32>
    %cst_32 = arith.constant dense<0.000000e+00> : vector<16x96xf32>
    %69 = tpu.matmul %67, %68, %cst_32 {dimension_numbers = #tpu.dot_dimension_numbers<[1], [0], [0], [1], [0, 0, 1, 1], [], []>} : vector<16x96xf32>, vector<96x96xf32>, vector<16x96xf32> -> vector<16x96xf32>
    %c0_33 = arith.constant 0 : index
    %c0_34 = arith.constant 0 : index
    %70 = vector.load %arg10[%c0_33, %c0_34] : memref<1x96xf32, #tpu.memory_space<vmem>>, vector<1x96xf32>
    %71 = vector.broadcast %70 : vector<1x96xf32> to vector<16x96xf32>
    %72 = arith.addf %69, %71 : vector<16x96xf32>
    %c0_35 = arith.constant 0 : index
    %c0_36 = arith.constant 0 : index
    %73 = vector.load %arg11[%c0_35, %c0_36] : memref<96x96xf32, #tpu.memory_space<vmem>>, vector<96x96xf32>
    %cst_37 = arith.constant dense<0.000000e+00> : vector<16x96xf32>
    %74 = tpu.matmul %67, %73, %cst_37 {dimension_numbers = #tpu.dot_dimension_numbers<[1], [0], [0], [1], [0, 0, 1, 1], [], []>} : vector<16x96xf32>, vector<96x96xf32>, vector<16x96xf32> -> vector<16x96xf32>
    %c0_38 = arith.constant 0 : index
    %c0_39 = arith.constant 0 : index
    %75 = vector.load %arg12[%c0_38, %c0_39] : memref<1x96xf32, #tpu.memory_space<vmem>>, vector<1x96xf32>
    %76 = vector.broadcast %75 : vector<1x96xf32> to vector<16x96xf32>
    %77 = arith.addf %74, %76 : vector<16x96xf32>
    %78 = vector.shape_cast %77 : vector<16x96xf32> to vector<16x1x96xf32>
    %79 = vector.shape_cast %72 : vector<16x96xf32> to vector<1x16x96xf32>
    %80 = vector.broadcast %78 : vector<16x1x96xf32> to vector<16x16x96xf32>
    %81 = vector.broadcast %79 : vector<1x16x96xf32> to vector<16x16x96xf32>
    %82 = arith.addf %80, %81 : vector<16x16x96xf32>
    %cst_40 = arith.constant 0.000000e+00 : f32
    %83 = vector.broadcast %cst_40 : f32 to vector<16x16x96xf32>
    %84 = arith.cmpf ogt, %82, %83 : vector<16x16x96xf32>
    %cst_41 = arith.constant 2.000000e-01 : f32
    %85 = vector.broadcast %cst_41 : f32 to vector<16x16x96xf32>
    %86 = arith.mulf %85, %82 : vector<16x16x96xf32>
    %87 = arith.select %84, %82, %86 : vector<16x16x96xi1>, vector<16x16x96xf32>
    %88 = vector.shape_cast %87 : vector<16x16x96xf32> to vector<256x96xf32>
    %c0_42 = arith.constant 0 : index
    %c0_43 = arith.constant 0 : index
    %89 = vector.load %arg13[%c0_42, %c0_43] : memref<96x3xf32, #tpu.memory_space<vmem>>, vector<96x3xf32>
    %cst_44 = arith.constant dense<0.000000e+00> : vector<256x3xf32>
    %90 = tpu.matmul %88, %89, %cst_44 {dimension_numbers = #tpu.dot_dimension_numbers<[1], [0], [0], [1], [0, 0, 1, 1], [], []>} : vector<256x96xf32>, vector<96x3xf32>, vector<256x3xf32> -> vector<256x3xf32>
    %91 = vector.shape_cast %90 : vector<256x3xf32> to vector<16x16x3xf32>
    %92 = vector.shape_cast %0 : vector<16x16xf32> to vector<16x16x1xf32>
    %93 = vector.broadcast %92 : vector<16x16x1xf32> to vector<16x16x3xf32>
    %94 = arith.addf %91, %93 : vector<16x16x3xf32>
    %cst_45 = arith.constant dense<0xFF800000> : vector<16x3xf32>
    %95 = vector.multi_reduction <maximumf>, %94, %cst_45 [1] : vector<16x16x3xf32> to vector<16x3xf32>
    %96 = vector.shape_cast %95 : vector<16x3xf32> to vector<16x1x3xf32>
    %97 = vector.broadcast %96 : vector<16x1x3xf32> to vector<16x16x3xf32>
    %98 = arith.subf %94, %97 : vector<16x16x3xf32>
    %99 = math.exp %98 : vector<16x16x3xf32>
    %cst_46 = arith.constant dense<0.000000e+00> : vector<16x3xf32>
    %100 = vector.multi_reduction <add>, %99, %cst_46 [1] : vector<16x16x3xf32> to vector<16x3xf32>
    %101 = vector.shape_cast %100 : vector<16x3xf32> to vector<16x1x3xf32>
    %102 = tpu.reciprocal %101 {approx = true} : vector<16x1x3xf32> -> vector<16x1x3xf32>
    %103 = vector.broadcast %102 : vector<16x1x3xf32> to vector<16x16x3xf32>
    %104 = arith.mulf %99, %103 : vector<16x16x3xf32>
    %c0_47 = arith.constant 0 : index
    %c0_48 = arith.constant 0 : index
    %105 = vector.load %arg14[%c0_47, %c0_48] : memref<1x96xf32, #tpu.memory_space<vmem>>, vector<1x96xf32>
    %106 = vector.extract_strided_slice %104 {offsets = [0, 0, 0], sizes = [16, 16, 1], strides = [1, 1, 1]} : vector<16x16x3xf32> to vector<16x16x1xf32>
    %107 = vector.shape_cast %106 : vector<16x16x1xf32> to vector<16x16xf32>
    %108 = vector.extract_strided_slice %72 {offsets = [0, 0], sizes = [16, 32], strides = [1, 1]} : vector<16x96xf32> to vector<16x32xf32>
    %cst_49 = arith.constant dense<0.000000e+00> : vector<16x32xf32>
    %109 = tpu.matmul %107, %108, %cst_49 {dimension_numbers = #tpu.dot_dimension_numbers<[1], [0], [0], [1], [0, 0, 1, 1], [], []>} : vector<16x16xf32>, vector<16x32xf32>, vector<16x32xf32> -> vector<16x32xf32>
    %110 = vector.extract_strided_slice %105 {offsets = [0, 0], sizes = [1, 32], strides = [1, 1]} : vector<1x96xf32> to vector<1x32xf32>
    %111 = vector.broadcast %110 : vector<1x32xf32> to vector<16x32xf32>
    %112 = arith.addf %109, %111 : vector<16x32xf32>
    %113 = math.tanh %112 : vector<16x32xf32>
    %c0_50 = arith.constant 0 : index
    %c96 = arith.constant 96 : index
    %114 = vector.load %arg20[%c0_50, %c96] : memref<16x192xf32, #tpu.memory_space<vmem>>, vector<16x32xf32>
    tpu.vector_store %arg20[%c0_50, %c96], %113 {strides = array<i32>} : memref<16x192xf32, #tpu.memory_space<vmem>>, vector<16x32xf32>,
    %115 = vector.extract_strided_slice %104 {offsets = [0, 0, 1], sizes = [16, 16, 1], strides = [1, 1, 1]} : vector<16x16x3xf32> to vector<16x16x1xf32>
    %116 = vector.shape_cast %115 : vector<16x16x1xf32> to vector<16x16xf32>
    %117 = vector.extract_strided_slice %72 {offsets = [0, 32], sizes = [16, 32], strides = [1, 1]} : vector<16x96xf32> to vector<16x32xf32>
    %cst_51 = arith.constant dense<0.000000e+00> : vector<16x32xf32>
    %118 = tpu.matmul %116, %117, %cst_51 {dimension_numbers = #tpu.dot_dimension_numbers<[1], [0], [0], [1], [0, 0, 1, 1], [], []>} : vector<16x16xf32>, vector<16x32xf32>, vector<16x32xf32> -> vector<16x32xf32>
    %119 = vector.extract_strided_slice %105 {offsets = [0, 32], sizes = [1, 32], strides = [1, 1]} : vector<1x96xf32> to vector<1x32xf32>
    %120 = vector.broadcast %119 : vector<1x32xf32> to vector<16x32xf32>
    %121 = arith.addf %118, %120 : vector<16x32xf32>
    %122 = math.tanh %121 : vector<16x32xf32>
    %c0_52 = arith.constant 0 : index
    %c128 = arith.constant 128 : index
    %123 = vector.load %arg20[%c0_52, %c128] : memref<16x192xf32, #tpu.memory_space<vmem>>, vector<16x32xf32>
    tpu.vector_store %arg20[%c0_52, %c128], %122 {strides = array<i32>} : memref<16x192xf32, #tpu.memory_space<vmem>>, vector<16x32xf32>,
    %124 = vector.extract_strided_slice %104 {offsets = [0, 0, 2], sizes = [16, 16, 1], strides = [1, 1, 1]} : vector<16x16x3xf32> to vector<16x16x1xf32>
    %125 = vector.shape_cast %124 : vector<16x16x1xf32> to vector<16x16xf32>
    %126 = vector.extract_strided_slice %72 {offsets = [0, 64], sizes = [16, 32], strides = [1, 1]} : vector<16x96xf32> to vector<16x32xf32>
    %cst_53 = arith.constant dense<0.000000e+00> : vector<16x32xf32>
    %127 = tpu.matmul %125, %126, %cst_53 {dimension_numbers = #tpu.dot_dimension_numbers<[1], [0], [0], [1], [0, 0, 1, 1], [], []>} : vector<16x16xf32>, vector<16x32xf32>, vector<16x32xf32> -> vector<16x32xf32>
    %128 = vector.extract_strided_slice %105 {offsets = [0, 64], sizes = [1, 32], strides = [1, 1]} : vector<1x96xf32> to vector<1x32xf32>
    %129 = vector.broadcast %128 : vector<1x32xf32> to vector<16x32xf32>
    %130 = arith.addf %127, %129 : vector<16x32xf32>
    %131 = math.tanh %130 : vector<16x32xf32>
    %c0_54 = arith.constant 0 : index
    %c160 = arith.constant 160 : index
    %132 = vector.load %arg20[%c0_54, %c160] : memref<16x192xf32, #tpu.memory_space<vmem>>, vector<16x32xf32>
    tpu.vector_store %arg20[%c0_54, %c160], %131 {strides = array<i32>} : memref<16x192xf32, #tpu.memory_space<vmem>>, vector<16x32xf32>,
    %c0_55 = arith.constant 0 : index
    %c0_56 = arith.constant 0 : index
    %133 = vector.load %arg20[%c0_55, %c0_56] : memref<16x192xf32, #tpu.memory_space<vmem>>, vector<16x192xf32>
    %134 = tpu.iota {dimensions = array<i32: 1>} : vector<1x16xi32>
    %c0_57 = arith.constant 0 : index
    %135 = memref.load %arg0[%c0_57] : memref<2xi32, #tpu.memory_space<smem>>
    %136 = vector.broadcast %135 : i32 to vector<1x16xi32>
    %137 = arith.cmpi eq, %134, %136 : vector<1x16xi32>
    %138 = arith.extui %137 : vector<1x16xi1> to vector<1x16xi32>
    %139 = arith.sitofp %138 : vector<1x16xi32> to vector<1x16xf32>
    %cst_58 = arith.constant dense<0.000000e+00> : vector<1x192xf32>
    %140 = tpu.matmul %139, %133, %cst_58 {dimension_numbers = #tpu.dot_dimension_numbers<[1], [0], [0], [1], [0, 0, 1, 1], [], []>} : vector<1x16xf32>, vector<16x192xf32>, vector<1x192xf32> -> vector<1x192xf32>
    %c0_59 = arith.constant 0 : index
    %c0_60 = arith.constant 0 : index
    %141 = vector.load %arg21[%c0_59, %c0_60] : memref<2x192xf32, #tpu.memory_space<vmem>>, vector<1x192xf32>
    tpu.vector_store %arg21[%c0_59, %c0_60], %140 {strides = array<i32>} : memref<2x192xf32, #tpu.memory_space<vmem>>, vector<1x192xf32>,
    %c1 = arith.constant 1 : index
    %142 = memref.load %arg0[%c1] : memref<2xi32, #tpu.memory_space<smem>>
    %143 = vector.broadcast %142 : i32 to vector<1x16xi32>
    %144 = arith.cmpi eq, %134, %143 : vector<1x16xi32>
    %145 = arith.extui %144 : vector<1x16xi1> to vector<1x16xi32>
    %146 = arith.sitofp %145 : vector<1x16xi32> to vector<1x16xf32>
    %cst_61 = arith.constant dense<0.000000e+00> : vector<1x192xf32>
    %147 = tpu.matmul %146, %133, %cst_61 {dimension_numbers = #tpu.dot_dimension_numbers<[1], [0], [0], [1], [0, 0, 1, 1], [], []>} : vector<1x16xf32>, vector<16x192xf32>, vector<1x192xf32> -> vector<1x192xf32>
    %c1_62 = arith.constant 1 : index
    %c0_63 = arith.constant 0 : index
    %148 = vector.load %arg21[%c1_62, %c0_63] : memref<2x192xf32, #tpu.memory_space<vmem>>, vector<1x192xf32>
    tpu.vector_store %arg21[%c1_62, %c0_63], %147 {strides = array<i32>} : memref<2x192xf32, #tpu.memory_space<vmem>>, vector<1x192xf32>,
    %c0_64 = arith.constant 0 : index
    %c0_65 = arith.constant 0 : index
    %149 = vector.load %arg21[%c0_64, %c0_65] : memref<2x192xf32, #tpu.memory_space<vmem>>, vector<2x192xf32>
    %c0_66 = arith.constant 0 : index
    %c0_67 = arith.constant 0 : index
    %150 = vector.load %arg15[%c0_66, %c0_67] : memref<192x32xf32, #tpu.memory_space<vmem>>, vector<192x32xf32>
    %cst_68 = arith.constant dense<0.000000e+00> : vector<2x32xf32>
    %151 = tpu.matmul %149, %150, %cst_68 {dimension_numbers = #tpu.dot_dimension_numbers<[1], [0], [0], [1], [0, 0, 1, 1], [], []>} : vector<2x192xf32>, vector<192x32xf32>, vector<2x32xf32> -> vector<2x32xf32>
    %c0_69 = arith.constant 0 : index
    %c0_70 = arith.constant 0 : index
    %152 = vector.load %arg16[%c0_69, %c0_70] : memref<1x32xf32, #tpu.memory_space<vmem>>, vector<1x32xf32>
    %153 = vector.broadcast %152 : vector<1x32xf32> to vector<2x32xf32>
    %154 = arith.addf %151, %153 : vector<2x32xf32>
    %cst_71 = arith.constant 0.000000e+00 : f32
    %155 = vector.broadcast %cst_71 : f32 to vector<2x32xf32>
    %156 = arith.maximumf %154, %155 : vector<2x32xf32>
    %c0_72 = arith.constant 0 : index
    %c0_73 = arith.constant 0 : index
    %157 = vector.load %arg17[%c0_72, %c0_73] : memref<32x128xf32, #tpu.memory_space<vmem>>, vector<32x128xf32>
    %cst_74 = arith.constant dense<0.000000e+00> : vector<2x128xf32>
    %158 = tpu.matmul %156, %157, %cst_74 {dimension_numbers = #tpu.dot_dimension_numbers<[1], [0], [0], [1], [0, 0, 1, 1], [], []>} : vector<2x32xf32>, vector<32x128xf32>, vector<2x128xf32> -> vector<2x128xf32>
    %c0_75 = arith.constant 0 : index
    %c0_76 = arith.constant 0 : index
    %159 = vector.load %arg18[%c0_75, %c0_76] : memref<1x128xf32, #tpu.memory_space<vmem>>, vector<1x128xf32>
    %160 = vector.broadcast %159 : vector<1x128xf32> to vector<2x128xf32>
    %161 = arith.addf %158, %160 : vector<2x128xf32>
    %cst_77 = arith.constant dense<0xFF800000> : vector<2xf32>
    %162 = vector.multi_reduction <maximumf>, %161, %cst_77 [1] : vector<2x128xf32> to vector<2xf32>
    %163 = vector.shape_cast %162 : vector<2xf32> to vector<2x1xf32>
    %164 = vector.broadcast %163 : vector<2x1xf32> to vector<2x128xf32>
    %165 = arith.subf %161, %164 : vector<2x128xf32>
    %166 = math.exp %165 : vector<2x128xf32>
    %cst_78 = arith.constant dense<0.000000e+00> : vector<2xf32>
    %167 = vector.multi_reduction <add>, %166, %cst_78 [1] : vector<2x128xf32> to vector<2xf32>
    %168 = vector.shape_cast %167 : vector<2xf32> to vector<2x1xf32>
    %169 = math.log %168 : vector<2x1xf32>
    %170 = vector.broadcast %169 : vector<2x1xf32> to vector<2x128xf32>
    %171 = arith.subf %165, %170 : vector<2x128xf32>
    %c0_79 = arith.constant 0 : index
    %c0_80 = arith.constant 0 : index
    %172 = vector.load %arg19[%c0_79, %c0_80] : memref<2x128xf32, #tpu.memory_space<vmem>>, vector<2x128xf32>
    tpu.vector_store %arg19[%c0_79, %c0_80], %171 {strides = array<i32>} : memref<2x128xf32, #tpu.memory_space<vmem>>, vector<2x128xf32>,
    return
  }
}

</mosaic_0001>

<llo_original>
// kernel: tpu_custom_call.1
$region0: #{tpu_custom_call.1}
  #allocation0 [shape = 'u32[]', space=smem, size = 0x4, offset = 0x4, fixed_abs, tag = 'smem constant byte address 0x4 - core index']
  #allocation1 [shape = 'u32[72,128]{1,0:T(1,128)}', space=vmem, size = 0x9000, scoped, tag = 'internal scratch']
  #allocation2 [shape = 'f32[16,192]{1,0:T(8,128)}', space=vmem, size = 0x4000, scoped, tag = 'scratch operand']
  #allocation3 [shape = 'f32[2,192]{1,0:T(2,128)}', space=vmem, size = 0x800, scoped, tag = 'scratch operand']
  %s0 = inlined_call_operand.vmem [shape: s32[2], index: 0, kind: input, shape index: {}]
  %s1 = inlined_call_operand.vmem [shape: f32[16,8], index: 1, kind: input, shape index: {}]
  %s2 = inlined_call_operand.vmem [shape: f32[16,16], index: 2, kind: input, shape index: {}]
  %s3 = inlined_call_operand.vmem [shape: f32[8,96], index: 3, kind: input, shape index: {}]
  %s4 = inlined_call_operand.vmem [shape: f32[1,96], index: 4, kind: input, shape index: {}]
  %s5 = inlined_call_operand.vmem [shape: f32[8,96], index: 5, kind: input, shape index: {}]
  %s6 = inlined_call_operand.vmem [shape: f32[1,96], index: 6, kind: input, shape index: {}]
  %s7 = inlined_call_operand.vmem [shape: f32[96,3], index: 7, kind: input, shape index: {}]
  %s8 = inlined_call_operand.vmem [shape: f32[1,96], index: 8, kind: input, shape index: {}]
  %s9 = inlined_call_operand.vmem [shape: f32[96,96], index: 9, kind: input, shape index: {}]
  %s10 = inlined_call_operand.vmem [shape: f32[1,96], index: 10, kind: input, shape index: {}]
  %s11 = inlined_call_operand.vmem [shape: f32[96,96], index: 11, kind: input, shape index: {}]
  %s12 = inlined_call_operand.vmem [shape: f32[1,96], index: 12, kind: input, shape index: {}]
  %s13 = inlined_call_operand.vmem [shape: f32[96,3], index: 13, kind: input, shape index: {}]
  %s14 = inlined_call_operand.vmem [shape: f32[1,96], index: 14, kind: input, shape index: {}]
  %s15 = inlined_call_operand.vmem [shape: f32[192,32], index: 15, kind: input, shape index: {}]
  %s16 = inlined_call_operand.vmem [shape: f32[1,32], index: 16, kind: input, shape index: {}]
  %s17 = inlined_call_operand.vmem [shape: f32[32,128], index: 17, kind: input, shape index: {}]
  %s18 = inlined_call_operand.vmem [shape: f32[1,128], index: 18, kind: input, shape index: {}]
  %s19 = inlined_call_operand.hbm [shape: f32[2,128], index: 19, kind: output, shape index: {}]
  %s20 = sld [smem:[#allocation0]]
  $region90: #{tpu_custom_call.1} parent=0
    _
  %s22 = ssub.s32 1, %s20
  %s23 = scalar_select 0, %s22, %s20
  $region1: #{tpu_custom_call.1} parent=0
    #allocation4 [shape = 'u8[512]{0}', space=smem, size = 0x200, scoped, tag = 'input window, operand 0, single buffered']
    #allocation5 [shape = 's32[1]{0}', space=sflag, size = 0x4, scoped, tag = 'scoped memory for tpu_custom_call.1']
    #allocation6 [shape = 's32[1]{0}', space=sflag, size = 0x4, scoped, tag = 'scoped memory for tpu_custom_call.1']
    #allocation7 [shape = 'u8[1024]{0}', space=vmem, size = 0x400, scoped, tag = 'output window, operand 0, single buffered']
    %24 = vsyncpa [#allocation6], 0
    %25 = vsyncpa [#allocation5], 0
    // Predicated region
    $region2: #{tpu_custom_call.1} parent=1 // pred_check
      _
    $region3: #{tpu_custom_call.1} parent=1 // pred_check_branch
      %27 = sbr.rel (0) target = $region5
    $region4: #{tpu_custom_call.1} parent=1 // pred_region
      %29 = vsyncadd [#allocation6], 0
      %s31 = sshll.u32 %s0, 4
      %s32 = int_to_ptr.vmem [resolvable:$true] %s31
      %34 = dma.vmem_to_smem %s32, 16, [#allocation4], [#allocation6]
    $region5: #{tpu_custom_call.1} parent=1 // pred_fallthru
      _
    // Predicated region
    $region6: #{tpu_custom_call.1} parent=1 // pred_check
      _
    $region7: #{tpu_custom_call.1} parent=1 // pred_check_branch
      %36 = sbr.rel (0) target = $region9
    $region8: #{tpu_custom_call.1} parent=1 // pred_region
      _
    $region9: #{tpu_custom_call.1} parent=1 // pred_fallthru
      _
    // Predicated region
    $region10: #{tpu_custom_call.1} parent=1 // pred_check
      _
    $region11: #{tpu_custom_call.1} parent=1 // pred_check_branch
      %38 = sbr.rel (0) target = $region13
    $region12: #{tpu_custom_call.1} parent=1 // pred_region
      _
    $region13: #{tpu_custom_call.1} parent=1 // pred_fallthru
      _
    // Predicated region
    $region14: #{tpu_custom_call.1} parent=1 // pred_check
      _
    $region15: #{tpu_custom_call.1} parent=1 // pred_check_branch
      %40 = sbr.rel (0) target = $region17
    $region16: #{tpu_custom_call.1} parent=1 // pred_region
      _
    $region17: #{tpu_custom_call.1} parent=1 // pred_fallthru
      _
    // Predicated region
    $region18: #{tpu_custom_call.1} parent=1 // pred_check
      _
    $region19: #{tpu_custom_call.1} parent=1 // pred_check_branch
      %42 = sbr.rel (0) target = $region21
    $region20: #{tpu_custom_call.1} parent=1 // pred_region
      _
    $region21: #{tpu_custom_call.1} parent=1 // pred_fallthru
      _
    // Predicated region
    $region22: #{tpu_custom_call.1} parent=1 // pred_check
      _
    $region23: #{tpu_custom_call.1} parent=1 // pred_check_branch
      %44 = sbr.rel (0) target = $region25
    $region24: #{tpu_custom_call.1} parent=1 // pred_region
      _
    $region25: #{tpu_custom_call.1} parent=1 // pred_fallthru
      _
    // Predicated region
    $region26: #{tpu_custom_call.1} parent=1 // pred_check
      _
    $region27: #{tpu_custom_call.1} parent=1 // pred_check_branch
      %46 = sbr.rel (0) target = $region29
    $region28: #{tpu_custom_call.1} parent=1 // pred_region
      _
    $region29: #{tpu_custom_call.1} parent=1 // pred_fallthru
      _
    // Predicated region
    $region30: #{tpu_custom_call.1} parent=1 // pred_check
      _
    $region31: #{tpu_custom_call.1} parent=1 // pred_check_branch
      %48 = sbr.rel (0) target = $region33
    $region32: #{tpu_custom_call.1} parent=1 // pred_region
      _
    $region33: #{tpu_custom_call.1} parent=1 // pred_fallthru
      _
    // Predicated region
    $region34: #{tpu_custom_call.1} parent=1 // pred_check
      _
    $region35: #{tpu_custom_call.1} parent=1 // pred_check_branch
      %50 = sbr.rel (0) target = $region37
    $region36: #{tpu_custom_call.1} parent=1 // pred_region
      _
    $region37: #{tpu_custom_call.1} parent=1 // pred_fallthru
      _
    // Predicated region
    $region38: #{tpu_custom_call.1} parent=1 // pred_check
      _
    $region39: #{tpu_custom_call.1} parent=1 // pred_check_branch
      %52 = sbr.rel (0) target = $region41
    $region40: #{tpu_custom_call.1} parent=1 // pred_region
      _
    $region41: #{tpu_custom_call.1} parent=1 // pred_fallthru
      _
    // Predicated region
    $region42: #{tpu_custom_call.1} parent=1 // pred_check
      _
    $region43: #{tpu_custom_call.1} parent=1 // pred_check_branch
      %54 = sbr.rel (0) target = $region45
    $region44: #{tpu_custom_call.1} parent=1 // pred_region
      _
    $region45: #{tpu_custom_call.1} parent=1 // pred_fallthru
      _
    // Predicated region
    $region46: #{tpu_custom_call.1} parent=1 // pred_check
      _
    $region47: #{tpu_custom_call.1} parent=1 // pred_check_branch
      %56 = sbr.rel (0) target = $region49
    $region48: #{tpu_custom_call.1} parent=1 // pred_region
      _
    $region49: #{tpu_custom_call.1} parent=1 // pred_fallthru
      _
    // Predicated region
    $region50: #{tpu_custom_call.1} parent=1 // pred_check
      _
    $region51: #{tpu_custom_call.1} parent=1 // pred_check_branch
      %58 = sbr.rel (0) target = $region53
    $region52: #{tpu_custom_call.1} parent=1 // pred_region
      _
    $region53: #{tpu_custom_call.1} parent=1 // pred_fallthru
      _
    // Predicated region
    $region54: #{tpu_custom_call.1} parent=1 // pred_check
      _
    $region55: #{tpu_custom_call.1} parent=1 // pred_check_branch
      %60 = sbr.rel (0) target = $region57
    $region56: #{tpu_custom_call.1} parent=1 // pred_region
      _
    $region57: #{tpu_custom_call.1} parent=1 // pred_fallthru
      _
    // Predicated region
    $region58: #{tpu_custom_call.1} parent=1 // pred_check
      _
    $region59: #{tpu_custom_call.1} parent=1 // pred_check_branch
      %62 = sbr.rel (0) target = $region61
    $region60: #{tpu_custom_call.1} parent=1 // pred_region
      _
    $region61: #{tpu_custom_call.1} parent=1 // pred_fallthru
      _
    // Predicated region
    $region62: #{tpu_custom_call.1} parent=1 // pred_check
      _
    $region63: #{tpu_custom_call.1} parent=1 // pred_check_branch
      %64 = sbr.rel (0) target = $region65
    $region64: #{tpu_custom_call.1} parent=1 // pred_region
      _
    $region65: #{tpu_custom_call.1} parent=1 // pred_fallthru
      _
    // Predicated region
    $region66: #{tpu_custom_call.1} parent=1 // pred_check
      _
    $region67: #{tpu_custom_call.1} parent=1 // pred_check_branch
      %66 = sbr.rel (0) target = $region69
    $region68: #{tpu_custom_call.1} parent=1 // pred_region
      _
    $region69: #{tpu_custom_call.1} parent=1 // pred_fallthru
      _
    // Predicated region
    $region70: #{tpu_custom_call.1} parent=1 // pred_check
      _
    $region71: #{tpu_custom_call.1} parent=1 // pred_check_branch
      %68 = sbr.rel (0) target = $region73
    $region72: #{tpu_custom_call.1} parent=1 // pred_region
      _
    $region73: #{tpu_custom_call.1} parent=1 // pred_fallthru
      _
    // Predicated region
    $region74: #{tpu_custom_call.1} parent=1 // pred_check
      _
    $region75: #{tpu_custom_call.1} parent=1 // pred_check_branch
      %70 = sbr.rel (0) target = $region77
    $region76: #{tpu_custom_call.1} parent=1 // pred_region
      _
    $region77: #{tpu_custom_call.1} parent=1 // pred_fallthru
      _
    // Predicated region
    $region78: #{tpu_custom_call.1} parent=1 // pred_check
      _
    $region79: #{tpu_custom_call.1} parent=1 // pred_check_branch
      %72 = sbr.rel (0) target = $region81
    $region80: #{tpu_custom_call.1} parent=1 // pred_region
      %74 = dma.done [#allocation6], 16
    $region81: #{tpu_custom_call.1} parent=1 // pred_fallthru
      _
    %75 = sfence
    %v76 = vld [vmem:[%s2] sm:$0xff]
    %v77 = vld [vmem:[%s2 + $0x8] sm:$0xff]
    %v78 = vld [vmem:[%s1] sm:$0xff]
    %v79 = vld [vmem:[%s1 + $0x8] sm:$0xff]
    %v80 = vld [vmem:[%s3] sm:$0xff]
    %v81 = vld [vmem:[%s4] sm:$0x1]
    %v83 = vperm.slane %v81, 0
    %vm85 = vcmask 64512
    %v87 = vsel %vm85, %v78, 0
    %v90 = vsel %vm85, %v79, 0
    %92 = vmatpush.msra.mxu0 0.0
    %93 = vmatpush.msra.mxu0 0.0
    %94 = vmatpush.msra.mxu0 0.0
    %95 = vmatpush.msra.mxu0 0.0
    %96 = vmatpush.msra.mxu0 0.0
    %97 = vmatpush.msra.mxu0 0.0
    %98 = vmatpush.msra.mxu0 0.0
    %99 = vmatpush.msra.mxu0 0.0
    %100 = vmatpush.msra.mxu0 0.0
    %101 = vmatpush.msra.mxu0 0.0
    %102 = vmatpush.msra.mxu0 0.0
    %103 = vmatpush.msra.mxu0 0.0
    %104 = vmatpush.msra.mxu0 0.0
    %105 = vmatpush.msra.mxu0 0.0
    %106 = vmatpush.msra.mxu0 0.0
    %107 = vmatpush.msra.mxu0 %v80
    %108 = vmatmul.f32.gmra.mxu0 %v87
    %v109 = vpop.f32.mrf.mxu0
    %v110 = vadd.f32 %v83, %v109
    %111 = vmatmul.f32.gmra.mxu0 %v90
    %v112 = vpop.f32.mrf.mxu0
    %v113 = vadd.f32 %v83, %v112
    %114 = vdwg.mxu0
    %v115 = vld [vmem:[%s5] sm:$0xff]
    %v116 = vld [vmem:[%s6] sm:$0x1]
    %v118 = vperm.slane %v116, 0
    %120 = vmatpush.msra.mxu0 0.0
    %121 = vmatpush.msra.mxu0 0.0
    %122 = vmatpush.msra.mxu0 0.0
    %123 = vmatpush.msra.mxu0 0.0
    %124 = vmatpush.msra.mxu0 0.0
    %125 = vmatpush.msra.mxu0 0.0
    %126 = vmatpush.msra.mxu0 0.0
    %127 = vmatpush.msra.mxu0 0.0
    %128 = vmatpush.msra.mxu0 0.0
    %129 = vmatpush.msra.mxu0 0.0
    %130 = vmatpush.msra.mxu0 0.0
    %131 = vmatpush.msra.mxu0 0.0
    %132 = vmatpush.msra.mxu0 0.0
    %133 = vmatpush.msra.mxu0 0.0
    %134 = vmatpush.msra.mxu0 0.0
    %135 = vmatpush.msra.mxu0 %v115
    %136 = vmatmul.f32.gmra.mxu0 %v87
    %v137 = vpop.f32.mrf.mxu0
    %v138 = vadd.f32 %v118, %v137
    %139 = vmatmul.f32.gmra.mxu0 %v90
    %v140 = vpop.f32.mrf.mxu0
    %v141 = vadd.f32 %v118, %v140
    %142 = vdwg.mxu0
    %v145 = vrot.slane %v138, 1
    %v146 = vrot.slane %v138, 2
    %v147 = vrot.slane %v138, 3
    %v148 = vrot.slane %v138, 4
    %v149 = vrot.slane %v138, 5
    %v150 = vrot.slane %v138, 6
    %v151 = vrot.slane %v138, 7
    %v152 = vrot.slane %v141, 1
    %v153 = vrot.slane %v141, 2
    %v154 = vrot.slane %v141, 3
    %v155 = vrot.slane %v141, 4
    %v156 = vrot.slane %v141, 5
    %v157 = vrot.slane %v141, 6
    %v158 = vrot.slane %v141, 7
    %v159 = vperm.slane %v138, 0
    %v160 = vperm.slane %v145, 0
    %v161 = vperm.slane %v146, 0
    %v162 = vperm.slane %v147, 0
    %v163 = vperm.slane %v148, 0
    %v164 = vperm.slane %v149, 0
    %v165 = vperm.slane %v150, 0
    %v166 = vperm.slane %v151, 0
    %v167 = vperm.slane %v141, 0
    %v168 = vperm.slane %v152, 0
    %v169 = vperm.slane %v153, 0
    %v170 = vperm.slane %v154, 0
    %v171 = vperm.slane %v155, 0
    %v172 = vperm.slane %v156, 0
    %v173 = vperm.slane %v157, 0
    %v174 = vperm.slane %v158, 0
    %v191 = vadd.f32 %v159, %v110
    %v192 = vadd.f32 %v159, %v113
    %v193 = vadd.f32 %v160, %v110
    %v194 = vadd.f32 %v160, %v113
    %v195 = vadd.f32 %v161, %v110
    %v196 = vadd.f32 %v161, %v113
    %v197 = vadd.f32 %v162, %v110
    %v198 = vadd.f32 %v162, %v113
    %v199 = vadd.f32 %v163, %v110
    %v200 = vadd.f32 %v163, %v113
    %v201 = vadd.f32 %v164, %v110
    %v202 = vadd.f32 %v164, %v113
    %v203 = vadd.f32 %v165, %v110
    %v204 = vadd.f32 %v165, %v113
    %v205 = vadd.f32 %v166, %v110
    %v206 = vadd.f32 %v166, %v113
    %v207 = vadd.f32 %v167, %v110
    %v208 = vadd.f32 %v167, %v113
    %v209 = vadd.f32 %v168, %v110
    %v210 = vadd.f32 %v168, %v113
    %v211 = vadd.f32 %v169, %v110
    %v212 = vadd.f32 %v169, %v113
    %v213 = vadd.f32 %v170, %v110
    %v214 = vadd.f32 %v170, %v113
    %v215 = vadd.f32 %v171, %v110
    %v216 = vadd.f32 %v171, %v113
    %v217 = vadd.f32 %v172, %v110
    %v218 = vadd.f32 %v172, %v113
    %v219 = vadd.f32 %v173, %v110
    %v220 = vadd.f32 %v173, %v113
    %v221 = vadd.f32 %v174, %v110
    %v222 = vadd.f32 %v174, %v113
    %vm223 = vcmp.gt.f32.partialorder %v191, 0.0
    %vm224 = vcmp.gt.f32.partialorder %v192, 0.0
    %vm225 = vcmp.gt.f32.partialorder %v193, 0.0
    %vm226 = vcmp.gt.f32.partialorder %v194, 0.0
    %vm227 = vcmp.gt.f32.partialorder %v195, 0.0
    %vm228 = vcmp.gt.f32.partialorder %v196, 0.0
    %vm229 = vcmp.gt.f32.partialorder %v197, 0.0
    %vm230 = vcmp.gt.f32.partialorder %v198, 0.0
    %vm231 = vcmp.gt.f32.partialorder %v199, 0.0
    %vm232 = vcmp.gt.f32.partialorder %v200, 0.0
    %vm233 = vcmp.gt.f32.partialorder %v201, 0.0
    %vm234 = vcmp.gt.f32.partialorder %v202, 0.0
    %vm235 = vcmp.gt.f32.partialorder %v203, 0.0
    %vm236 = vcmp.gt.f32.partialorder %v204, 0.0
    %vm237 = vcmp.gt.f32.partialorder %v205, 0.0
    %vm238 = vcmp.gt.f32.partialorder %v206, 0.0
    %vm239 = vcmp.gt.f32.partialorder %v207, 0.0
    %vm240 = vcmp.gt.f32.partialorder %v208, 0.0
    %vm241 = vcmp.gt.f32.partialorder %v209, 0.0
    %vm242 = vcmp.gt.f32.partialorder %v210, 0.0
    %vm243 = vcmp.gt.f32.partialorder %v211, 0.0
    %vm244 = vcmp.gt.f32.partialorder %v212, 0.0
    %vm245 = vcmp.gt.f32.partialorder %v213, 0.0
    %vm246 = vcmp.gt.f32.partialorder %v214, 0.0
    %vm247 = vcmp.gt.f32.partialorder %v215, 0.0
    %vm248 = vcmp.gt.f32.partialorder %v216, 0.0
    %vm249 = vcmp.gt.f32.partialorder %v217, 0.0
    %vm250 = vcmp.gt.f32.partialorder %v218, 0.0
    %vm251 = vcmp.gt.f32.partialorder %v219, 0.0
    %vm252 = vcmp.gt.f32.partialorder %v220, 0.0
    %vm253 = vcmp.gt.f32.partialorder %v221, 0.0
    %vm254 = vcmp.gt.f32.partialorder %v222, 0.0
    %v255 = vmul.f32 %v191, 0.2
    %v256 = vmul.f32 %v192, 0.2
    %v257 = vmul.f32 %v193, 0.2
    %v258 = vmul.f32 %v194, 0.2
    %v259 = vmul.f32 %v195, 0.2
    %v260 = vmul.f32 %v196, 0.2
    %v261 = vmul.f32 %v197, 0.2
    %v262 = vmul.f32 %v198, 0.2
    %v263 = vmul.f32 %v199, 0.2
    %v264 = vmul.f32 %v200, 0.2
    %v265 = vmul.f32 %v201, 0.2
    %v266 = vmul.f32 %v202, 0.2
    %v267 = vmul.f32 %v203, 0.2
    %v268 = vmul.f32 %v204, 0.2
    %v269 = vmul.f32 %v205, 0.2
    %v270 = vmul.f32 %v206, 0.2
    %v271 = vmul.f32 %v207, 0.2
    %v272 = vmul.f32 %v208, 0.2
    %v273 = vmul.f32 %v209, 0.2
    %v274 = vmul.f32 %v210, 0.2
    %v275 = vmul.f32 %v211, 0.2
    %v276 = vmul.f32 %v212, 0.2
    %v277 = vmul.f32 %v213, 0.2
    %v278 = vmul.f32 %v214, 0.2
    %v279 = vmul.f32 %v215, 0.2
    %v280 = vmul.f32 %v216, 0.2
    %v281 = vmul.f32 %v217, 0.2
    %v282 = vmul.f32 %v218, 0.2
    %v283 = vmul.f32 %v219, 0.2
    %v284 = vmul.f32 %v220, 0.2
    %v285 = vmul.f32 %v221, 0.2
    %v286 = vmul.f32 %v222, 0.2
    %v287 = vsel %vm223, %v191, %v255
    %v288 = vsel %vm224, %v192, %v256
    %v289 = vsel %vm225, %v193, %v257
    %v290 = vsel %vm226, %v194, %v258
    %v291 = vsel %vm227, %v195, %v259
    %v292 = vsel %vm228, %v196, %v260
    %v293 = vsel %vm229, %v197, %v261
    %v294 = vsel %vm230, %v198, %v262
    %v295 = vsel %vm231, %v199, %v263
    %v296 = vsel %vm232, %v200, %v264
    %v297 = vsel %vm233, %v201, %v265
    %v298 = vsel %vm234, %v202, %v266
    %v299 = vsel %vm235, %v203, %v267
    %v300 = vsel %vm236, %v204, %v268
    %v301 = vsel %vm237, %v205, %v269
    %v302 = vsel %vm238, %v206, %v270
    %v303 = vsel %vm239, %v207, %v271
    %v304 = vsel %vm240, %v208, %v272
    %v305 = vsel %vm241, %v209, %v273
    %v306 = vsel %vm242, %v210, %v274
    %v307 = vsel %vm243, %v211, %v275
    %v308 = vsel %vm244, %v212, %v276
    %v309 = vsel %vm245, %v213, %v277
    %v310 = vsel %vm246, %v214, %v278
    %v311 = vsel %vm247, %v215, %v279
    %v312 = vsel %vm248, %v216, %v280
    %v313 = vsel %vm249, %v217, %v281
    %v314 = vsel %vm250, %v218, %v282
    %v315 = vsel %vm251, %v219, %v283
    %v316 = vsel %vm252, %v220, %v284
    %v317 = vsel %vm253, %v221, %v285
    %v318 = vsel %vm254, %v222, %v286
    %v319 = vld [vmem:[%s7] sm:$0xff]
    %v320 = vld [vmem:[%s7 + $0x8] sm:$0xff]
    %v321 = vld [vmem:[%s7 + $0x10] sm:$0xff]
    %v322 = vld [vmem:[%s7 + $0x18] sm:$0xff]
    %v323 = vld [vmem:[%s7 + $0x20] sm:$0xff]
    %v324 = vld [vmem:[%s7 + $0x28] sm:$0xff]
    %v325 = vld [vmem:[%s7 + $0x30] sm:$0xff]
    %v326 = vld [vmem:[%s7 + $0x38] sm:$0xff]
    %v327 = vld [vmem:[%s7 + $0x40] sm:$0xff]
    %v328 = vld [vmem:[%s7 + $0x48] sm:$0xff]
    %v329 = vld [vmem:[%s7 + $0x50] sm:$0xff]
    %v330 = vld [vmem:[%s7 + $0x58] sm:$0xff]
    %vm331 = vcmask 785408
    %v333 = vsel %vm331, %v287, 0
    %v336 = vsel %vm331, %v288, 0
    %v339 = vsel %vm331, %v289, 0
    %v342 = vsel %vm331, %v290, 0
    %v345 = vsel %vm331, %v291, 0
    %v348 = vsel %vm331, %v292, 0
    %v351 = vsel %vm331, %v293, 0
    %v354 = vsel %vm331, %v294, 0
    %v357 = vsel %vm331, %v295, 0
    %v360 = vsel %vm331, %v296, 0
    %v363 = vsel %vm331, %v297, 0
    %v366 = vsel %vm331, %v298, 0
    %v369 = vsel %vm331, %v299, 0
    %v372 = vsel %vm331, %v300, 0
    %v375 = vsel %vm331, %v301, 0
    %v378 = vsel %vm331, %v302, 0
    %v381 = vsel %vm331, %v303, 0
    %v384 = vsel %vm331, %v304, 0
    %v387 = vsel %vm331, %v305, 0
    %v390 = vsel %vm331, %v306, 0
    %v393 = vsel %vm331, %v307, 0
    %v396 = vsel %vm331, %v308, 0
    %v399 = vsel %vm331, %v309, 0
    %v402 = vsel %vm331, %v310, 0
    %v405 = vsel %vm331, %v311, 0
    %v408 = vsel %vm331, %v312, 0
    %v411 = vsel %vm331, %v313, 0
    %v414 = vsel %vm331, %v314, 0
    %v417 = vsel %vm331, %v315, 0
    %v420 = vsel %vm331, %v316, 0
    %v423 = vsel %vm331, %v317, 0
    %v426 = vsel %vm331, %v318, 0
    %428 = vmatpush.msra.mxu0 0.0
    %429 = vmatpush.msra.mxu0 0.0
    %430 = vmatpush.msra.mxu0 0.0
    %431 = vmatpush.msra.mxu0 0.0
    %432 = vmatpush.msra.mxu0 %v330
    %433 = vmatpush.msra.mxu0 %v329
    %434 = vmatpush.msra.mxu0 %v328
    %435 = vmatpush.msra.mxu0 %v327
    %436 = vmatpush.msra.mxu0 %v326
    %437 = vmatpush.msra.mxu0 %v325
    %438 = vmatpush.msra.mxu0 %v324
    %439 = vmatpush.msra.mxu0 %v323
    %440 = vmatpush.msra.mxu0 %v322
    %441 = vmatpush.msra.mxu0 %v321
    %442 = vmatpush.msra.mxu0 %v320
    %443 = vmatpush.msra.mxu0 %v319
    %444 = vmatmul.f32.gmra.mxu0 %v333
    %v445 = vpop.f32.mrf.mxu0
    %v446 = vadd.f32 0.0, %v445
    %447 = vmatmul.f32.gmra.mxu0 %v336
    %v448 = vpop.f32.mrf.mxu0
    %v449 = vadd.f32 0.0, %v448
    %450 = vmatmul.f32.gmra.mxu0 %v339
    %v451 = vpop.f32.mrf.mxu0
    %v452 = vadd.f32 0.0, %v451
    %453 = vmatmul.f32.gmra.mxu0 %v342
    %v454 = vpop.f32.mrf.mxu0
    %v455 = vadd.f32 0.0, %v454
    %456 = vmatmul.f32.gmra.mxu0 %v345
    %v457 = vpop.f32.mrf.mxu0
    %v458 = vadd.f32 0.0, %v457
    %459 = vmatmul.f32.gmra.mxu0 %v348
    %v460 = vpop.f32.mrf.mxu0
    %v461 = vadd.f32 0.0, %v460
    %462 = vmatmul.f32.gmra.mxu0 %v351
    %v463 = vpop.f32.mrf.mxu0
    %v464 = vadd.f32 0.0, %v463
    %465 = vmatmul.f32.gmra.mxu0 %v354
    %v466 = vpop.f32.mrf.mxu0
    %v467 = vadd.f32 0.0, %v466
    %468 = vmatmul.f32.gmra.mxu0 %v357
    %v469 = vpop.f32.mrf.mxu0
    %v470 = vadd.f32 0.0, %v469
    %471 = vmatmul.f32.gmra.mxu0 %v360
    %v472 = vpop.f32.mrf.mxu0
    %v473 = vadd.f32 0.0, %v472
    %474 = vmatmul.f32.gmra.mxu0 %v363
    %v475 = vpop.f32.mrf.mxu0
    %v476 = vadd.f32 0.0, %v475
    %477 = vmatmul.f32.gmra.mxu0 %v366
    %v478 = vpop.f32.mrf.mxu0
    %v479 = vadd.f32 0.0, %v478
    %480 = vmatmul.f32.gmra.mxu0 %v369
    %v481 = vpop.f32.mrf.mxu0
    %v482 = vadd.f32 0.0, %v481
    %483 = vmatmul.f32.gmra.mxu0 %v372
    %v484 = vpop.f32.mrf.mxu0
    %v485 = vadd.f32 0.0, %v484
    %486 = vmatmul.f32.gmra.mxu0 %v375
    %v487 = vpop.f32.mrf.mxu0
    %v488 = vadd.f32 0.0, %v487
    %489 = vmatmul.f32.gmra.mxu0 %v378
    %v490 = vpop.f32.mrf.mxu0
    %v491 = vadd.f32 0.0, %v490
    %492 = vmatmul.f32.gmra.mxu0 %v381
    %v493 = vpop.f32.mrf.mxu0
    %v494 = vadd.f32 0.0, %v493
    %495 = vmatmul.f32.gmra.mxu0 %v384
    %v496 = vpop.f32.mrf.mxu0
    %v497 = vadd.f32 0.0, %v496
    %498 = vmatmul.f32.gmra.mxu0 %v387
    %v499 = vpop.f32.mrf.mxu0
    %v500 = vadd.f32 0.0, %v499
    %501 = vmatmul.f32.gmra.mxu0 %v390
    %v502 = vpop.f32.mrf.mxu0
    %v503 = vadd.f32 0.0, %v502
    %504 = vmatmul.f32.gmra.mxu0 %v393
    %v505 = vpop.f32.mrf.mxu0
    %v506 = vadd.f32 0.0, %v505
    %507 = vmatmul.f32.gmra.mxu0 %v396
    %v508 = vpop.f32.mrf.mxu0
    %v509 = vadd.f32 0.0, %v508
    %510 = vmatmul.f32.gmra.mxu0 %v399
    %v511 = vpop.f32.mrf.mxu0
    %v512 = vadd.f32 0.0, %v511
    %513 = vmatmul.f32.gmra.mxu0 %v402
    %v514 = vpop.f32.mrf.mxu0
    %v515 = vadd.f32 0.0, %v514
    %516 = vmatmul.f32.gmra.mxu0 %v405
    %v517 = vpop.f32.mrf.mxu0
    %v518 = vadd.f32 0.0, %v517
    %519 = vmatmul.f32.gmra.mxu0 %v408
    %v520 = vpop.f32.mrf.mxu0
    %v521 = vadd.f32 0.0, %v520
    %522 = vmatmul.f32.gmra.mxu0 %v411
    %v523 = vpop.f32.mrf.mxu0
    %v524 = vadd.f32 0.0, %v523
    %525 = vmatmul.f32.gmra.mxu0 %v414
    %v526 = vpop.f32.mrf.mxu0
    %v527 = vadd.f32 0.0, %v526
    %528 = vmatmul.f32.gmra.mxu0 %v417
    %v529 = vpop.f32.mrf.mxu0
    %v530 = vadd.f32 0.0, %v529
    %531 = vmatmul.f32.gmra.mxu0 %v420
    %v532 = vpop.f32.mrf.mxu0
    %v533 = vadd.f32 0.0, %v532
    %534 = vmatmul.f32.gmra.mxu0 %v423
    %v535 = vpop.f32.mrf.mxu0
    %v536 = vadd.f32 0.0, %v535
    %537 = vmatmul.f32.gmra.mxu0 %v426
    %v538 = vpop.f32.mrf.mxu0
    %v539 = vadd.f32 0.0, %v538
    %540 = vdwg.mxu0
    %v541 = vperm.slane %v76, 0
    %v542 = vlaneseq
    %v543 = vshrl.u32 %v542, 7
    %545 = vset.pattern.permute.xlu0 %v543
    %546 = vperm.xlu0 %545, %v541
    %v547 = vpop.permute.xlu0 %546
    %v548 = vlaneseq
    %v549 = vshrl.u32 %v548, 7
    %v550 = vadd.s32 %v549, 8
    %551 = vset.pattern.permute.xlu0 %v550
    %552 = vperm.xlu0 %551, %v541
    %v553 = vpop.permute.xlu0 %552
    %v554 = vperm.slane %v76, 1
    %v555 = vlaneseq
    %v556 = vshrl.u32 %v555, 7
    %558 = vset.pattern.permute.xlu0 %v556
    %559 = vperm.xlu0 %558, %v554
    %v560 = vpop.permute.xlu0 %559
    %v561 = vlaneseq
    %v562 = vshrl.u32 %v561, 7
    %v563 = vadd.s32 %v562, 8
    %564 = vset.pattern.permute.xlu0 %v563
    %565 = vperm.xlu0 %564, %v554
    %v566 = vpop.permute.xlu0 %565
    %v567 = vperm.slane %v76, 2
    %v568 = vlaneseq
    %v569 = vshrl.u32 %v568, 7
    %571 = vset.pattern.permute.xlu0 %v569
    %572 = vperm.xlu0 %571, %v567
    %v573 = vpop.permute.xlu0 %572
    %v574 = vlaneseq
    %v575 = vshrl.u32 %v574, 7
    %v576 = vadd.s32 %v575, 8
    %577 = vset.pattern.permute.xlu0 %v576
    %578 = vperm.xlu0 %577, %v567
    %v579 = vpop.permute.xlu0 %578
    %v580 = vperm.slane %v76, 3
    %v581 = vlaneseq
    %v582 = vshrl.u32 %v581, 7
    %584 = vset.pattern.permute.xlu0 %v582
    %585 = vperm.xlu0 %584, %v580
    %v586 = vpop.permute.xlu0 %585
    %v587 = vlaneseq
    %v588 = vshrl.u32 %v587, 7
    %v589 = vadd.s32 %v588, 8
    %590 = vset.pattern.permute.xlu0 %v589
    %591 = vperm.xlu0 %590, %v580
    %v592 = vpop.permute.xlu0 %591
    %v593 = vperm.slane %v76, 4
    %v594 = vlaneseq
    %v595 = vshrl.u32 %v594, 7
    %597 = vset.pattern.permute.xlu0 %v595
    %598 = vperm.xlu0 %597, %v593
    %v599 = vpop.permute.xlu0 %598
    %v600 = vlaneseq
    %v601 = vshrl.u32 %v600, 7
    %v602 = vadd.s32 %v601, 8
    %603 = vset.pattern.permute.xlu0 %v602
    %604 = vperm.xlu0 %603, %v593
    %v605 = vpop.permute.xlu0 %604
    %v606 = vperm.slane %v76, 5
    %v607 = vlaneseq
    %v608 = vshrl.u32 %v607, 7
    %610 = vset.pattern.permute.xlu0 %v608
    %611 = vperm.xlu0 %610, %v606
    %v612 = vpop.permute.xlu0 %611
    %v613 = vlaneseq
    %v614 = vshrl.u32 %v613, 7
    %v615 = vadd.s32 %v614, 8
    %616 = vset.pattern.permute.xlu0 %v615
    %617 = vperm.xlu0 %616, %v606
    %v618 = vpop.permute.xlu0 %617
    %v619 = vperm.slane %v76, 6
    %v620 = vlaneseq
    %v621 = vshrl.u32 %v620, 7
    %623 = vset.pattern.permute.xlu0 %v621
    %624 = vperm.xlu0 %623, %v619
    %v625 = vpop.permute.xlu0 %624
    %v626 = vlaneseq
    %v627 = vshrl.u32 %v626, 7
    %v628 = vadd.s32 %v627, 8
    %629 = vset.pattern.permute.xlu0 %v628
    %630 = vperm.xlu0 %629, %v619
    %v631 = vpop.permute.xlu0 %630
    %v632 = vperm.slane %v76, 7
    %v633 = vlaneseq
    %v634 = vshrl.u32 %v633, 7
    %636 = vset.pattern.permute.xlu0 %v634
    %637 = vperm.xlu0 %636, %v632
    %v638 = vpop.permute.xlu0 %637
    %v639 = vlaneseq
    %v640 = vshrl.u32 %v639, 7
    %v641 = vadd.s32 %v640, 8
    %642 = vset.pattern.permute.xlu0 %v641
    %643 = vperm.xlu0 %642, %v632
    %v644 = vpop.permute.xlu0 %643
    %v645 = vperm.slane %v77, 0
    %v646 = vlaneseq
    %v647 = vshrl.u32 %v646, 7
    %649 = vset.pattern.permute.xlu0 %v647
    %650 = vperm.xlu0 %649, %v645
    %v651 = vpop.permute.xlu0 %650
    %v652 = vlaneseq
    %v653 = vshrl.u32 %v652, 7
    %v654 = vadd.s32 %v653, 8
    %655 = vset.pattern.permute.xlu0 %v654
    %656 = vperm.xlu0 %655, %v645
    %v657 = vpop.permute.xlu0 %656
    %v658 = vperm.slane %v77, 1
    %v659 = vlaneseq
    %v660 = vshrl.u32 %v659, 7
    %662 = vset.pattern.permute.xlu0 %v660
    %663 = vperm.xlu0 %662, %v658
    %v664 = vpop.permute.xlu0 %663
    %v665 = vlaneseq
    %v666 = vshrl.u32 %v665, 7
    %v667 = vadd.s32 %v666, 8
    %668 = vset.pattern.permute.xlu0 %v667
    %669 = vperm.xlu0 %668, %v658
    %v670 = vpop.permute.xlu0 %669
    %v671 = vperm.slane %v77, 2
    %v672 = vlaneseq
    %v673 = vshrl.u32 %v672, 7
    %675 = vset.pattern.permute.xlu0 %v673
    %676 = vperm.xlu0 %675, %v671
    %v677 = vpop.permute.xlu0 %676
    %v678 = vlaneseq
    %v679 = vshrl.u32 %v678, 7
    %v680 = vadd.s32 %v679, 8
    %681 = vset.pattern.permute.xlu0 %v680
    %682 = vperm.xlu0 %681, %v671
    %v683 = vpop.permute.xlu0 %682
    %v684 = vperm.slane %v77, 3
    %v685 = vlaneseq
    %v686 = vshrl.u32 %v685, 7
    %688 = vset.pattern.permute.xlu0 %v686
    %689 = vperm.xlu0 %688, %v684
    %v690 = vpop.permute.xlu0 %689
    %v691 = vlaneseq
    %v692 = vshrl.u32 %v691, 7
    %v693 = vadd.s32 %v692, 8
    %694 = vset.pattern.permute.xlu0 %v693
    %695 = vperm.xlu0 %694, %v684
    %v696 = vpop.permute.xlu0 %695
    %v697 = vperm.slane %v77, 4
    %v698 = vlaneseq
    %v699 = vshrl.u32 %v698, 7
    %701 = vset.pattern.permute.xlu0 %v699
    %702 = vperm.xlu0 %701, %v697
    %v703 = vpop.permute.xlu0 %702
    %v704 = vlaneseq
    %v705 = vshrl.u32 %v704, 7
    %v706 = vadd.s32 %v705, 8
    %707 = vset.pattern.permute.xlu0 %v706
    %708 = vperm.xlu0 %707, %v697
    %v709 = vpop.permute.xlu0 %708
    %v710 = vperm.slane %v77, 5
    %v711 = vlaneseq
    %v712 = vshrl.u32 %v711, 7
    %714 = vset.pattern.permute.xlu0 %v712
    %715 = vperm.xlu0 %714, %v710
    %v716 = vpop.permute.xlu0 %715
    %v717 = vlaneseq
    %v718 = vshrl.u32 %v717, 7
    %v719 = vadd.s32 %v718, 8
    %720 = vset.pattern.permute.xlu0 %v719
    %721 = vperm.xlu0 %720, %v710
    %v722 = vpop.permute.xlu0 %721
    %v723 = vperm.slane %v77, 6
    %v724 = vlaneseq
    %v725 = vshrl.u32 %v724, 7
    %727 = vset.pattern.permute.xlu0 %v725
    %728 = vperm.xlu0 %727, %v723
    %v729 = vpop.permute.xlu0 %728
    %v730 = vlaneseq
    %v731 = vshrl.u32 %v730, 7
    %v732 = vadd.s32 %v731, 8
    %733 = vset.pattern.permute.xlu0 %v732
    %734 = vperm.xlu0 %733, %v723
    %v735 = vpop.permute.xlu0 %734
    %v736 = vperm.slane %v77, 7
    %v737 = vlaneseq
    %v738 = vshrl.u32 %v737, 7
    %740 = vset.pattern.permute.xlu0 %v738
    %741 = vperm.xlu0 %740, %v736
    %v742 = vpop.permute.xlu0 %741
    %v743 = vlaneseq
    %v744 = vshrl.u32 %v743, 7
    %v745 = vadd.s32 %v744, 8
    %746 = vset.pattern.permute.xlu0 %v745
    %747 = vperm.xlu0 %746, %v736
    %v748 = vpop.permute.xlu0 %747
    %v749 = vadd.f32 %v446, %v547
    %v750 = vadd.f32 %v449, %v553
    %v751 = vadd.f32 %v452, %v560
    %v752 = vadd.f32 %v455, %v566
    %v753 = vadd.f32 %v458, %v573
    %v754 = vadd.f32 %v461, %v579
    %v755 = vadd.f32 %v464, %v586
    %v756 = vadd.f32 %v467, %v592
    %v757 = vadd.f32 %v470, %v599
    %v758 = vadd.f32 %v473, %v605
    %v759 = vadd.f32 %v476, %v612
    %v760 = vadd.f32 %v479, %v618
    %v761 = vadd.f32 %v482, %v625
    %v762 = vadd.f32 %v485, %v631
    %v763 = vadd.f32 %v488, %v638
    %v764 = vadd.f32 %v491, %v644
    %v765 = vadd.f32 %v494, %v651
    %v766 = vadd.f32 %v497, %v657
    %v767 = vadd.f32 %v500, %v664
    %v768 = vadd.f32 %v503, %v670
    %v769 = vadd.f32 %v506, %v677
    %v770 = vadd.f32 %v509, %v683
    %v771 = vadd.f32 %v512, %v690
    %v772 = vadd.f32 %v515, %v696
    %v773 = vadd.f32 %v518, %v703
    %v774 = vadd.f32 %v521, %v709
    %v775 = vadd.f32 %v524, %v716
    %v776 = vadd.f32 %v527, %v722
    %v777 = vadd.f32 %v530, %v729
    %v778 = vadd.f32 %v533, %v735
    %v779 = vadd.f32 %v536, %v742
    %v780 = vadd.f32 %v539, %v748
    %vm781 = vcmask 23552
    %v782 = vsel %vm781, %v749, -inf
    %v783 = vsel %vm781, %v750, -inf
    %v784 = vmax.f32 %v782, %v783
    %v785 = vrot.slane %v784, 4
    %v786 = vmax.f32 %v784, %v785
    %v787 = vrot.slane %v786, 2
    %v788 = vmax.f32 %v786, %v787
    %v789 = vrot.slane %v788, 1
    %v790 = vmax.f32 %v788, %v789
    %v791 = vsel %vm781, %v751, -inf
    %v792 = vsel %vm781, %v752, -inf
    %v793 = vmax.f32 %v791, %v792
    %v794 = vrot.slane %v793, 4
    %v795 = vmax.f32 %v793, %v794
    %v796 = vrot.slane %v795, 2
    %v797 = vmax.f32 %v795, %v796
    %v798 = vrot.slane %v797, 1
    %v799 = vmax.f32 %v797, %v798
    %v800 = vsel %vm781, %v753, -inf
    %v801 = vsel %vm781, %v754, -inf
    %v802 = vmax.f32 %v800, %v801
    %v803 = vrot.slane %v802, 4
    %v804 = vmax.f32 %v802, %v803
    %v805 = vrot.slane %v804, 2
    %v806 = vmax.f32 %v804, %v805
    %v807 = vrot.slane %v806, 1
    %v808 = vmax.f32 %v806, %v807
    %v809 = vsel %vm781, %v755, -inf
    %v810 = vsel %vm781, %v756, -inf
    %v811 = vmax.f32 %v809, %v810
    %v812 = vrot.slane %v811, 4
    %v813 = vmax.f32 %v811, %v812
    %v814 = vrot.slane %v813, 2
    %v815 = vmax.f32 %v813, %v814
    %v816 = vrot.slane %v815, 1
    %v817 = vmax.f32 %v815, %v816
    %v818 = vsel %vm781, %v757, -inf
    %v819 = vsel %vm781, %v758, -inf
    %v820 = vmax.f32 %v818, %v819
    %v821 = vrot.slane %v820, 4
    %v822 = vmax.f32 %v820, %v821
    %v823 = vrot.slane %v822, 2
    %v824 = vmax.f32 %v822, %v823
    %v825 = vrot.slane %v824, 1
    %v826 = vmax.f32 %v824, %v825
    %v827 = vsel %vm781, %v759, -inf
    %v828 = vsel %vm781, %v760, -inf
    %v829 = vmax.f32 %v827, %v828
    %v830 = vrot.slane %v829, 4
    %v831 = vmax.f32 %v829, %v830
    %v832 = vrot.slane %v831, 2
    %v833 = vmax.f32 %v831, %v832
    %v834 = vrot.slane %v833, 1
    %v835 = vmax.f32 %v833, %v834
    %v836 = vsel %vm781, %v761, -inf
    %v837 = vsel %vm781, %v762, -inf
    %v838 = vmax.f32 %v836, %v837
    %v839 = vrot.slane %v838, 4
    %v840 = vmax.f32 %v838, %v839
    %v841 = vrot.slane %v840, 2
    %v842 = vmax.f32 %v840, %v841
    %v843 = vrot.slane %v842, 1
    %v844 = vmax.f32 %v842, %v843
    %v845 = vsel %vm781, %v763, -inf
    %v846 = vsel %vm781, %v764, -inf
    %v847 = vmax.f32 %v845, %v846
    %v848 = vrot.slane %v847, 4
    %v849 = vmax.f32 %v847, %v848
    %v850 = vrot.slane %v849, 2
    %v851 = vmax.f32 %v849, %v850
    %v852 = vrot.slane %v851, 1
    %v853 = vmax.f32 %v851, %v852
    %v854 = vsel %vm781, %v765, -inf
    %v855 = vsel %vm781, %v766, -inf
    %v856 = vmax.f32 %v854, %v855
    %v857 = vrot.slane %v856, 4
    %v858 = vmax.f32 %v856, %v857
    %v859 = vrot.slane %v858, 2
    %v860 = vmax.f32 %v858, %v859
    %v861 = vrot.slane %v860, 1
    %v862 = vmax.f32 %v860, %v861
    %v863 = vsel %vm781, %v767, -inf
    %v864 = vsel %vm781, %v768, -inf
    %v865 = vmax.f32 %v863, %v864
    %v866 = vrot.slane %v865, 4
    %v867 = vmax.f32 %v865, %v866
    %v868 = vrot.slane %v867, 2
    %v869 = vmax.f32 %v867, %v868
    %v870 = vrot.slane %v869, 1
    %v871 = vmax.f32 %v869, %v870
    %v872 = vsel %vm781, %v769, -inf
    %v873 = vsel %vm781, %v770, -inf
    %v874 = vmax.f32 %v872, %v873
    %v875 = vrot.slane %v874, 4
    %v876 = vmax.f32 %v874, %v875
    %v877 = vrot.slane %v876, 2
    %v878 = vmax.f32 %v876, %v877
    %v879 = vrot.slane %v878, 1
    %v880 = vmax.f32 %v878, %v879
    %v881 = vsel %vm781, %v771, -inf
    %v882 = vsel %vm781, %v772, -inf
    %v883 = vmax.f32 %v881, %v882
    %v884 = vrot.slane %v883, 4
    %v885 = vmax.f32 %v883, %v884
    %v886 = vrot.slane %v885, 2
    %v887 = vmax.f32 %v885, %v886
    %v888 = vrot.slane %v887, 1
    %v889 = vmax.f32 %v887, %v888
    %v890 = vsel %vm781, %v773, -inf
    %v891 = vsel %vm781, %v774, -inf
    %v892 = vmax.f32 %v890, %v891
    %v893 = vrot.slane %v892, 4
    %v894 = vmax.f32 %v892, %v893
    %v895 = vrot.slane %v894, 2
    %v896 = vmax.f32 %v894, %v895
    %v897 = vrot.slane %v896, 1
    %v898 = vmax.f32 %v896, %v897
    %v899 = vsel %vm781, %v775, -inf
    %v900 = vsel %vm781, %v776, -inf
    %v901 = vmax.f32 %v899, %v900
    %v902 = vrot.slane %v901, 4
    %v903 = vmax.f32 %v901, %v902
    %v904 = vrot.slane %v903, 2
    %v905 = vmax.f32 %v903, %v904
    %v906 = vrot.slane %v905, 1
    %v907 = vmax.f32 %v905, %v906
    %v908 = vsel %vm781, %v777, -inf
    %v909 = vsel %vm781, %v778, -inf
    %v910 = vmax.f32 %v908, %v909
    %v911 = vrot.slane %v910, 4
    %v912 = vmax.f32 %v910, %v911
    %v913 = vrot.slane %v912, 2
    %v914 = vmax.f32 %v912, %v913
    %v915 = vrot.slane %v914, 1
    %v916 = vmax.f32 %v914, %v915
    %v917 = vsel %vm781, %v779, -inf
    %v918 = vsel %vm781, %v780, -inf
    %v919 = vmax.f32 %v917, %v918
    %v920 = vrot.slane %v919, 4
    %v921 = vmax.f32 %v919, %v920
    %v922 = vrot.slane %v921, 2
    %v923 = vmax.f32 %v921, %v922
    %v924 = vrot.slane %v923, 1
    %v925 = vmax.f32 %v923, %v924
    %v926 = vsub.f32 %v749, %v790
    %v927 = vsub.f32 %v750, %v790
    %v928 = vsub.f32 %v751, %v799
    %v929 = vsub.f32 %v752, %v799
    %v930 = vsub.f32 %v753, %v808
    %v931 = vsub.f32 %v754, %v808
    %v932 = vsub.f32 %v755, %v817
    %v933 = vsub.f32 %v756, %v817
    %v934 = vsub.f32 %v757, %v826
    %v935 = vsub.f32 %v758, %v826
    %v936 = vsub.f32 %v759, %v835
    %v937 = vsub.f32 %v760, %v835
    %v938 = vsub.f32 %v761, %v844
    %v939 = vsub.f32 %v762, %v844
    %v940 = vsub.f32 %v763, %v853
    %v941 = vsub.f32 %v764, %v853
    %v942 = vsub.f32 %v765, %v862
    %v943 = vsub.f32 %v766, %v862
    %v944 = vsub.f32 %v767, %v871
    %v945 = vsub.f32 %v768, %v871
    %v946 = vsub.f32 %v769, %v880
    %v947 = vsub.f32 %v770, %v880
    %v948 = vsub.f32 %v771, %v889
    %v949 = vsub.f32 %v772, %v889
    %v950 = vsub.f32 %v773, %v898
    %v951 = vsub.f32 %v774, %v898
    %v952 = vsub.f32 %v775, %v907
    %v953 = vsub.f32 %v776, %v907
    %v954 = vsub.f32 %v777, %v916
    %v955 = vsub.f32 %v778, %v916
    %v956 = vsub.f32 %v779, %v925
    %v957 = vsub.f32 %v780, %v925
    %v958 = vmul.f32 %v926, 1.442695
    %v959 = vpow.pop %v958
    %v960 = vmul.f32 %v927, 1.442695
    %v961 = vpow.pop %v960
    %v962 = vmul.f32 %v928, 1.442695
    %v963 = vpow.pop %v962
    %v964 = vmul.f32 %v929, 1.442695
    %v965 = vpow.pop %v964
    %v966 = vmul.f32 %v930, 1.442695
    %v967 = vpow.pop %v966
    %v968 = vmul.f32 %v931, 1.442695
    %v969 = vpow.pop %v968
    %v970 = vmul.f32 %v932, 1.442695
    %v971 = vpow.pop %v970
    %v972 = vmul.f32 %v933, 1.442695
    %v973 = vpow.pop %v972
    %v974 = vmul.f32 %v934, 1.442695
    %v975 = vpow.pop %v974
    %v976 = vmul.f32 %v935, 1.442695
    %v977 = vpow.pop %v976
    %v978 = vmul.f32 %v936, 1.442695
    %v979 = vpow.pop %v978
    %v980 = vmul.f32 %v937, 1.442695
    %v981 = vpow.pop %v980
    %v982 = vmul.f32 %v938, 1.442695
    %v983 = vpow.pop %v982
    %v984 = vmul.f32 %v939, 1.442695
    %v985 = vpow.pop %v984
    %v986 = vmul.f32 %v940, 1.442695
    %v987 = vpow.pop %v986
    %v988 = vmul.f32 %v941, 1.442695
    %v989 = vpow.pop %v988
    %v990 = vmul.f32 %v942, 1.442695
    %v991 = vpow.pop %v990
    %v992 = vmul.f32 %v943, 1.442695
    %v993 = vpow.pop %v992
    %v994 = vmul.f32 %v944, 1.442695
    %v995 = vpow.pop %v994
    %v996 = vmul.f32 %v945, 1.442695
    %v997 = vpow.pop %v996
    %v998 = vmul.f32 %v946, 1.442695
    %v999 = vpow.pop %v998
    %v1000 = vmul.f32 %v947, 1.442695
    %v1001 = vpow.pop %v1000
    %v1002 = vmul.f32 %v948, 1.442695
    %v1003 = vpow.pop %v1002
    %v1004 = vmul.f32 %v949, 1.442695
    %v1005 = vpow.pop %v1004
    %v1006 = vmul.f32 %v950, 1.442695
    %v1007 = vpow.pop %v1006
    %v1008 = vmul.f32 %v951, 1.442695
    %v1009 = vpow.pop %v1008
    %v1010 = vmul.f32 %v952, 1.442695
    %v1011 = vpow.pop %v1010
    %v1012 = vmul.f32 %v953, 1.442695
    %v1013 = vpow.pop %v1012
    %v1014 = vmul.f32 %v954, 1.442695
    %v1015 = vpow.pop %v1014
    %v1016 = vmul.f32 %v955, 1.442695
    %v1017 = vpow.pop %v1016
    %v1018 = vmul.f32 %v956, 1.442695
    %v1019 = vpow.pop %v1018
    %v1020 = vmul.f32 %v957, 1.442695
    %v1021 = vpow.pop %v1020
    %v1022 = vsel %vm781, %v959, 0.0
    %v1023 = vsel %vm781, %v961, 0.0
    %v1024 = vadd.f32 %v1022, %v1023
    %v1025 = vrot.slane %v1024, 4
    %v1026 = vadd.f32 %v1024, %v1025
    %v1027 = vrot.slane %v1026, 2
    %v1028 = vadd.f32 %v1026, %v1027
    %v1029 = vrot.slane %v1028, 1
    %v1030 = vadd.f32 %v1028, %v1029
    %v1031 = vsel %vm781, %v963, 0.0
    %v1032 = vsel %vm781, %v965, 0.0
    %v1033 = vadd.f32 %v1031, %v1032
    %v1034 = vrot.slane %v1033, 4
    %v1035 = vadd.f32 %v1033, %v1034
    %v1036 = vrot.slane %v1035, 2
    %v1037 = vadd.f32 %v1035, %v1036
    %v1038 = vrot.slane %v1037, 1
    %v1039 = vadd.f32 %v1037, %v1038
    %v1040 = vsel %vm781, %v967, 0.0
    %v1041 = vsel %vm781, %v969, 0.0
    %v1042 = vadd.f32 %v1040, %v1041
    %v1043 = vrot.slane %v1042, 4
    %v1044 = vadd.f32 %v1042, %v1043
    %v1045 = vrot.slane %v1044, 2
    %v1046 = vadd.f32 %v1044, %v1045
    %v1047 = vrot.slane %v1046, 1
    %v1048 = vadd.f32 %v1046, %v1047
    %v1049 = vsel %vm781, %v971, 0.0
    %v1050 = vsel %vm781, %v973, 0.0
    %v1051 = vadd.f32 %v1049, %v1050
    %v1052 = vrot.slane %v1051, 4
    %v1053 = vadd.f32 %v1051, %v1052
    %v1054 = vrot.slane %v1053, 2
    %v1055 = vadd.f32 %v1053, %v1054
    %v1056 = vrot.slane %v1055, 1
    %v1057 = vadd.f32 %v1055, %v1056
    %v1058 = vsel %vm781, %v975, 0.0
    %v1059 = vsel %vm781, %v977, 0.0
    %v1060 = vadd.f32 %v1058, %v1059
    %v1061 = vrot.slane %v1060, 4
    %v1062 = vadd.f32 %v1060, %v1061
    %v1063 = vrot.slane %v1062, 2
    %v1064 = vadd.f32 %v1062, %v1063
    %v1065 = vrot.slane %v1064, 1
    %v1066 = vadd.f32 %v1064, %v1065
    %v1067 = vsel %vm781, %v979, 0.0
    %v1068 = vsel %vm781, %v981, 0.0
    %v1069 = vadd.f32 %v1067, %v1068
    %v1070 = vrot.slane %v1069, 4
    %v1071 = vadd.f32 %v1069, %v1070
    %v1072 = vrot.slane %v1071, 2
    %v1073 = vadd.f32 %v1071, %v1072
    %v1074 = vrot.slane %v1073, 1
    %v1075 = vadd.f32 %v1073, %v1074
    %v1076 = vsel %vm781, %v983, 0.0
    %v1077 = vsel %vm781, %v985, 0.0
    %v1078 = vadd.f32 %v1076, %v1077
    %v1079 = vrot.slane %v1078, 4
    %v1080 = vadd.f32 %v1078, %v1079
    %v1081 = vrot.slane %v1080, 2
    %v1082 = vadd.f32 %v1080, %v1081
    %v1083 = vrot.slane %v1082, 1
    %v1084 = vadd.f32 %v1082, %v1083
    %v1085 = vsel %vm781, %v987, 0.0
    %v1086 = vsel %vm781, %v989, 0.0
    %v1087 = vadd.f32 %v1085, %v1086
    %v1088 = vrot.slane %v1087, 4
    %v1089 = vadd.f32 %v1087, %v1088
    %v1090 = vrot.slane %v1089, 2
    %v1091 = vadd.f32 %v1089, %v1090
    %v1092 = vrot.slane %v1091, 1
    %v1093 = vadd.f32 %v1091, %v1092
    %v1094 = vsel %vm781, %v991, 0.0
    %v1095 = vsel %vm781, %v993, 0.0
    %v1096 = vadd.f32 %v1094, %v1095
    %v1097 = vrot.slane %v1096, 4
    %v1098 = vadd.f32 %v1096, %v1097
    %v1099 = vrot.slane %v1098, 2
    %v1100 = vadd.f32 %v1098, %v1099
    %v1101 = vrot.slane %v1100, 1
    %v1102 = vadd.f32 %v1100, %v1101
    %v1103 = vsel %vm781, %v995, 0.0
    %v1104 = vsel %vm781, %v997, 0.0
    %v1105 = vadd.f32 %v1103, %v1104
    %v1106 = vrot.slane %v1105, 4
    %v1107 = vadd.f32 %v1105, %v1106
    %v1108 = vrot.slane %v1107, 2
    %v1109 = vadd.f32 %v1107, %v1108
    %v1110 = vrot.slane %v1109, 1
    %v1111 = vadd.f32 %v1109, %v1110
    %v1112 = vsel %vm781, %v999, 0.0
    %v1113 = vsel %vm781, %v1001, 0.0
    %v1114 = vadd.f32 %v1112, %v1113
    %v1115 = vrot.slane %v1114, 4
    %v1116 = vadd.f32 %v1114, %v1115
    %v1117 = vrot.slane %v1116, 2
    %v1118 = vadd.f32 %v1116, %v1117
    %v1119 = vrot.slane %v1118, 1
    %v1120 = vadd.f32 %v1118, %v1119
    %v1121 = vsel %vm781, %v1003, 0.0
    %v1122 = vsel %vm781, %v1005, 0.0
    %v1123 = vadd.f32 %v1121, %v1122
    %v1124 = vrot.slane %v1123, 4
    %v1125 = vadd.f32 %v1123, %v1124
    %v1126 = vrot.slane %v1125, 2
    %v1127 = vadd.f32 %v1125, %v1126
    %v1128 = vrot.slane %v1127, 1
    %v1129 = vadd.f32 %v1127, %v1128
    %v1130 = vsel %vm781, %v1007, 0.0
    %v1131 = vsel %vm781, %v1009, 0.0
    %v1132 = vadd.f32 %v1130, %v1131
    %v1133 = vrot.slane %v1132, 4
    %v1134 = vadd.f32 %v1132, %v1133
    %v1135 = vrot.slane %v1134, 2
    %v1136 = vadd.f32 %v1134, %v1135
    %v1137 = vrot.slane %v1136, 1
    %v1138 = vadd.f32 %v1136, %v1137
    %v1139 = vsel %vm781, %v1011, 0.0
    %v1140 = vsel %vm781, %v1013, 0.0
    %v1141 = vadd.f32 %v1139, %v1140
    %v1142 = vrot.slane %v1141, 4
    %v1143 = vadd.f32 %v1141, %v1142
    %v1144 = vrot.slane %v1143, 2
    %v1145 = vadd.f32 %v1143, %v1144
    %v1146 = vrot.slane %v1145, 1
    %v1147 = vadd.f32 %v1145, %v1146
    %v1148 = vsel %vm781, %v1015, 0.0
    %v1149 = vsel %vm781, %v1017, 0.0
    %v1150 = vadd.f32 %v1148, %v1149
    %v1151 = vrot.slane %v1150, 4
    %v1152 = vadd.f32 %v1150, %v1151
    %v1153 = vrot.slane %v1152, 2
    %v1154 = vadd.f32 %v1152, %v1153
    %v1155 = vrot.slane %v1154, 1
    %v1156 = vadd.f32 %v1154, %v1155
    %v1157 = vsel %vm781, %v1019, 0.0
    %v1158 = vsel %vm781, %v1021, 0.0
    %v1159 = vadd.f32 %v1157, %v1158
    %v1160 = vrot.slane %v1159, 4
    %v1161 = vadd.f32 %v1159, %v1160
    %v1162 = vrot.slane %v1161, 2
    %v1163 = vadd.f32 %v1161, %v1162
    %v1164 = vrot.slane %v1163, 1
    %v1165 = vadd.f32 %v1163, %v1164
    %v1166 = vrcp.pop %v1030
    %v1167 = vrcp.pop %v1039
    %v1168 = vrcp.pop %v1048
    %v1169 = vrcp.pop %v1057
    %v1170 = vrcp.pop %v1066
    %v1171 = vrcp.pop %v1075
    %v1172 = vrcp.pop %v1084
    %v1173 = vrcp.pop %v1093
    %v1174 = vrcp.pop %v1102
    %v1175 = vrcp.pop %v1111
    %v1176 = vrcp.pop %v1120
    %v1177 = vrcp.pop %v1129
    %v1178 = vrcp.pop %v1138
    %v1179 = vrcp.pop %v1147
    %v1180 = vrcp.pop %v1156
    %v1181 = vrcp.pop %v1165
    %v1182 = vmul.f32 %v959, %v1166
    %v1183 = vmul.f32 %v961, %v1166
    %v1184 = vmul.f32 %v963, %v1167
    %v1185 = vmul.f32 %v965, %v1167
    %v1186 = vmul.f32 %v967, %v1168
    %v1187 = vmul.f32 %v969, %v1168
    %v1188 = vmul.f32 %v971, %v1169
    %v1189 = vmul.f32 %v973, %v1169
    %v1190 = vmul.f32 %v975, %v1170
    %v1191 = vmul.f32 %v977, %v1170
    %v1192 = vmul.f32 %v979, %v1171
    %v1193 = vmul.f32 %v981, %v1171
    %v1194 = vmul.f32 %v983, %v1172
    %v1195 = vmul.f32 %v985, %v1172
    %v1196 = vmul.f32 %v987, %v1173
    %v1197 = vmul.f32 %v989, %v1173
    %v1198 = vmul.f32 %v991, %v1174
    %v1199 = vmul.f32 %v993, %v1174
    %v1200 = vmul.f32 %v995, %v1175
    %v1201 = vmul.f32 %v997, %v1175
    %v1202 = vmul.f32 %v999, %v1176
    %v1203 = vmul.f32 %v1001, %v1176
    %v1204 = vmul.f32 %v1003, %v1177
    %v1205 = vmul.f32 %v1005, %v1177
    %v1206 = vmul.f32 %v1007, %v1178
    %v1207 = vmul.f32 %v1009, %v1178
    %v1208 = vmul.f32 %v1011, %v1179
    %v1209 = vmul.f32 %v1013, %v1179
    %v1210 = vmul.f32 %v1015, %v1180
    %v1211 = vmul.f32 %v1017, %v1180
    %v1212 = vmul.f32 %v1019, %v1181
    %v1213 = vmul.f32 %v1021, %v1181
    %v1214 = vld [vmem:[%s8] sm:$0x1]
    %v1216 = vperm.slane %v1214, 0
    %1250 = vset.pattern.permute.xlu0 0
    %1251 = vperm.xlu0 %1250, %v1182
    %v1252 = vpop.permute.xlu0 %1251
    %1253 = vset.pattern.permute.xlu0 0
    %1254 = vperm.xlu0 %1253, %v1183
    %v1255 = vpop.permute.xlu0 %1254
    %1256 = vset.pattern.permute.xlu0 0
    %1257 = vperm.xlu0 %1256, %v1184
    %v1258 = vpop.permute.xlu0 %1257
    %1259 = vset.pattern.permute.xlu0 0
    %1260 = vperm.xlu0 %1259, %v1185
    %v1261 = vpop.permute.xlu0 %1260
    %1262 = vset.pattern.permute.xlu0 0
    %1263 = vperm.xlu0 %1262, %v1186
    %v1264 = vpop.permute.xlu0 %1263
    %1265 = vset.pattern.permute.xlu0 0
    %1266 = vperm.xlu0 %1265, %v1187
    %v1267 = vpop.permute.xlu0 %1266
    %1268 = vset.pattern.permute.xlu0 0
    %1269 = vperm.xlu0 %1268, %v1188
    %v1270 = vpop.permute.xlu0 %1269
    %1271 = vset.pattern.permute.xlu0 0
    %1272 = vperm.xlu0 %1271, %v1189
    %v1273 = vpop.permute.xlu0 %1272
    %1274 = vset.pattern.permute.xlu0 0
    %1275 = vperm.xlu0 %1274, %v1190
    %v1276 = vpop.permute.xlu0 %1275
    %1277 = vset.pattern.permute.xlu0 0
    %1278 = vperm.xlu0 %1277, %v1191
    %v1279 = vpop.permute.xlu0 %1278
    %1280 = vset.pattern.permute.xlu0 0
    %1281 = vperm.xlu0 %1280, %v1192
    %v1282 = vpop.permute.xlu0 %1281
    %1283 = vset.pattern.permute.xlu0 0
    %1284 = vperm.xlu0 %1283, %v1193
    %v1285 = vpop.permute.xlu0 %1284
    %1286 = vset.pattern.permute.xlu0 0
    %1287 = vperm.xlu0 %1286, %v1194
    %v1288 = vpop.permute.xlu0 %1287
    %1289 = vset.pattern.permute.xlu0 0
    %1290 = vperm.xlu0 %1289, %v1195
    %v1291 = vpop.permute.xlu0 %1290
    %1292 = vset.pattern.permute.xlu0 0
    %1293 = vperm.xlu0 %1292, %v1196
    %v1294 = vpop.permute.xlu0 %1293
    %1295 = vset.pattern.permute.xlu0 0
    %1296 = vperm.xlu0 %1295, %v1197
    %v1297 = vpop.permute.xlu0 %1296
    %1298 = vset.pattern.permute.xlu0 0
    %1299 = vperm.xlu0 %1298, %v1198
    %v1300 = vpop.permute.xlu0 %1299
    %1301 = vset.pattern.permute.xlu0 0
    %1302 = vperm.xlu0 %1301, %v1199
    %v1303 = vpop.permute.xlu0 %1302
    %1304 = vset.pattern.permute.xlu0 0
    %1305 = vperm.xlu0 %1304, %v1200
    %v1306 = vpop.permute.xlu0 %1305
    %1307 = vset.pattern.permute.xlu0 0
    %1308 = vperm.xlu0 %1307, %v1201
    %v1309 = vpop.permute.xlu0 %1308
    %1310 = vset.pattern.permute.xlu0 0
    %1311 = vperm.xlu0 %1310, %v1202
    %v1312 = vpop.permute.xlu0 %1311
    %1313 = vset.pattern.permute.xlu0 0
    %1314 = vperm.xlu0 %1313, %v1203
    %v1315 = vpop.permute.xlu0 %1314
    %1316 = vset.pattern.permute.xlu0 0
    %1317 = vperm.xlu0 %1316, %v1204
    %v1318 = vpop.permute.xlu0 %1317
    %1319 = vset.pattern.permute.xlu0 0
    %1320 = vperm.xlu0 %1319, %v1205
    %v1321 = vpop.permute.xlu0 %1320
    %1322 = vset.pattern.permute.xlu0 0
    %1323 = vperm.xlu0 %1322, %v1206
    %v1324 = vpop.permute.xlu0 %1323
    %1325 = vset.pattern.permute.xlu0 0
    %1326 = vperm.xlu0 %1325, %v1207
    %v1327 = vpop.permute.xlu0 %1326
    %1328 = vset.pattern.permute.xlu0 0
    %1329 = vperm.xlu0 %1328, %v1208
    %v1330 = vpop.permute.xlu0 %1329
    %1331 = vset.pattern.permute.xlu0 0
    %1332 = vperm.xlu0 %1331, %v1209
    %v1333 = vpop.permute.xlu0 %1332
    %1334 = vset.pattern.permute.xlu0 0
    %1335 = vperm.xlu0 %1334, %v1210
    %v1336 = vpop.permute.xlu0 %1335
    %1337 = vset.pattern.permute.xlu0 0
    %1338 = vperm.xlu0 %1337, %v1211
    %v1339 = vpop.permute.xlu0 %1338
    %1340 = vset.pattern.permute.xlu0 0
    %1341 = vperm.xlu0 %1340, %v1212
    %v1342 = vpop.permute.xlu0 %1341
    %1343 = vset.pattern.permute.xlu0 0
    %1344 = vperm.xlu0 %1343, %v1213
    %v1345 = vpop.permute.xlu0 %1344
    %v1346 = vlaneseq
    %v1347 = vand.u32 %v1346, 127
    %v1348 = vperm.slane %v1252, %v1347
    %v1349 = vadd.s32 %v1347, 4294967288
    %v1350 = vperm.slane %v1255, %v1349
    %vm1351 = vcmask 130112
    %v1352 = vsel %vm1351, %v1350, %v1348
    %v1353 = vperm.slane %v1258, %v1347
    %v1354 = vperm.slane %v1261, %v1349
    %v1355 = vsel %vm1351, %v1354, %v1353
    %v1356 = vperm.slane %v1264, %v1347
    %v1357 = vperm.slane %v1267, %v1349
    %v1358 = vsel %vm1351, %v1357, %v1356
    %v1359 = vperm.slane %v1270, %v1347
    %v1360 = vperm.slane %v1273, %v1349
    %v1361 = vsel %vm1351, %v1360, %v1359
    %v1362 = vperm.slane %v1276, %v1347
    %v1363 = vperm.slane %v1279, %v1349
    %v1364 = vsel %vm1351, %v1363, %v1362
    %v1365 = vperm.slane %v1282, %v1347
    %v1366 = vperm.slane %v1285, %v1349
    %v1367 = vsel %vm1351, %v1366, %v1365
    %v1368 = vperm.slane %v1288, %v1347
    %v1369 = vperm.slane %v1291, %v1349
    %v1370 = vsel %vm1351, %v1369, %v1368
    %v1371 = vperm.slane %v1294, %v1347
    %v1372 = vperm.slane %v1297, %v1349
    %v1373 = vsel %vm1351, %v1372, %v1371
    %v1374 = vperm.slane %v1300, %v1347
    %v1375 = vperm.slane %v1303, %v1349
    %v1376 = vsel %vm1351, %v1375, %v1374
    %v1377 = vperm.slane %v1306, %v1347
    %v1378 = vperm.slane %v1309, %v1349
    %v1379 = vsel %vm1351, %v1378, %v1377
    %v1380 = vperm.slane %v1312, %v1347
    %v1381 = vperm.slane %v1315, %v1349
    %v1382 = vsel %vm1351, %v1381, %v1380
    %v1383 = vperm.slane %v1318, %v1347
    %v1384 = vperm.slane %v1321, %v1349
    %v1385 = vsel %vm1351, %v1384, %v1383
    %v1386 = vperm.slane %v1324, %v1347
    %v1387 = vperm.slane %v1327, %v1349
    %v1388 = vsel %vm1351, %v1387, %v1386
    %v1389 = vperm.slane %v1330, %v1347
    %v1390 = vperm.slane %v1333, %v1349
    %v1391 = vsel %vm1351, %v1390, %v1389
    %v1392 = vperm.slane %v1336, %v1347
    %v1393 = vperm.slane %v1339, %v1349
    %v1394 = vsel %vm1351, %v1393, %v1392
    %v1395 = vperm.slane %v1342, %v1347
    %v1396 = vperm.slane %v1345, %v1349
    %v1397 = vsel %vm1351, %v1396, %v1395
    %vm1398 = vcmask 1041409
    %v1399 = vsel %vm1398, %v1355, %v1352
    %vm1400 = vcmask 1042434
    %v1401 = vsel %vm1400, %v1358, %v1399
    %vm1402 = vcmask 1043459
    %v1403 = vsel %vm1402, %v1361, %v1401
    %vm1404 = vcmask 1044484
    %v1405 = vsel %vm1404, %v1364, %v1403
    %vm1406 = vcmask 1045509
    %v1407 = vsel %vm1406, %v1367, %v1405
    %vm1408 = vcmask 1046534
    %v1409 = vsel %vm1408, %v1370, %v1407
    %vm1410 = vcmask 1047559
    %v1411 = vsel %vm1410, %v1373, %v1409
    %v1412 = vsel %vm1398, %v1379, %v1376
    %v1413 = vsel %vm1400, %v1382, %v1412
    %v1414 = vsel %vm1402, %v1385, %v1413
    %v1415 = vsel %vm1404, %v1388, %v1414
    %v1416 = vsel %vm1406, %v1391, %v1415
    %v1417 = vsel %vm1408, %v1394, %v1416
    %v1418 = vsel %vm1410, %v1397, %v1417
    %vm1419 = vcmask 130048
    %v1420 = vsel %vm1419, %v1411, 0
    %v1422 = vsel %vm1419, %v1418, 0
    %1424 = vmatpush.msra.mxu0 0.0
    %1425 = vmatpush.msra.mxu0 0.0
    %1426 = vmatpush.msra.mxu0 0.0
    %1427 = vmatpush.msra.mxu0 0.0
    %1428 = vmatpush.msra.mxu0 0.0
    %1429 = vmatpush.msra.mxu0 0.0
    %1430 = vmatpush.msra.mxu0 0.0
    %1431 = vmatpush.msra.mxu0 0.0
    %1432 = vmatpush.msra.mxu0 0.0
    %1433 = vmatpush.msra.mxu0 0.0
    %1434 = vmatpush.msra.mxu0 0.0
    %1435 = vmatpush.msra.mxu0 0.0
    %1436 = vmatpush.msra.mxu0 0.0
    %1437 = vmatpush.msra.mxu0 0.0
    %1438 = vmatpush.msra.mxu0 %v113
    %1439 = vmatpush.msra.mxu0 %v110
    %1440 = vmatmul.f32.gmra.mxu0 %v1420
    %v1441 = vpop.f32.mrf.mxu0
    %v1442 = vadd.f32 %v1216, %v1441
    %1443 = vmatmul.f32.gmra.mxu0 %v1422
    %v1444 = vpop.f32.mrf.mxu0
    %v1445 = vadd.f32 %v1216, %v1444
    %1446 = vdwg.mxu0
    %v1447 = vtanh.pop %v1442
    %v1448 = vtanh.pop %v1445
    %vm1449 = vcmask 261120
    %1450 = vst.msk [vmem:[#allocation2] sm:$0xff] %vm1449, %v1447
    %1451 = vst.msk [vmem:[#allocation2 + $0x10] sm:$0xff] %vm1449, %v1448
    %1452 = vset.pattern.permute.xlu0 1
    %1453 = vperm.xlu0 %1452, %v1182
    %v1454 = vpop.permute.xlu0 %1453
    %1455 = vset.pattern.permute.xlu0 1
    %1456 = vperm.xlu0 %1455, %v1183
    %v1457 = vpop.permute.xlu0 %1456
    %1458 = vset.pattern.permute.xlu0 1
    %1459 = vperm.xlu0 %1458, %v1184
    %v1460 = vpop.permute.xlu0 %1459
    %1461 = vset.pattern.permute.xlu0 1
    %1462 = vperm.xlu0 %1461, %v1185
    %v1463 = vpop.permute.xlu0 %1462
    %1464 = vset.pattern.permute.xlu0 1
    %1465 = vperm.xlu0 %1464, %v1186
    %v1466 = vpop.permute.xlu0 %1465
    %1467 = vset.pattern.permute.xlu0 1
    %1468 = vperm.xlu0 %1467, %v1187
    %v1469 = vpop.permute.xlu0 %1468
    %1470 = vset.pattern.permute.xlu0 1
    %1471 = vperm.xlu0 %1470, %v1188
    %v1472 = vpop.permute.xlu0 %1471
    %1473 = vset.pattern.permute.xlu0 1
    %1474 = vperm.xlu0 %1473, %v1189
    %v1475 = vpop.permute.xlu0 %1474
    %1476 = vset.pattern.permute.xlu0 1
    %1477 = vperm.xlu0 %1476, %v1190
    %v1478 = vpop.permute.xlu0 %1477
    %1479 = vset.pattern.permute.xlu0 1
    %1480 = vperm.xlu0 %1479, %v1191
    %v1481 = vpop.permute.xlu0 %1480
    %1482 = vset.pattern.permute.xlu0 1
    %1483 = vperm.xlu0 %1482, %v1192
    %v1484 = vpop.permute.xlu0 %1483
    %1485 = vset.pattern.permute.xlu0 1
    %1486 = vperm.xlu0 %1485, %v1193
    %v1487 = vpop.permute.xlu0 %1486
    %1488 = vset.pattern.permute.xlu0 1
    %1489 = vperm.xlu0 %1488, %v1194
    %v1490 = vpop.permute.xlu0 %1489
    %1491 = vset.pattern.permute.xlu0 1
    %1492 = vperm.xlu0 %1491, %v1195
    %v1493 = vpop.permute.xlu0 %1492
    %1494 = vset.pattern.permute.xlu0 1
    %1495 = vperm.xlu0 %1494, %v1196
    %v1496 = vpop.permute.xlu0 %1495
    %1497 = vset.pattern.permute.xlu0 1
    %1498 = vperm.xlu0 %1497, %v1197
    %v1499 = vpop.permute.xlu0 %1498
    %1500 = vset.pattern.permute.xlu0 1
    %1501 = vperm.xlu0 %1500, %v1198
    %v1502 = vpop.permute.xlu0 %1501
    %1503 = vset.pattern.permute.xlu0 1
    %1504 = vperm.xlu0 %1503, %v1199
    %v1505 = vpop.permute.xlu0 %1504
    %1506 = vset.pattern.permute.xlu0 1
    %1507 = vperm.xlu0 %1506, %v1200
    %v1508 = vpop.permute.xlu0 %1507
    %1509 = vset.pattern.permute.xlu0 1
    %1510 = vperm.xlu0 %1509, %v1201
    %v1511 = vpop.permute.xlu0 %1510
    %1512 = vset.pattern.permute.xlu0 1
    %1513 = vperm.xlu0 %1512, %v1202
    %v1514 = vpop.permute.xlu0 %1513
    %1515 = vset.pattern.permute.xlu0 1
    %1516 = vperm.xlu0 %1515, %v1203
    %v1517 = vpop.permute.xlu0 %1516
    %1518 = vset.pattern.permute.xlu0 1
    %1519 = vperm.xlu0 %1518, %v1204
    %v1520 = vpop.permute.xlu0 %1519
    %1521 = vset.pattern.permute.xlu0 1
    %1522 = vperm.xlu0 %1521, %v1205
    %v1523 = vpop.permute.xlu0 %1522
    %1524 = vset.pattern.permute.xlu0 1
    %1525 = vperm.xlu0 %1524, %v1206
    %v1526 = vpop.permute.xlu0 %1525
    %1527 = vset.pattern.permute.xlu0 1
    %1528 = vperm.xlu0 %1527, %v1207
    %v1529 = vpop.permute.xlu0 %1528
    %1530 = vset.pattern.permute.xlu0 1
    %1531 = vperm.xlu0 %1530, %v1208
    %v1532 = vpop.permute.xlu0 %1531
    %1533 = vset.pattern.permute.xlu0 1
    %1534 = vperm.xlu0 %1533, %v1209
    %v1535 = vpop.permute.xlu0 %1534
    %1536 = vset.pattern.permute.xlu0 1
    %1537 = vperm.xlu0 %1536, %v1210
    %v1538 = vpop.permute.xlu0 %1537
    %1539 = vset.pattern.permute.xlu0 1
    %1540 = vperm.xlu0 %1539, %v1211
    %v1541 = vpop.permute.xlu0 %1540
    %1542 = vset.pattern.permute.xlu0 1
    %1543 = vperm.xlu0 %1542, %v1212
    %v1544 = vpop.permute.xlu0 %1543
    %1545 = vset.pattern.permute.xlu0 1
    %1546 = vperm.xlu0 %1545, %v1213
    %v1547 = vpop.permute.xlu0 %1546
    %v1548 = vperm.slane %v1454, %v1347
    %v1549 = vperm.slane %v1457, %v1349
    %v1550 = vsel %vm1351, %v1549, %v1548
    %v1551 = vperm.slane %v1460, %v1347
    %v1552 = vperm.slane %v1463, %v1349
    %v1553 = vsel %vm1351, %v1552, %v1551
    %v1554 = vperm.slane %v1466, %v1347
    %v1555 = vperm.slane %v1469, %v1349
    %v1556 = vsel %vm1351, %v1555, %v1554
    %v1557 = vperm.slane %v1472, %v1347
    %v1558 = vperm.slane %v1475, %v1349
    %v1559 = vsel %vm1351, %v1558, %v1557
    %v1560 = vperm.slane %v1478, %v1347
    %v1561 = vperm.slane %v1481, %v1349
    %v1562 = vsel %vm1351, %v1561, %v1560
    %v1563 = vperm.slane %v1484, %v1347
    %v1564 = vperm.slane %v1487, %v1349
    %v1565 = vsel %vm1351, %v1564, %v1563
    %v1566 = vperm.slane %v1490, %v1347
    %v1567 = vperm.slane %v1493, %v1349
    %v1568 = vsel %vm1351, %v1567, %v1566
    %v1569 = vperm.slane %v1496, %v1347
    %v1570 = vperm.slane %v1499, %v1349
    %v1571 = vsel %vm1351, %v1570, %v1569
    %v1572 = vperm.slane %v1502, %v1347
    %v1573 = vperm.slane %v1505, %v1349
    %v1574 = vsel %vm1351, %v1573, %v1572
    %v1575 = vperm.slane %v1508, %v1347
    %v1576 = vperm.slane %v1511, %v1349
    %v1577 = vsel %vm1351, %v1576, %v1575
    %v1578 = vperm.slane %v1514, %v1347
    %v1579 = vperm.slane %v1517, %v1349
    %v1580 = vsel %vm1351, %v1579, %v1578
    %v1581 = vperm.slane %v1520, %v1347
    %v1582 = vperm.slane %v1523, %v1349
    %v1583 = vsel %vm1351, %v1582, %v1581
    %v1584 = vperm.slane %v1526, %v1347
    %v1585 = vperm.slane %v1529, %v1349
    %v1586 = vsel %vm1351, %v1585, %v1584
    %v1587 = vperm.slane %v1532, %v1347
    %v1588 = vperm.slane %v1535, %v1349
    %v1589 = vsel %vm1351, %v1588, %v1587
    %v1590 = vperm.slane %v1538, %v1347
    %v1591 = vperm.slane %v1541, %v1349
    %v1592 = vsel %vm1351, %v1591, %v1590
    %v1593 = vperm.slane %v1544, %v1347
    %v1594 = vperm.slane %v1547, %v1349
    %v1595 = vsel %vm1351, %v1594, %v1593
    %v1596 = vsel %vm1398, %v1553, %v1550
    %v1597 = vsel %vm1400, %v1556, %v1596
    %v1598 = vsel %vm1402, %v1559, %v1597
    %v1599 = vsel %vm1404, %v1562, %v1598
    %v1600 = vsel %vm1406, %v1565, %v1599
    %v1601 = vsel %vm1408, %v1568, %v1600
    %v1602 = vsel %vm1410, %v1571, %v1601
    %v1603 = vsel %vm1398, %v1577, %v1574
    %v1604 = vsel %vm1400, %v1580, %v1603
    %v1605 = vsel %vm1402, %v1583, %v1604
    %v1606 = vsel %vm1404, %v1586, %v1605
    %v1607 = vsel %vm1406, %v1589, %v1606
    %v1608 = vsel %vm1408, %v1592, %v1607
    %v1609 = vsel %vm1410, %v1595, %v1608
    %1612 = vrot.lane.b32.xlu0 %v110, 96
    %v1613 = vpop.permute.xlu0 %1612
    %1614 = vrot.lane.b32.xlu0 %v113, 96
    %v1615 = vpop.permute.xlu0 %1614
    %1618 = vrot.lane.b32.xlu0 %v1216, 96
    %v1619 = vpop.permute.xlu0 %1618
    %v1621 = vsel %vm1419, %v1602, 0
    %v1623 = vsel %vm1419, %v1609, 0
    %1625 = vmatpush.msra.mxu0 0.0
    %1626 = vmatpush.msra.mxu0 0.0
    %1627 = vmatpush.msra.mxu0 0.0
    %1628 = vmatpush.msra.mxu0 0.0
    %1629 = vmatpush.msra.mxu0 0.0
    %1630 = vmatpush.msra.mxu0 0.0
    %1631 = vmatpush.msra.mxu0 0.0
    %1632 = vmatpush.msra.mxu0 0.0
    %1633 = vmatpush.msra.mxu0 0.0
    %1634 = vmatpush.msra.mxu0 0.0
    %1635 = vmatpush.msra.mxu0 0.0
    %1636 = vmatpush.msra.mxu0 0.0
    %1637 = vmatpush.msra.mxu0 0.0
    %1638 = vmatpush.msra.mxu0 0.0
    %1639 = vmatpush.msra.mxu0 %v1615
    %1640 = vmatpush.msra.mxu0 %v1613
    %1641 = vmatmul.f32.gmra.mxu0 %v1621
    %v1642 = vpop.f32.mrf.mxu0
    %v1643 = vadd.f32 %v1619, %v1642
    %1644 = vmatmul.f32.gmra.mxu0 %v1623
    %v1645 = vpop.f32.mrf.mxu0
    %v1646 = vadd.f32 %v1619, %v1645
    %1647 = vdwg.mxu0
    %v1648 = vtanh.pop %v1643
    %v1649 = vtanh.pop %v1646
    %1652 = vrot.lane.b32.xlu0 %v1648, 32
    %v1653 = vpop.permute.xlu0 %1652
    %1654 = vrot.lane.b32.xlu0 %v1649, 32
    %v1655 = vpop.permute.xlu0 %1654
    %vm1658 = vcmask 523520
    %1659 = vst.msk [vmem:[#allocation2] sm:$0xff] %vm1658, %v1653
    %1660 = vst.msk [vmem:[#allocation2 + $0x10] sm:$0xff] %vm1658, %v1655
    %1661 = vset.pattern.permute.xlu0 2
    %1662 = vperm.xlu0 %1661, %v1182
    %v1663 = vpop.permute.xlu0 %1662
    %1664 = vset.pattern.permute.xlu0 2
    %1665 = vperm.xlu0 %1664, %v1183
    %v1666 = vpop.permute.xlu0 %1665
    %1667 = vset.pattern.permute.xlu0 2
    %1668 = vperm.xlu0 %1667, %v1184
    %v1669 = vpop.permute.xlu0 %1668
    %1670 = vset.pattern.permute.xlu0 2
    %1671 = vperm.xlu0 %1670, %v1185
    %v1672 = vpop.permute.xlu0 %1671
    %1673 = vset.pattern.permute.xlu0 2
    %1674 = vperm.xlu0 %1673, %v1186
    %v1675 = vpop.permute.xlu0 %1674
    %1676 = vset.pattern.permute.xlu0 2
    %1677 = vperm.xlu0 %1676, %v1187
    %v1678 = vpop.permute.xlu0 %1677
    %1679 = vset.pattern.permute.xlu0 2
    %1680 = vperm.xlu0 %1679, %v1188
    %v1681 = vpop.permute.xlu0 %1680
    %1682 = vset.pattern.permute.xlu0 2
    %1683 = vperm.xlu0 %1682, %v1189
    %v1684 = vpop.permute.xlu0 %1683
    %1685 = vset.pattern.permute.xlu0 2
    %1686 = vperm.xlu0 %1685, %v1190
    %v1687 = vpop.permute.xlu0 %1686
    %1688 = vset.pattern.permute.xlu0 2
    %1689 = vperm.xlu0 %1688, %v1191
    %v1690 = vpop.permute.xlu0 %1689
    %1691 = vset.pattern.permute.xlu0 2
    %1692 = vperm.xlu0 %1691, %v1192
    %v1693 = vpop.permute.xlu0 %1692
    %1694 = vset.pattern.permute.xlu0 2
    %1695 = vperm.xlu0 %1694, %v1193
    %v1696 = vpop.permute.xlu0 %1695
    %1697 = vset.pattern.permute.xlu0 2
    %1698 = vperm.xlu0 %1697, %v1194
    %v1699 = vpop.permute.xlu0 %1698
    %1700 = vset.pattern.permute.xlu0 2
    %1701 = vperm.xlu0 %1700, %v1195
    %v1702 = vpop.permute.xlu0 %1701
    %1703 = vset.pattern.permute.xlu0 2
    %1704 = vperm.xlu0 %1703, %v1196
    %v1705 = vpop.permute.xlu0 %1704
    %1706 = vset.pattern.permute.xlu0 2
    %1707 = vperm.xlu0 %1706, %v1197
    %v1708 = vpop.permute.xlu0 %1707
    %1709 = vset.pattern.permute.xlu0 2
    %1710 = vperm.xlu0 %1709, %v1198
    %v1711 = vpop.permute.xlu0 %1710
    %1712 = vset.pattern.permute.xlu0 2
    %1713 = vperm.xlu0 %1712, %v1199
    %v1714 = vpop.permute.xlu0 %1713
    %1715 = vset.pattern.permute.xlu0 2
    %1716 = vperm.xlu0 %1715, %v1200
    %v1717 = vpop.permute.xlu0 %1716
    %1718 = vset.pattern.permute.xlu0 2
    %1719 = vperm.xlu0 %1718, %v1201
    %v1720 = vpop.permute.xlu0 %1719
    %1721 = vset.pattern.permute.xlu0 2
    %1722 = vperm.xlu0 %1721, %v1202
    %v1723 = vpop.permute.xlu0 %1722
    %1724 = vset.pattern.permute.xlu0 2
    %1725 = vperm.xlu0 %1724, %v1203
    %v1726 = vpop.permute.xlu0 %1725
    %1727 = vset.pattern.permute.xlu0 2
    %1728 = vperm.xlu0 %1727, %v1204
    %v1729 = vpop.permute.xlu0 %1728
    %1730 = vset.pattern.permute.xlu0 2
    %1731 = vperm.xlu0 %1730, %v1205
    %v1732 = vpop.permute.xlu0 %1731
    %1733 = vset.pattern.permute.xlu0 2
    %1734 = vperm.xlu0 %1733, %v1206
    %v1735 = vpop.permute.xlu0 %1734
    %1736 = vset.pattern.permute.xlu0 2
    %1737 = vperm.xlu0 %1736, %v1207
    %v1738 = vpop.permute.xlu0 %1737
    %1739 = vset.pattern.permute.xlu0 2
    %1740 = vperm.xlu0 %1739, %v1208
    %v1741 = vpop.permute.xlu0 %1740
    %1742 = vset.pattern.permute.xlu0 2
    %1743 = vperm.xlu0 %1742, %v1209
    %v1744 = vpop.permute.xlu0 %1743
    %1745 = vset.pattern.permute.xlu0 2
    %1746 = vperm.xlu0 %1745, %v1210
    %v1747 = vpop.permute.xlu0 %1746
    %1748 = vset.pattern.permute.xlu0 2
    %1749 = vperm.xlu0 %1748, %v1211
    %v1750 = vpop.permute.xlu0 %1749
    %1751 = vset.pattern.permute.xlu0 2
    %1752 = vperm.xlu0 %1751, %v1212
    %v1753 = vpop.permute.xlu0 %1752
    %1754 = vset.pattern.permute.xlu0 2
    %1755 = vperm.xlu0 %1754, %v1213
    %v1756 = vpop.permute.xlu0 %1755
    %v1757 = vperm.slane %v1663, %v1347
    %v1758 = vperm.slane %v1666, %v1349
    %v1759 = vsel %vm1351, %v1758, %v1757
    %v1760 = vperm.slane %v1669, %v1347
    %v1761 = vperm.slane %v1672, %v1349
    %v1762 = vsel %vm1351, %v1761, %v1760
    %v1763 = vperm.slane %v1675, %v1347
    %v1764 = vperm.slane %v1678, %v1349
    %v1765 = vsel %vm1351, %v1764, %v1763
    %v1766 = vperm.slane %v1681, %v1347
    %v1767 = vperm.slane %v1684, %v1349
    %v1768 = vsel %vm1351, %v1767, %v1766
    %v1769 = vperm.slane %v1687, %v1347
    %v1770 = vperm.slane %v1690, %v1349
    %v1771 = vsel %vm1351, %v1770, %v1769
    %v1772 = vperm.slane %v1693, %v1347
    %v1773 = vperm.slane %v1696, %v1349
    %v1774 = vsel %vm1351, %v1773, %v1772
    %v1775 = vperm.slane %v1699, %v1347
    %v1776 = vperm.slane %v1702, %v1349
    %v1777 = vsel %vm1351, %v1776, %v1775
    %v1778 = vperm.slane %v1705, %v1347
    %v1779 = vperm.slane %v1708, %v1349
    %v1780 = vsel %vm1351, %v1779, %v1778
    %v1781 = vperm.slane %v1711, %v1347
    %v1782 = vperm.slane %v1714, %v1349
    %v1783 = vsel %vm1351, %v1782, %v1781
    %v1784 = vperm.slane %v1717, %v1347
    %v1785 = vperm.slane %v1720, %v1349
    %v1786 = vsel %vm1351, %v1785, %v1784
    %v1787 = vperm.slane %v1723, %v1347
    %v1788 = vperm.slane %v1726, %v1349
    %v1789 = vsel %vm1351, %v1788, %v1787
    %v1790 = vperm.slane %v1729, %v1347
    %v1791 = vperm.slane %v1732, %v1349
    %v1792 = vsel %vm1351, %v1791, %v1790
    %v1793 = vperm.slane %v1735, %v1347
    %v1794 = vperm.slane %v1738, %v1349
    %v1795 = vsel %vm1351, %v1794, %v1793
    %v1796 = vperm.slane %v1741, %v1347
    %v1797 = vperm.slane %v1744, %v1349
    %v1798 = vsel %vm1351, %v1797, %v1796
    %v1799 = vperm.slane %v1747, %v1347
    %v1800 = vperm.slane %v1750, %v1349
    %v1801 = vsel %vm1351, %v1800, %v1799
    %v1802 = vperm.slane %v1753, %v1347
    %v1803 = vperm.slane %v1756, %v1349
    %v1804 = vsel %vm1351, %v1803, %v1802
    %v1805 = vsel %vm1398, %v1762, %v1759
    %v1806 = vsel %vm1400, %v1765, %v1805
    %v1807 = vsel %vm1402, %v1768, %v1806
    %v1808 = vsel %vm1404, %v1771, %v1807
    %v1809 = vsel %vm1406, %v1774, %v1808
    %v1810 = vsel %vm1408, %v1777, %v1809
    %v1811 = vsel %vm1410, %v1780, %v1810
    %v1812 = vsel %vm1398, %v1786, %v1783
    %v1813 = vsel %vm1400, %v1789, %v1812
    %v1814 = vsel %vm1402, %v1792, %v1813
    %v1815 = vsel %vm1404, %v1795, %v1814
    %v1816 = vsel %vm1406, %v1798, %v1815
    %v1817 = vsel %vm1408, %v1801, %v1816
    %v1818 = vsel %vm1410, %v1804, %v1817
    %1819 = vrot.lane.b32.xlu0 %v110, 64
    %v1820 = vpop.permute.xlu0 %1819
    %1821 = vrot.lane.b32.xlu0 %v113, 64
    %v1822 = vpop.permute.xlu0 %1821
    %1825 = vrot.lane.b32.xlu0 %v1216, 64
    %v1826 = vpop.permute.xlu0 %1825
    %v1828 = vsel %vm1419, %v1811, 0
    %v1830 = vsel %vm1419, %v1818, 0
    %1832 = vmatpush.msra.mxu0 0.0
    %1833 = vmatpush.msra.mxu0 0.0
    %1834 = vmatpush.msra.mxu0 0.0
    %1835 = vmatpush.msra.mxu0 0.0
    %1836 = vmatpush.msra.mxu0 0.0
    %1837 = vmatpush.msra.mxu0 0.0
    %1838 = vmatpush.msra.mxu0 0.0
    %1839 = vmatpush.msra.mxu0 0.0
    %1840 = vmatpush.msra.mxu0 0.0
    %1841 = vmatpush.msra.mxu0 0.0
    %1842 = vmatpush.msra.mxu0 0.0
    %1843 = vmatpush.msra.mxu0 0.0
    %1844 = vmatpush.msra.mxu0 0.0
    %1845 = vmatpush.msra.mxu0 0.0
    %1846 = vmatpush.msra.mxu0 %v1822
    %1847 = vmatpush.msra.mxu0 %v1820
    %1848 = vmatmul.f32.gmra.mxu0 %v1828
    %v1849 = vpop.f32.mrf.mxu0
    %v1850 = vadd.f32 %v1826, %v1849
    %1851 = vmatmul.f32.gmra.mxu0 %v1830
    %v1852 = vpop.f32.mrf.mxu0
    %v1853 = vadd.f32 %v1826, %v1852
    %1854 = vdwg.mxu0
    %v1855 = vtanh.pop %v1850
    %v1856 = vtanh.pop %v1853
    %1859 = vrot.lane.b32.xlu0 %v1855, 64
    %v1860 = vpop.permute.xlu0 %1859
    %1861 = vrot.lane.b32.xlu0 %v1856, 64
    %v1862 = vpop.permute.xlu0 %1861
    %vm1865 = vcmask 785920
    %1866 = vst.msk [vmem:[#allocation2] sm:$0xff] %vm1865, %v1860
    %1867 = vst.msk [vmem:[#allocation2 + $0x10] sm:$0xff] %vm1865, %v1862
    %v1868 = vld [vmem:[#allocation2] sm:$0xff]
    %v1869 = vld [vmem:[#allocation2 + $0x10] sm:$0xff]
    %v1870 = vld [vmem:[%s9] sm:$0xff]
    %v1871 = vld [vmem:[%s9 + $0x8] sm:$0xff]
    %v1872 = vld [vmem:[%s9 + $0x10] sm:$0xff]
    %v1873 = vld [vmem:[%s9 + $0x18] sm:$0xff]
    %v1874 = vld [vmem:[%s9 + $0x20] sm:$0xff]
    %v1875 = vld [vmem:[%s9 + $0x28] sm:$0xff]
    %v1876 = vld [vmem:[%s9 + $0x30] sm:$0xff]
    %v1877 = vld [vmem:[%s9 + $0x38] sm:$0xff]
    %v1878 = vld [vmem:[%s9 + $0x40] sm:$0xff]
    %v1879 = vld [vmem:[%s9 + $0x48] sm:$0xff]
    %v1880 = vld [vmem:[%s9 + $0x50] sm:$0xff]
    %v1881 = vld [vmem:[%s9 + $0x58] sm:$0xff]
    %v1882 = vld [vmem:[%s10] sm:$0x1]
    %v1884 = vperm.slane %v1882, 0
    %v1887 = vsel %vm331, %v1868, 0
    %v1890 = vsel %vm331, %v1869, 0
    %1892 = vmatpush.msra.mxu0 0.0
    %1893 = vmatpush.msra.mxu0 0.0
    %1894 = vmatpush.msra.mxu0 0.0
    %1895 = vmatpush.msra.mxu0 0.0
    %1896 = vmatpush.msra.mxu0 %v1881
    %1897 = vmatpush.msra.mxu0 %v1880
    %1898 = vmatpush.msra.mxu0 %v1879
    %1899 = vmatpush.msra.mxu0 %v1878
    %1900 = vmatpush.msra.mxu0 %v1877
    %1901 = vmatpush.msra.mxu0 %v1876
    %1902 = vmatpush.msra.mxu0 %v1875
    %1903 = vmatpush.msra.mxu0 %v1874
    %1904 = vmatpush.msra.mxu0 %v1873
    %1905 = vmatpush.msra.mxu0 %v1872
    %1906 = vmatpush.msra.mxu0 %v1871
    %1907 = vmatpush.msra.mxu0 %v1870
    %1908 = vmatmul.f32.gmra.mxu0 %v1887
    %v1909 = vpop.f32.mrf.mxu0
    %v1910 = vadd.f32 %v1884, %v1909
    %1911 = vmatmul.f32.gmra.mxu0 %v1890
    %v1912 = vpop.f32.mrf.mxu0
    %v1913 = vadd.f32 %v1884, %v1912
    %1914 = vdwg.mxu0
    %v1915 = vld [vmem:[%s11] sm:$0xff]
    %v1916 = vld [vmem:[%s11 + $0x8] sm:$0xff]
    %v1917 = vld [vmem:[%s11 + $0x10] sm:$0xff]
    %v1918 = vld [vmem:[%s11 + $0x18] sm:$0xff]
    %v1919 = vld [vmem:[%s11 + $0x20] sm:$0xff]
    %v1920 = vld [vmem:[%s11 + $0x28] sm:$0xff]
    %v1921 = vld [vmem:[%s11 + $0x30] sm:$0xff]
    %v1922 = vld [vmem:[%s11 + $0x38] sm:$0xff]
    %v1923 = vld [vmem:[%s11 + $0x40] sm:$0xff]
    %v1924 = vld [vmem:[%s11 + $0x48] sm:$0xff]
    %v1925 = vld [vmem:[%s11 + $0x50] sm:$0xff]
    %v1926 = vld [vmem:[%s11 + $0x58] sm:$0xff]
    %v1927 = vld [vmem:[%s12] sm:$0x1]
    %v1929 = vperm.slane %v1927, 0
    %1931 = vmatpush.msra.mxu0 0.0
    %1932 = vmatpush.msra.mxu0 0.0
    %1933 = vmatpush.msra.mxu0 0.0
    %1934 = vmatpush.msra.mxu0 0.0
    %1935 = vmatpush.msra.mxu0 %v1926
    %1936 = vmatpush.msra.mxu0 %v1925
    %1937 = vmatpush.msra.mxu0 %v1924
    %1938 = vmatpush.msra.mxu0 %v1923
    %1939 = vmatpush.msra.mxu0 %v1922
    %1940 = vmatpush.msra.mxu0 %v1921
    %1941 = vmatpush.msra.mxu0 %v1920
    %1942 = vmatpush.msra.mxu0 %v1919
    %1943 = vmatpush.msra.mxu0 %v1918
    %1944 = vmatpush.msra.mxu0 %v1917
    %1945 = vmatpush.msra.mxu0 %v1916
    %1946 = vmatpush.msra.mxu0 %v1915
    %1947 = vmatmul.f32.gmra.mxu0 %v1887
    %v1948 = vpop.f32.mrf.mxu0
    %v1949 = vadd.f32 %v1929, %v1948
    %1950 = vmatmul.f32.gmra.mxu0 %v1890
    %v1951 = vpop.f32.mrf.mxu0
    %v1952 = vadd.f32 %v1929, %v1951
    %1953 = vdwg.mxu0
    %v1956 = vrot.slane %v1949, 1
    %v1957 = vrot.slane %v1949, 2
    %v1958 = vrot.slane %v1949, 3
    %v1959 = vrot.slane %v1949, 4
    %v1960 = vrot.slane %v1949, 5
    %v1961 = vrot.slane %v1949, 6
    %v1962 = vrot.slane %v1949, 7
    %v1963 = vrot.slane %v1952, 1
    %v1964 = vrot.slane %v1952, 2
    %v1965 = vrot.slane %v1952, 3
    %v1966 = vrot.slane %v1952, 4
    %v1967 = vrot.slane %v1952, 5
    %v1968 = vrot.slane %v1952, 6
    %v1969 = vrot.slane %v1952, 7
    %v1970 = vperm.slane %v1949, 0
    %v1971 = vperm.slane %v1956, 0
    %v1972 = vperm.slane %v1957, 0
    %v1973 = vperm.slane %v1958, 0
    %v1974 = vperm.slane %v1959, 0
    %v1975 = vperm.slane %v1960, 0
    %v1976 = vperm.slane %v1961, 0
    %v1977 = vperm.slane %v1962, 0
    %v1978 = vperm.slane %v1952, 0
    %v1979 = vperm.slane %v1963, 0
    %v1980 = vperm.slane %v1964, 0
    %v1981 = vperm.slane %v1965, 0
    %v1982 = vperm.slane %v1966, 0
    %v1983 = vperm.slane %v1967, 0
    %v1984 = vperm.slane %v1968, 0
    %v1985 = vperm.slane %v1969, 0
    %v2002 = vadd.f32 %v1970, %v1910
    %v2003 = vadd.f32 %v1970, %v1913
    %v2004 = vadd.f32 %v1971, %v1910
    %v2005 = vadd.f32 %v1971, %v1913
    %v2006 = vadd.f32 %v1972, %v1910
    %v2007 = vadd.f32 %v1972, %v1913
    %v2008 = vadd.f32 %v1973, %v1910
    %v2009 = vadd.f32 %v1973, %v1913
    %v2010 = vadd.f32 %v1974, %v1910
    %v2011 = vadd.f32 %v1974, %v1913
    %v2012 = vadd.f32 %v1975, %v1910
    %v2013 = vadd.f32 %v1975, %v1913
    %v2014 = vadd.f32 %v1976, %v1910
    %v2015 = vadd.f32 %v1976, %v1913
    %v2016 = vadd.f32 %v1977, %v1910
    %v2017 = vadd.f32 %v1977, %v1913
    %v2018 = vadd.f32 %v1978, %v1910
    %v2019 = vadd.f32 %v1978, %v1913
    %v2020 = vadd.f32 %v1979, %v1910
    %v2021 = vadd.f32 %v1979, %v1913
    %v2022 = vadd.f32 %v1980, %v1910
    %v2023 = vadd.f32 %v1980, %v1913
    %v2024 = vadd.f32 %v1981, %v1910
    %v2025 = vadd.f32 %v1981, %v1913
    %v2026 = vadd.f32 %v1982, %v1910
    %v2027 = vadd.f32 %v1982, %v1913
    %v2028 = vadd.f32 %v1983, %v1910
    %v2029 = vadd.f32 %v1983, %v1913
    %v2030 = vadd.f32 %v1984, %v1910
    %v2031 = vadd.f32 %v1984, %v1913
    %v2032 = vadd.f32 %v1985, %v1910
    %v2033 = vadd.f32 %v1985, %v1913
    %vm2034 = vcmp.gt.f32.partialorder %v2002, 0.0
    %vm2035 = vcmp.gt.f32.partialorder %v2003, 0.0
    %vm2036 = vcmp.gt.f32.partialorder %v2004, 0.0
    %vm2037 = vcmp.gt.f32.partialorder %v2005, 0.0
    %vm2038 = vcmp.gt.f32.partialorder %v2006, 0.0
    %vm2039 = vcmp.gt.f32.partialorder %v2007, 0.0
    %vm2040 = vcmp.gt.f32.partialorder %v2008, 0.0
    %vm2041 = vcmp.gt.f32.partialorder %v2009, 0.0
    %vm2042 = vcmp.gt.f32.partialorder %v2010, 0.0
    %vm2043 = vcmp.gt.f32.partialorder %v2011, 0.0
    %vm2044 = vcmp.gt.f32.partialorder %v2012, 0.0
    %vm2045 = vcmp.gt.f32.partialorder %v2013, 0.0
    %vm2046 = vcmp.gt.f32.partialorder %v2014, 0.0
    %vm2047 = vcmp.gt.f32.partialorder %v2015, 0.0
    %vm2048 = vcmp.gt.f32.partialorder %v2016, 0.0
    %vm2049 = vcmp.gt.f32.partialorder %v2017, 0.0
    %vm2050 = vcmp.gt.f32.partialorder %v2018, 0.0
    %vm2051 = vcmp.gt.f32.partialorder %v2019, 0.0
    %vm2052 = vcmp.gt.f32.partialorder %v2020, 0.0
    %vm2053 = vcmp.gt.f32.partialorder %v2021, 0.0
    %vm2054 = vcmp.gt.f32.partialorder %v2022, 0.0
    %vm2055 = vcmp.gt.f32.partialorder %v2023, 0.0
    %vm2056 = vcmp.gt.f32.partialorder %v2024, 0.0
    %vm2057 = vcmp.gt.f32.partialorder %v2025, 0.0
    %vm2058 = vcmp.gt.f32.partialorder %v2026, 0.0
    %vm2059 = vcmp.gt.f32.partialorder %v2027, 0.0
    %vm2060 = vcmp.gt.f32.partialorder %v2028, 0.0
    %vm2061 = vcmp.gt.f32.partialorder %v2029, 0.0
    %vm2062 = vcmp.gt.f32.partialorder %v2030, 0.0
    %vm2063 = vcmp.gt.f32.partialorder %v2031, 0.0
    %vm2064 = vcmp.gt.f32.partialorder %v2032, 0.0
    %vm2065 = vcmp.gt.f32.partialorder %v2033, 0.0
    %v2066 = vmul.f32 %v2002, 0.2
    %v2067 = vmul.f32 %v2003, 0.2
    %v2068 = vmul.f32 %v2004, 0.2
    %v2069 = vmul.f32 %v2005, 0.2
    %v2070 = vmul.f32 %v2006, 0.2
    %v2071 = vmul.f32 %v2007, 0.2
    %v2072 = vmul.f32 %v2008, 0.2
    %v2073 = vmul.f32 %v2009, 0.2
    %v2074 = vmul.f32 %v2010, 0.2
    %v2075 = vmul.f32 %v2011, 0.2
    %v2076 = vmul.f32 %v2012, 0.2
    %v2077 = vmul.f32 %v2013, 0.2
    %v2078 = vmul.f32 %v2014, 0.2
    %v2079 = vmul.f32 %v2015, 0.2
    %v2080 = vmul.f32 %v2016, 0.2
    %v2081 = vmul.f32 %v2017, 0.2
    %v2082 = vmul.f32 %v2018, 0.2
    %v2083 = vmul.f32 %v2019, 0.2
    %v2084 = vmul.f32 %v2020, 0.2
    %v2085 = vmul.f32 %v2021, 0.2
    %v2086 = vmul.f32 %v2022, 0.2
    %v2087 = vmul.f32 %v2023, 0.2
    %v2088 = vmul.f32 %v2024, 0.2
    %v2089 = vmul.f32 %v2025, 0.2
    %v2090 = vmul.f32 %v2026, 0.2
    %v2091 = vmul.f32 %v2027, 0.2
    %v2092 = vmul.f32 %v2028, 0.2
    %v2093 = vmul.f32 %v2029, 0.2
    %v2094 = vmul.f32 %v2030, 0.2
    %v2095 = vmul.f32 %v2031, 0.2
    %v2096 = vmul.f32 %v2032, 0.2
    %v2097 = vmul.f32 %v2033, 0.2
    %v2098 = vsel %vm2034, %v2002, %v2066
    %v2099 = vsel %vm2035, %v2003, %v2067
    %v2100 = vsel %vm2036, %v2004, %v2068
    %v2101 = vsel %vm2037, %v2005, %v2069
    %v2102 = vsel %vm2038, %v2006, %v2070
    %v2103 = vsel %vm2039, %v2007, %v2071
    %v2104 = vsel %vm2040, %v2008, %v2072
    %v2105 = vsel %vm2041, %v2009, %v2073
    %v2106 = vsel %vm2042, %v2010, %v2074
    %v2107 = vsel %vm2043, %v2011, %v2075
    %v2108 = vsel %vm2044, %v2012, %v2076
    %v2109 = vsel %vm2045, %v2013, %v2077
    %v2110 = vsel %vm2046, %v2014, %v2078
    %v2111 = vsel %vm2047, %v2015, %v2079
    %v2112 = vsel %vm2048, %v2016, %v2080
    %v2113 = vsel %vm2049, %v2017, %v2081
    %v2114 = vsel %vm2050, %v2018, %v2082
    %v2115 = vsel %vm2051, %v2019, %v2083
    %v2116 = vsel %vm2052, %v2020, %v2084
    %v2117 = vsel %vm2053, %v2021, %v2085
    %v2118 = vsel %vm2054, %v2022, %v2086
    %v2119 = vsel %vm2055, %v2023, %v2087
    %v2120 = vsel %vm2056, %v2024, %v2088
    %v2121 = vsel %vm2057, %v2025, %v2089
    %v2122 = vsel %vm2058, %v2026, %v2090
    %v2123 = vsel %vm2059, %v2027, %v2091
    %v2124 = vsel %vm2060, %v2028, %v2092
    %v2125 = vsel %vm2061, %v2029, %v2093
    %v2126 = vsel %vm2062, %v2030, %v2094
    %v2127 = vsel %vm2063, %v2031, %v2095
    %v2128 = vsel %vm2064, %v2032, %v2096
    %v2129 = vsel %vm2065, %v2033, %v2097
    %v2130 = vld [vmem:[%s13] sm:$0xff]
    %v2131 = vld [vmem:[%s13 + $0x8] sm:$0xff]
    %v2132 = vld [vmem:[%s13 + $0x10] sm:$0xff]
    %v2133 = vld [vmem:[%s13 + $0x18] sm:$0xff]
    %v2134 = vld [vmem:[%s13 + $0x20] sm:$0xff]
    %v2135 = vld [vmem:[%s13 + $0x28] sm:$0xff]
    %v2136 = vld [vmem:[%s13 + $0x30] sm:$0xff]
    %v2137 = vld [vmem:[%s13 + $0x38] sm:$0xff]
    %v2138 = vld [vmem:[%s13 + $0x40] sm:$0xff]
    %v2139 = vld [vmem:[%s13 + $0x48] sm:$0xff]
    %v2140 = vld [vmem:[%s13 + $0x50] sm:$0xff]
    %v2141 = vld [vmem:[%s13 + $0x58] sm:$0xff]
    %v2143 = vsel %vm331, %v2098, 0
    %v2146 = vsel %vm331, %v2099, 0
    %v2149 = vsel %vm331, %v2100, 0
    %v2152 = vsel %vm331, %v2101, 0
    %v2155 = vsel %vm331, %v2102, 0
    %v2158 = vsel %vm331, %v2103, 0
    %v2161 = vsel %vm331, %v2104, 0
    %v2164 = vsel %vm331, %v2105, 0
    %v2167 = vsel %vm331, %v2106, 0
    %v2170 = vsel %vm331, %v2107, 0
    %v2173 = vsel %vm331, %v2108, 0
    %v2176 = vsel %vm331, %v2109, 0
    %v2179 = vsel %vm331, %v2110, 0
    %v2182 = vsel %vm331, %v2111, 0
    %v2185 = vsel %vm331, %v2112, 0
    %v2188 = vsel %vm331, %v2113, 0
    %v2191 = vsel %vm331, %v2114, 0
    %v2194 = vsel %vm331, %v2115, 0
    %v2197 = vsel %vm331, %v2116, 0
    %v2200 = vsel %vm331, %v2117, 0
    %v2203 = vsel %vm331, %v2118, 0
    %v2206 = vsel %vm331, %v2119, 0
    %v2209 = vsel %vm331, %v2120, 0
    %v2212 = vsel %vm331, %v2121, 0
    %v2215 = vsel %vm331, %v2122, 0
    %v2218 = vsel %vm331, %v2123, 0
    %v2221 = vsel %vm331, %v2124, 0
    %v2224 = vsel %vm331, %v2125, 0
    %v2227 = vsel %vm331, %v2126, 0
    %v2230 = vsel %vm331, %v2127, 0
    %v2233 = vsel %vm331, %v2128, 0
    %v2236 = vsel %vm331, %v2129, 0
    %2238 = vmatpush.msra.mxu0 0.0
    %2239 = vmatpush.msra.mxu0 0.0
    %2240 = vmatpush.msra.mxu0 0.0
    %2241 = vmatpush.msra.mxu0 0.0
    %2242 = vmatpush.msra.mxu0 %v2141
    %2243 = vmatpush.msra.mxu0 %v2140
    %2244 = vmatpush.msra.mxu0 %v2139
    %2245 = vmatpush.msra.mxu0 %v2138
    %2246 = vmatpush.msra.mxu0 %v2137
    %2247 = vmatpush.msra.mxu0 %v2136
    %2248 = vmatpush.msra.mxu0 %v2135
    %2249 = vmatpush.msra.mxu0 %v2134
    %2250 = vmatpush.msra.mxu0 %v2133
    %2251 = vmatpush.msra.mxu0 %v2132
    %2252 = vmatpush.msra.mxu0 %v2131
    %2253 = vmatpush.msra.mxu0 %v2130
    %2254 = vmatmul.f32.gmra.mxu0 %v2143
    %v2255 = vpop.f32.mrf.mxu0
    %v2256 = vadd.f32 0.0, %v2255
    %2257 = vmatmul.f32.gmra.mxu0 %v2146
    %v2258 = vpop.f32.mrf.mxu0
    %v2259 = vadd.f32 0.0, %v2258
    %2260 = vmatmul.f32.gmra.mxu0 %v2149
    %v2261 = vpop.f32.mrf.mxu0
    %v2262 = vadd.f32 0.0, %v2261
    %2263 = vmatmul.f32.gmra.mxu0 %v2152
    %v2264 = vpop.f32.mrf.mxu0
    %v2265 = vadd.f32 0.0, %v2264
    %2266 = vmatmul.f32.gmra.mxu0 %v2155
    %v2267 = vpop.f32.mrf.mxu0
    %v2268 = vadd.f32 0.0, %v2267
    %2269 = vmatmul.f32.gmra.mxu0 %v2158
    %v2270 = vpop.f32.mrf.mxu0
    %v2271 = vadd.f32 0.0, %v2270
    %2272 = vmatmul.f32.gmra.mxu0 %v2161
    %v2273 = vpop.f32.mrf.mxu0
    %v2274 = vadd.f32 0.0, %v2273
    %2275 = vmatmul.f32.gmra.mxu0 %v2164
    %v2276 = vpop.f32.mrf.mxu0
    %v2277 = vadd.f32 0.0, %v2276
    %2278 = vmatmul.f32.gmra.mxu0 %v2167
    %v2279 = vpop.f32.mrf.mxu0
    %v2280 = vadd.f32 0.0, %v2279
    %2281 = vmatmul.f32.gmra.mxu0 %v2170
    %v2282 = vpop.f32.mrf.mxu0
    %v2283 = vadd.f32 0.0, %v2282
    %2284 = vmatmul.f32.gmra.mxu0 %v2173
    %v2285 = vpop.f32.mrf.mxu0
    %v2286 = vadd.f32 0.0, %v2285
    %2287 = vmatmul.f32.gmra.mxu0 %v2176
    %v2288 = vpop.f32.mrf.mxu0
    %v2289 = vadd.f32 0.0, %v2288
    %2290 = vmatmul.f32.gmra.mxu0 %v2179
    %v2291 = vpop.f32.mrf.mxu0
    %v2292 = vadd.f32 0.0, %v2291
    %2293 = vmatmul.f32.gmra.mxu0 %v2182
    %v2294 = vpop.f32.mrf.mxu0
    %v2295 = vadd.f32 0.0, %v2294
    %2296 = vmatmul.f32.gmra.mxu0 %v2185
    %v2297 = vpop.f32.mrf.mxu0
    %v2298 = vadd.f32 0.0, %v2297
    %2299 = vmatmul.f32.gmra.mxu0 %v2188
    %v2300 = vpop.f32.mrf.mxu0
    %v2301 = vadd.f32 0.0, %v2300
    %2302 = vmatmul.f32.gmra.mxu0 %v2191
    %v2303 = vpop.f32.mrf.mxu0
    %v2304 = vadd.f32 0.0, %v2303
    %2305 = vmatmul.f32.gmra.mxu0 %v2194
    %v2306 = vpop.f32.mrf.mxu0
    %v2307 = vadd.f32 0.0, %v2306
    %2308 = vmatmul.f32.gmra.mxu0 %v2197
    %v2309 = vpop.f32.mrf.mxu0
    %v2310 = vadd.f32 0.0, %v2309
    %2311 = vmatmul.f32.gmra.mxu0 %v2200
    %v2312 = vpop.f32.mrf.mxu0
    %v2313 = vadd.f32 0.0, %v2312
    %2314 = vmatmul.f32.gmra.mxu0 %v2203
    %v2315 = vpop.f32.mrf.mxu0
    %v2316 = vadd.f32 0.0, %v2315
    %2317 = vmatmul.f32.gmra.mxu0 %v2206
    %v2318 = vpop.f32.mrf.mxu0
    %v2319 = vadd.f32 0.0, %v2318
    %2320 = vmatmul.f32.gmra.mxu0 %v2209
    %v2321 = vpop.f32.mrf.mxu0
    %v2322 = vadd.f32 0.0, %v2321
    %2323 = vmatmul.f32.gmra.mxu0 %v2212
    %v2324 = vpop.f32.mrf.mxu0
    %v2325 = vadd.f32 0.0, %v2324
    %2326 = vmatmul.f32.gmra.mxu0 %v2215
    %v2327 = vpop.f32.mrf.mxu0
    %v2328 = vadd.f32 0.0, %v2327
    %2329 = vmatmul.f32.gmra.mxu0 %v2218
    %v2330 = vpop.f32.mrf.mxu0
    %v2331 = vadd.f32 0.0, %v2330
    %2332 = vmatmul.f32.gmra.mxu0 %v2221
    %v2333 = vpop.f32.mrf.mxu0
    %v2334 = vadd.f32 0.0, %v2333
    %2335 = vmatmul.f32.gmra.mxu0 %v2224
    %v2336 = vpop.f32.mrf.mxu0
    %v2337 = vadd.f32 0.0, %v2336
    %2338 = vmatmul.f32.gmra.mxu0 %v2227
    %v2339 = vpop.f32.mrf.mxu0
    %v2340 = vadd.f32 0.0, %v2339
    %2341 = vmatmul.f32.gmra.mxu0 %v2230
    %v2342 = vpop.f32.mrf.mxu0
    %v2343 = vadd.f32 0.0, %v2342
    %2344 = vmatmul.f32.gmra.mxu0 %v2233
    %v2345 = vpop.f32.mrf.mxu0
    %v2346 = vadd.f32 0.0, %v2345
    %2347 = vmatmul.f32.gmra.mxu0 %v2236
    %v2348 = vpop.f32.mrf.mxu0
    %v2349 = vadd.f32 0.0, %v2348
    %2350 = vdwg.mxu0
    %v2351 = vadd.f32 %v2256, %v547
    %v2352 = vadd.f32 %v2259, %v553
    %v2353 = vadd.f32 %v2262, %v560
    %v2354 = vadd.f32 %v2265, %v566
    %v2355 = vadd.f32 %v2268, %v573
    %v2356 = vadd.f32 %v2271, %v579
    %v2357 = vadd.f32 %v2274, %v586
    %v2358 = vadd.f32 %v2277, %v592
    %v2359 = vadd.f32 %v2280, %v599
    %v2360 = vadd.f32 %v2283, %v605
    %v2361 = vadd.f32 %v2286, %v612
    %v2362 = vadd.f32 %v2289, %v618
    %v2363 = vadd.f32 %v2292, %v625
    %v2364 = vadd.f32 %v2295, %v631
    %v2365 = vadd.f32 %v2298, %v638
    %v2366 = vadd.f32 %v2301, %v644
    %v2367 = vadd.f32 %v2304, %v651
    %v2368 = vadd.f32 %v2307, %v657
    %v2369 = vadd.f32 %v2310, %v664
    %v2370 = vadd.f32 %v2313, %v670
    %v2371 = vadd.f32 %v2316, %v677
    %v2372 = vadd.f32 %v2319, %v683
    %v2373 = vadd.f32 %v2322, %v690
    %v2374 = vadd.f32 %v2325, %v696
    %v2375 = vadd.f32 %v2328, %v703
    %v2376 = vadd.f32 %v2331, %v709
    %v2377 = vadd.f32 %v2334, %v716
    %v2378 = vadd.f32 %v2337, %v722
    %v2379 = vadd.f32 %v2340, %v729
    %v2380 = vadd.f32 %v2343, %v735
    %v2381 = vadd.f32 %v2346, %v742
    %v2382 = vadd.f32 %v2349, %v748
    %v2383 = vsel %vm781, %v2351, -inf
    %v2384 = vsel %vm781, %v2352, -inf
    %v2385 = vmax.f32 %v2383, %v2384
    %v2386 = vrot.slane %v2385, 4
    %v2387 = vmax.f32 %v2385, %v2386
    %v2388 = vrot.slane %v2387, 2
    %v2389 = vmax.f32 %v2387, %v2388
    %v2390 = vrot.slane %v2389, 1
    %v2391 = vmax.f32 %v2389, %v2390
    %v2392 = vsel %vm781, %v2353, -inf
    %v2393 = vsel %vm781, %v2354, -inf
    %v2394 = vmax.f32 %v2392, %v2393
    %v2395 = vrot.slane %v2394, 4
    %v2396 = vmax.f32 %v2394, %v2395
    %v2397 = vrot.slane %v2396, 2
    %v2398 = vmax.f32 %v2396, %v2397
    %v2399 = vrot.slane %v2398, 1
    %v2400 = vmax.f32 %v2398, %v2399
    %v2401 = vsel %vm781, %v2355, -inf
    %v2402 = vsel %vm781, %v2356, -inf
    %v2403 = vmax.f32 %v2401, %v2402
    %v2404 = vrot.slane %v2403, 4
    %v2405 = vmax.f32 %v2403, %v2404
    %v2406 = vrot.slane %v2405, 2
    %v2407 = vmax.f32 %v2405, %v2406
    %v2408 = vrot.slane %v2407, 1
    %v2409 = vmax.f32 %v2407, %v2408
    %v2410 = vsel %vm781, %v2357, -inf
    %v2411 = vsel %vm781, %v2358, -inf
    %v2412 = vmax.f32 %v2410, %v2411
    %v2413 = vrot.slane %v2412, 4
    %v2414 = vmax.f32 %v2412, %v2413
    %v2415 = vrot.slane %v2414, 2
    %v2416 = vmax.f32 %v2414, %v2415
    %v2417 = vrot.slane %v2416, 1
    %v2418 = vmax.f32 %v2416, %v2417
    %v2419 = vsel %vm781, %v2359, -inf
    %v2420 = vsel %vm781, %v2360, -inf
    %v2421 = vmax.f32 %v2419, %v2420
    %v2422 = vrot.slane %v2421, 4
    %v2423 = vmax.f32 %v2421, %v2422
    %v2424 = vrot.slane %v2423, 2
    %v2425 = vmax.f32 %v2423, %v2424
    %v2426 = vrot.slane %v2425, 1
    %v2427 = vmax.f32 %v2425, %v2426
    %v2428 = vsel %vm781, %v2361, -inf
    %v2429 = vsel %vm781, %v2362, -inf
    %v2430 = vmax.f32 %v2428, %v2429
    %v2431 = vrot.slane %v2430, 4
    %v2432 = vmax.f32 %v2430, %v2431
    %v2433 = vrot.slane %v2432, 2
    %v2434 = vmax.f32 %v2432, %v2433
    %v2435 = vrot.slane %v2434, 1
    %v2436 = vmax.f32 %v2434, %v2435
    %v2437 = vsel %vm781, %v2363, -inf
    %v2438 = vsel %vm781, %v2364, -inf
    %v2439 = vmax.f32 %v2437, %v2438
    %v2440 = vrot.slane %v2439, 4
    %v2441 = vmax.f32 %v2439, %v2440
    %v2442 = vrot.slane %v2441, 2
    %v2443 = vmax.f32 %v2441, %v2442
    %v2444 = vrot.slane %v2443, 1
    %v2445 = vmax.f32 %v2443, %v2444
    %v2446 = vsel %vm781, %v2365, -inf
    %v2447 = vsel %vm781, %v2366, -inf
    %v2448 = vmax.f32 %v2446, %v2447
    %v2449 = vrot.slane %v2448, 4
    %v2450 = vmax.f32 %v2448, %v2449
    %v2451 = vrot.slane %v2450, 2
    %v2452 = vmax.f32 %v2450, %v2451
    %v2453 = vrot.slane %v2452, 1
    %v2454 = vmax.f32 %v2452, %v2453
    %v2455 = vsel %vm781, %v2367, -inf
    %v2456 = vsel %vm781, %v2368, -inf
    %v2457 = vmax.f32 %v2455, %v2456
    %v2458 = vrot.slane %v2457, 4
    %v2459 = vmax.f32 %v2457, %v2458
    %v2460 = vrot.slane %v2459, 2
    %v2461 = vmax.f32 %v2459, %v2460
    %v2462 = vrot.slane %v2461, 1
    %v2463 = vmax.f32 %v2461, %v2462
    %v2464 = vsel %vm781, %v2369, -inf
    %v2465 = vsel %vm781, %v2370, -inf
    %v2466 = vmax.f32 %v2464, %v2465
    %v2467 = vrot.slane %v2466, 4
    %v2468 = vmax.f32 %v2466, %v2467
    %v2469 = vrot.slane %v2468, 2
    %v2470 = vmax.f32 %v2468, %v2469
    %v2471 = vrot.slane %v2470, 1
    %v2472 = vmax.f32 %v2470, %v2471
    %v2473 = vsel %vm781, %v2371, -inf
    %v2474 = vsel %vm781, %v2372, -inf
    %v2475 = vmax.f32 %v2473, %v2474
    %v2476 = vrot.slane %v2475, 4
    %v2477 = vmax.f32 %v2475, %v2476
    %v2478 = vrot.slane %v2477, 2
    %v2479 = vmax.f32 %v2477, %v2478
    %v2480 = vrot.slane %v2479, 1
    %v2481 = vmax.f32 %v2479, %v2480
    %v2482 = vsel %vm781, %v2373, -inf
    %v2483 = vsel %vm781, %v2374, -inf
    %v2484 = vmax.f32 %v2482, %v2483
    %v2485 = vrot.slane %v2484, 4
    %v2486 = vmax.f32 %v2484, %v2485
    %v2487 = vrot.slane %v2486, 2
    %v2488 = vmax.f32 %v2486, %v2487
    %v2489 = vrot.slane %v2488, 1
    %v2490 = vmax.f32 %v2488, %v2489
    %v2491 = vsel %vm781, %v2375, -inf
    %v2492 = vsel %vm781, %v2376, -inf
    %v2493 = vmax.f32 %v2491, %v2492
    %v2494 = vrot.slane %v2493, 4
    %v2495 = vmax.f32 %v2493, %v2494
    %v2496 = vrot.slane %v2495, 2
    %v2497 = vmax.f32 %v2495, %v2496
    %v2498 = vrot.slane %v2497, 1
    %v2499 = vmax.f32 %v2497, %v2498
    %v2500 = vsel %vm781, %v2377, -inf
    %v2501 = vsel %vm781, %v2378, -inf
    %v2502 = vmax.f32 %v2500, %v2501
    %v2503 = vrot.slane %v2502, 4
    %v2504 = vmax.f32 %v2502, %v2503
    %v2505 = vrot.slane %v2504, 2
    %v2506 = vmax.f32 %v2504, %v2505
    %v2507 = vrot.slane %v2506, 1
    %v2508 = vmax.f32 %v2506, %v2507
    %v2509 = vsel %vm781, %v2379, -inf
    %v2510 = vsel %vm781, %v2380, -inf
    %v2511 = vmax.f32 %v2509, %v2510
    %v2512 = vrot.slane %v2511, 4
    %v2513 = vmax.f32 %v2511, %v2512
    %v2514 = vrot.slane %v2513, 2
    %v2515 = vmax.f32 %v2513, %v2514
    %v2516 = vrot.slane %v2515, 1
    %v2517 = vmax.f32 %v2515, %v2516
    %v2518 = vsel %vm781, %v2381, -inf
    %v2519 = vsel %vm781, %v2382, -inf
    %v2520 = vmax.f32 %v2518, %v2519
    %v2521 = vrot.slane %v2520, 4
    %v2522 = vmax.f32 %v2520, %v2521
    %v2523 = vrot.slane %v2522, 2
    %v2524 = vmax.f32 %v2522, %v2523
    %v2525 = vrot.slane %v2524, 1
    %v2526 = vmax.f32 %v2524, %v2525
    %v2527 = vsub.f32 %v2351, %v2391
    %v2528 = vsub.f32 %v2352, %v2391
    %v2529 = vsub.f32 %v2353, %v2400
    %v2530 = vsub.f32 %v2354, %v2400
    %v2531 = vsub.f32 %v2355, %v2409
    %v2532 = vsub.f32 %v2356, %v2409
    %v2533 = vsub.f32 %v2357, %v2418
    %v2534 = vsub.f32 %v2358, %v2418
    %v2535 = vsub.f32 %v2359, %v2427
    %v2536 = vsub.f32 %v2360, %v2427
    %v2537 = vsub.f32 %v2361, %v2436
    %v2538 = vsub.f32 %v2362, %v2436
    %v2539 = vsub.f32 %v2363, %v2445
    %v2540 = vsub.f32 %v2364, %v2445
    %v2541 = vsub.f32 %v2365, %v2454
    %v2542 = vsub.f32 %v2366, %v2454
    %v2543 = vsub.f32 %v2367, %v2463
    %v2544 = vsub.f32 %v2368, %v2463
    %v2545 = vsub.f32 %v2369, %v2472
    %v2546 = vsub.f32 %v2370, %v2472
    %v2547 = vsub.f32 %v2371, %v2481
    %v2548 = vsub.f32 %v2372, %v2481
    %v2549 = vsub.f32 %v2373, %v2490
    %v2550 = vsub.f32 %v2374, %v2490
    %v2551 = vsub.f32 %v2375, %v2499
    %v2552 = vsub.f32 %v2376, %v2499
    %v2553 = vsub.f32 %v2377, %v2508
    %v2554 = vsub.f32 %v2378, %v2508
    %v2555 = vsub.f32 %v2379, %v2517
    %v2556 = vsub.f32 %v2380, %v2517
    %v2557 = vsub.f32 %v2381, %v2526
    %v2558 = vsub.f32 %v2382, %v2526
    %v2559 = vmul.f32 %v2527, 1.442695
    %v2560 = vpow.pop %v2559
    %v2561 = vmul.f32 %v2528, 1.442695
    %v2562 = vpow.pop %v2561
    %v2563 = vmul.f32 %v2529, 1.442695
    %v2564 = vpow.pop %v2563
    %v2565 = vmul.f32 %v2530, 1.442695
    %v2566 = vpow.pop %v2565
    %v2567 = vmul.f32 %v2531, 1.442695
    %v2568 = vpow.pop %v2567
    %v2569 = vmul.f32 %v2532, 1.442695
    %v2570 = vpow.pop %v2569
    %v2571 = vmul.f32 %v2533, 1.442695
    %v2572 = vpow.pop %v2571
    %v2573 = vmul.f32 %v2534, 1.442695
    %v2574 = vpow.pop %v2573
    %v2575 = vmul.f32 %v2535, 1.442695
    %v2576 = vpow.pop %v2575
    %v2577 = vmul.f32 %v2536, 1.442695
    %v2578 = vpow.pop %v2577
    %v2579 = vmul.f32 %v2537, 1.442695
    %v2580 = vpow.pop %v2579
    %v2581 = vmul.f32 %v2538, 1.442695
    %v2582 = vpow.pop %v2581
    %v2583 = vmul.f32 %v2539, 1.442695
    %v2584 = vpow.pop %v2583
    %v2585 = vmul.f32 %v2540, 1.442695
    %v2586 = vpow.pop %v2585
    %v2587 = vmul.f32 %v2541, 1.442695
    %v2588 = vpow.pop %v2587
    %v2589 = vmul.f32 %v2542, 1.442695
    %v2590 = vpow.pop %v2589
    %v2591 = vmul.f32 %v2543, 1.442695
    %v2592 = vpow.pop %v2591
    %v2593 = vmul.f32 %v2544, 1.442695
    %v2594 = vpow.pop %v2593
    %v2595 = vmul.f32 %v2545, 1.442695
    %v2596 = vpow.pop %v2595
    %v2597 = vmul.f32 %v2546, 1.442695
    %v2598 = vpow.pop %v2597
    %v2599 = vmul.f32 %v2547, 1.442695
    %v2600 = vpow.pop %v2599
    %v2601 = vmul.f32 %v2548, 1.442695
    %v2602 = vpow.pop %v2601
    %v2603 = vmul.f32 %v2549, 1.442695
    %v2604 = vpow.pop %v2603
    %v2605 = vmul.f32 %v2550, 1.442695
    %v2606 = vpow.pop %v2605
    %v2607 = vmul.f32 %v2551, 1.442695
    %v2608 = vpow.pop %v2607
    %v2609 = vmul.f32 %v2552, 1.442695
    %v2610 = vpow.pop %v2609
    %v2611 = vmul.f32 %v2553, 1.442695
    %v2612 = vpow.pop %v2611
    %v2613 = vmul.f32 %v2554, 1.442695
    %v2614 = vpow.pop %v2613
    %v2615 = vmul.f32 %v2555, 1.442695
    %v2616 = vpow.pop %v2615
    %v2617 = vmul.f32 %v2556, 1.442695
    %v2618 = vpow.pop %v2617
    %v2619 = vmul.f32 %v2557, 1.442695
    %v2620 = vpow.pop %v2619
    %v2621 = vmul.f32 %v2558, 1.442695
    %v2622 = vpow.pop %v2621
    %v2623 = vsel %vm781, %v2560, 0.0
    %v2624 = vsel %vm781, %v2562, 0.0
    %v2625 = vadd.f32 %v2623, %v2624
    %v2626 = vrot.slane %v2625, 4
    %v2627 = vadd.f32 %v2625, %v2626
    %v2628 = vrot.slane %v2627, 2
    %v2629 = vadd.f32 %v2627, %v2628
    %v2630 = vrot.slane %v2629, 1
    %v2631 = vadd.f32 %v2629, %v2630
    %v2632 = vsel %vm781, %v2564, 0.0
    %v2633 = vsel %vm781, %v2566, 0.0
    %v2634 = vadd.f32 %v2632, %v2633
    %v2635 = vrot.slane %v2634, 4
    %v2636 = vadd.f32 %v2634, %v2635
    %v2637 = vrot.slane %v2636, 2
    %v2638 = vadd.f32 %v2636, %v2637
    %v2639 = vrot.slane %v2638, 1
    %v2640 = vadd.f32 %v2638, %v2639
    %v2641 = vsel %vm781, %v2568, 0.0
    %v2642 = vsel %vm781, %v2570, 0.0
    %v2643 = vadd.f32 %v2641, %v2642
    %v2644 = vrot.slane %v2643, 4
    %v2645 = vadd.f32 %v2643, %v2644
    %v2646 = vrot.slane %v2645, 2
    %v2647 = vadd.f32 %v2645, %v2646
    %v2648 = vrot.slane %v2647, 1
    %v2649 = vadd.f32 %v2647, %v2648
    %v2650 = vsel %vm781, %v2572, 0.0
    %v2651 = vsel %vm781, %v2574, 0.0
    %v2652 = vadd.f32 %v2650, %v2651
    %v2653 = vrot.slane %v2652, 4
    %v2654 = vadd.f32 %v2652, %v2653
    %v2655 = vrot.slane %v2654, 2
    %v2656 = vadd.f32 %v2654, %v2655
    %v2657 = vrot.slane %v2656, 1
    %v2658 = vadd.f32 %v2656, %v2657
    %v2659 = vsel %vm781, %v2576, 0.0
    %v2660 = vsel %vm781, %v2578, 0.0
    %v2661 = vadd.f32 %v2659, %v2660
    %v2662 = vrot.slane %v2661, 4
    %v2663 = vadd.f32 %v2661, %v2662
    %v2664 = vrot.slane %v2663, 2
    %v2665 = vadd.f32 %v2663, %v2664
    %v2666 = vrot.slane %v2665, 1
    %v2667 = vadd.f32 %v2665, %v2666
    %v2668 = vsel %vm781, %v2580, 0.0
    %v2669 = vsel %vm781, %v2582, 0.0
    %v2670 = vadd.f32 %v2668, %v2669
    %v2671 = vrot.slane %v2670, 4
    %v2672 = vadd.f32 %v2670, %v2671
    %v2673 = vrot.slane %v2672, 2
    %v2674 = vadd.f32 %v2672, %v2673
    %v2675 = vrot.slane %v2674, 1
    %v2676 = vadd.f32 %v2674, %v2675
    %v2677 = vsel %vm781, %v2584, 0.0
    %v2678 = vsel %vm781, %v2586, 0.0
    %v2679 = vadd.f32 %v2677, %v2678
    %v2680 = vrot.slane %v2679, 4
    %v2681 = vadd.f32 %v2679, %v2680
    %v2682 = vrot.slane %v2681, 2
    %v2683 = vadd.f32 %v2681, %v2682
    %v2684 = vrot.slane %v2683, 1
    %v2685 = vadd.f32 %v2683, %v2684
    %v2686 = vsel %vm781, %v2588, 0.0
    %v2687 = vsel %vm781, %v2590, 0.0
    %v2688 = vadd.f32 %v2686, %v2687
    %v2689 = vrot.slane %v2688, 4
    %v2690 = vadd.f32 %v2688, %v2689
    %v2691 = vrot.slane %v2690, 2
    %v2692 = vadd.f32 %v2690, %v2691
    %v2693 = vrot.slane %v2692, 1
    %v2694 = vadd.f32 %v2692, %v2693
    %v2695 = vsel %vm781, %v2592, 0.0
    %v2696 = vsel %vm781, %v2594, 0.0
    %v2697 = vadd.f32 %v2695, %v2696
    %v2698 = vrot.slane %v2697, 4
    %v2699 = vadd.f32 %v2697, %v2698
    %v2700 = vrot.slane %v2699, 2
    %v2701 = vadd.f32 %v2699, %v2700
    %v2702 = vrot.slane %v2701, 1
    %v2703 = vadd.f32 %v2701, %v2702
    %v2704 = vsel %vm781, %v2596, 0.0
    %v2705 = vsel %vm781, %v2598, 0.0
    %v2706 = vadd.f32 %v2704, %v2705
    %v2707 = vrot.slane %v2706, 4
    %v2708 = vadd.f32 %v2706, %v2707
    %v2709 = vrot.slane %v2708, 2
    %v2710 = vadd.f32 %v2708, %v2709
    %v2711 = vrot.slane %v2710, 1
    %v2712 = vadd.f32 %v2710, %v2711
    %v2713 = vsel %vm781, %v2600, 0.0
    %v2714 = vsel %vm781, %v2602, 0.0
    %v2715 = vadd.f32 %v2713, %v2714
    %v2716 = vrot.slane %v2715, 4
    %v2717 = vadd.f32 %v2715, %v2716
    %v2718 = vrot.slane %v2717, 2
    %v2719 = vadd.f32 %v2717, %v2718
    %v2720 = vrot.slane %v2719, 1
    %v2721 = vadd.f32 %v2719, %v2720
    %v2722 = vsel %vm781, %v2604, 0.0
    %v2723 = vsel %vm781, %v2606, 0.0
    %v2724 = vadd.f32 %v2722, %v2723
    %v2725 = vrot.slane %v2724, 4
    %v2726 = vadd.f32 %v2724, %v2725
    %v2727 = vrot.slane %v2726, 2
    %v2728 = vadd.f32 %v2726, %v2727
    %v2729 = vrot.slane %v2728, 1
    %v2730 = vadd.f32 %v2728, %v2729
    %v2731 = vsel %vm781, %v2608, 0.0
    %v2732 = vsel %vm781, %v2610, 0.0
    %v2733 = vadd.f32 %v2731, %v2732
    %v2734 = vrot.slane %v2733, 4
    %v2735 = vadd.f32 %v2733, %v2734
    %v2736 = vrot.slane %v2735, 2
    %v2737 = vadd.f32 %v2735, %v2736
    %v2738 = vrot.slane %v2737, 1
    %v2739 = vadd.f32 %v2737, %v2738
    %v2740 = vsel %vm781, %v2612, 0.0
    %v2741 = vsel %vm781, %v2614, 0.0
    %v2742 = vadd.f32 %v2740, %v2741
    %v2743 = vrot.slane %v2742, 4
    %v2744 = vadd.f32 %v2742, %v2743
    %v2745 = vrot.slane %v2744, 2
    %v2746 = vadd.f32 %v2744, %v2745
    %v2747 = vrot.slane %v2746, 1
    %v2748 = vadd.f32 %v2746, %v2747
    %v2749 = vsel %vm781, %v2616, 0.0
    %v2750 = vsel %vm781, %v2618, 0.0
    %v2751 = vadd.f32 %v2749, %v2750
    %v2752 = vrot.slane %v2751, 4
    %v2753 = vadd.f32 %v2751, %v2752
    %v2754 = vrot.slane %v2753, 2
    %v2755 = vadd.f32 %v2753, %v2754
    %v2756 = vrot.slane %v2755, 1
    %v2757 = vadd.f32 %v2755, %v2756
    %v2758 = vsel %vm781, %v2620, 0.0
    %v2759 = vsel %vm781, %v2622, 0.0
    %v2760 = vadd.f32 %v2758, %v2759
    %v2761 = vrot.slane %v2760, 4
    %v2762 = vadd.f32 %v2760, %v2761
    %v2763 = vrot.slane %v2762, 2
    %v2764 = vadd.f32 %v2762, %v2763
    %v2765 = vrot.slane %v2764, 1
    %v2766 = vadd.f32 %v2764, %v2765
    %v2767 = vrcp.pop %v2631
    %v2768 = vrcp.pop %v2640
    %v2769 = vrcp.pop %v2649
    %v2770 = vrcp.pop %v2658
    %v2771 = vrcp.pop %v2667
    %v2772 = vrcp.pop %v2676
    %v2773 = vrcp.pop %v2685
    %v2774 = vrcp.pop %v2694
    %v2775 = vrcp.pop %v2703
    %v2776 = vrcp.pop %v2712
    %v2777 = vrcp.pop %v2721
    %v2778 = vrcp.pop %v2730
    %v2779 = vrcp.pop %v2739
    %v2780 = vrcp.pop %v2748
    %v2781 = vrcp.pop %v2757
    %v2782 = vrcp.pop %v2766
    %v2783 = vmul.f32 %v2560, %v2767
    %v2784 = vmul.f32 %v2562, %v2767
    %v2785 = vmul.f32 %v2564, %v2768
    %v2786 = vmul.f32 %v2566, %v2768
    %v2787 = vmul.f32 %v2568, %v2769
    %v2788 = vmul.f32 %v2570, %v2769
    %v2789 = vmul.f32 %v2572, %v2770
    %v2790 = vmul.f32 %v2574, %v2770
    %v2791 = vmul.f32 %v2576, %v2771
    %v2792 = vmul.f32 %v2578, %v2771
    %v2793 = vmul.f32 %v2580, %v2772
    %v2794 = vmul.f32 %v2582, %v2772
    %v2795 = vmul.f32 %v2584, %v2773
    %v2796 = vmul.f32 %v2586, %v2773
    %v2797 = vmul.f32 %v2588, %v2774
    %v2798 = vmul.f32 %v2590, %v2774
    %v2799 = vmul.f32 %v2592, %v2775
    %v2800 = vmul.f32 %v2594, %v2775
    %v2801 = vmul.f32 %v2596, %v2776
    %v2802 = vmul.f32 %v2598, %v2776
    %v2803 = vmul.f32 %v2600, %v2777
    %v2804 = vmul.f32 %v2602, %v2777
    %v2805 = vmul.f32 %v2604, %v2778
    %v2806 = vmul.f32 %v2606, %v2778
    %v2807 = vmul.f32 %v2608, %v2779
    %v2808 = vmul.f32 %v2610, %v2779
    %v2809 = vmul.f32 %v2612, %v2780
    %v2810 = vmul.f32 %v2614, %v2780
    %v2811 = vmul.f32 %v2616, %v2781
    %v2812 = vmul.f32 %v2618, %v2781
    %v2813 = vmul.f32 %v2620, %v2782
    %v2814 = vmul.f32 %v2622, %v2782
    %v2815 = vld [vmem:[%s14] sm:$0x1]
    %v2817 = vperm.slane %v2815, 0
    %2851 = vset.pattern.permute.xlu0 0
    %2852 = vperm.xlu0 %2851, %v2783
    %v2853 = vpop.permute.xlu0 %2852
    %2854 = vset.pattern.permute.xlu0 0
    %2855 = vperm.xlu0 %2854, %v2784
    %v2856 = vpop.permute.xlu0 %2855
    %2857 = vset.pattern.permute.xlu0 0
    %2858 = vperm.xlu0 %2857, %v2785
    %v2859 = vpop.permute.xlu0 %2858
    %2860 = vset.pattern.permute.xlu0 0
    %2861 = vperm.xlu0 %2860, %v2786
    %v2862 = vpop.permute.xlu0 %2861
    %2863 = vset.pattern.permute.xlu0 0
    %2864 = vperm.xlu0 %2863, %v2787
    %v2865 = vpop.permute.xlu0 %2864
    %2866 = vset.pattern.permute.xlu0 0
    %2867 = vperm.xlu0 %2866, %v2788
    %v2868 = vpop.permute.xlu0 %2867
    %2869 = vset.pattern.permute.xlu0 0
    %2870 = vperm.xlu0 %2869, %v2789
    %v2871 = vpop.permute.xlu0 %2870
    %2872 = vset.pattern.permute.xlu0 0
    %2873 = vperm.xlu0 %2872, %v2790
    %v2874 = vpop.permute.xlu0 %2873
    %2875 = vset.pattern.permute.xlu0 0
    %2876 = vperm.xlu0 %2875, %v2791
    %v2877 = vpop.permute.xlu0 %2876
    %2878 = vset.pattern.permute.xlu0 0
    %2879 = vperm.xlu0 %2878, %v2792
    %v2880 = vpop.permute.xlu0 %2879
    %2881 = vset.pattern.permute.xlu0 0
    %2882 = vperm.xlu0 %2881, %v2793
    %v2883 = vpop.permute.xlu0 %2882
    %2884 = vset.pattern.permute.xlu0 0
    %2885 = vperm.xlu0 %2884, %v2794
    %v2886 = vpop.permute.xlu0 %2885
    %2887 = vset.pattern.permute.xlu0 0
    %2888 = vperm.xlu0 %2887, %v2795
    %v2889 = vpop.permute.xlu0 %2888
    %2890 = vset.pattern.permute.xlu0 0
    %2891 = vperm.xlu0 %2890, %v2796
    %v2892 = vpop.permute.xlu0 %2891
    %2893 = vset.pattern.permute.xlu0 0
    %2894 = vperm.xlu0 %2893, %v2797
    %v2895 = vpop.permute.xlu0 %2894
    %2896 = vset.pattern.permute.xlu0 0
    %2897 = vperm.xlu0 %2896, %v2798
    %v2898 = vpop.permute.xlu0 %2897
    %2899 = vset.pattern.permute.xlu0 0
    %2900 = vperm.xlu0 %2899, %v2799
    %v2901 = vpop.permute.xlu0 %2900
    %2902 = vset.pattern.permute.xlu0 0
    %2903 = vperm.xlu0 %2902, %v2800
    %v2904 = vpop.permute.xlu0 %2903
    %2905 = vset.pattern.permute.xlu0 0
    %2906 = vperm.xlu0 %2905, %v2801
    %v2907 = vpop.permute.xlu0 %2906
    %2908 = vset.pattern.permute.xlu0 0
    %2909 = vperm.xlu0 %2908, %v2802
    %v2910 = vpop.permute.xlu0 %2909
    %2911 = vset.pattern.permute.xlu0 0
    %2912 = vperm.xlu0 %2911, %v2803
    %v2913 = vpop.permute.xlu0 %2912
    %2914 = vset.pattern.permute.xlu0 0
    %2915 = vperm.xlu0 %2914, %v2804
    %v2916 = vpop.permute.xlu0 %2915
    %2917 = vset.pattern.permute.xlu0 0
    %2918 = vperm.xlu0 %2917, %v2805
    %v2919 = vpop.permute.xlu0 %2918
    %2920 = vset.pattern.permute.xlu0 0
    %2921 = vperm.xlu0 %2920, %v2806
    %v2922 = vpop.permute.xlu0 %2921
    %2923 = vset.pattern.permute.xlu0 0
    %2924 = vperm.xlu0 %2923, %v2807
    %v2925 = vpop.permute.xlu0 %2924
    %2926 = vset.pattern.permute.xlu0 0
    %2927 = vperm.xlu0 %2926, %v2808
    %v2928 = vpop.permute.xlu0 %2927
    %2929 = vset.pattern.permute.xlu0 0
    %2930 = vperm.xlu0 %2929, %v2809
    %v2931 = vpop.permute.xlu0 %2930
    %2932 = vset.pattern.permute.xlu0 0
    %2933 = vperm.xlu0 %2932, %v2810
    %v2934 = vpop.permute.xlu0 %2933
    %2935 = vset.pattern.permute.xlu0 0
    %2936 = vperm.xlu0 %2935, %v2811
    %v2937 = vpop.permute.xlu0 %2936
    %2938 = vset.pattern.permute.xlu0 0
    %2939 = vperm.xlu0 %2938, %v2812
    %v2940 = vpop.permute.xlu0 %2939
    %2941 = vset.pattern.permute.xlu0 0
    %2942 = vperm.xlu0 %2941, %v2813
    %v2943 = vpop.permute.xlu0 %2942
    %2944 = vset.pattern.permute.xlu0 0
    %2945 = vperm.xlu0 %2944, %v2814
    %v2946 = vpop.permute.xlu0 %2945
    %v2947 = vperm.slane %v2853, %v1347
    %v2948 = vperm.slane %v2856, %v1349
    %v2949 = vsel %vm1351, %v2948, %v2947
    %v2950 = vperm.slane %v2859, %v1347
    %v2951 = vperm.slane %v2862, %v1349
    %v2952 = vsel %vm1351, %v2951, %v2950
    %v2953 = vperm.slane %v2865, %v1347
    %v2954 = vperm.slane %v2868, %v1349
    %v2955 = vsel %vm1351, %v2954, %v2953
    %v2956 = vperm.slane %v2871, %v1347
    %v2957 = vperm.slane %v2874, %v1349
    %v2958 = vsel %vm1351, %v2957, %v2956
    %v2959 = vperm.slane %v2877, %v1347
    %v2960 = vperm.slane %v2880, %v1349
    %v2961 = vsel %vm1351, %v2960, %v2959
    %v2962 = vperm.slane %v2883, %v1347
    %v2963 = vperm.slane %v2886, %v1349
    %v2964 = vsel %vm1351, %v2963, %v2962
    %v2965 = vperm.slane %v2889, %v1347
    %v2966 = vperm.slane %v2892, %v1349
    %v2967 = vsel %vm1351, %v2966, %v2965
    %v2968 = vperm.slane %v2895, %v1347
    %v2969 = vperm.slane %v2898, %v1349
    %v2970 = vsel %vm1351, %v2969, %v2968
    %v2971 = vperm.slane %v2901, %v1347
    %v2972 = vperm.slane %v2904, %v1349
    %v2973 = vsel %vm1351, %v2972, %v2971
    %v2974 = vperm.slane %v2907, %v1347
    %v2975 = vperm.slane %v2910, %v1349
    %v2976 = vsel %vm1351, %v2975, %v2974
    %v2977 = vperm.slane %v2913, %v1347
    %v2978 = vperm.slane %v2916, %v1349
    %v2979 = vsel %vm1351, %v2978, %v2977
    %v2980 = vperm.slane %v2919, %v1347
    %v2981 = vperm.slane %v2922, %v1349
    %v2982 = vsel %vm1351, %v2981, %v2980
    %v2983 = vperm.slane %v2925, %v1347
    %v2984 = vperm.slane %v2928, %v1349
    %v2985 = vsel %vm1351, %v2984, %v2983
    %v2986 = vperm.slane %v2931, %v1347
    %v2987 = vperm.slane %v2934, %v1349
    %v2988 = vsel %vm1351, %v2987, %v2986
    %v2989 = vperm.slane %v2937, %v1347
    %v2990 = vperm.slane %v2940, %v1349
    %v2991 = vsel %vm1351, %v2990, %v2989
    %v2992 = vperm.slane %v2943, %v1347
    %v2993 = vperm.slane %v2946, %v1349
    %v2994 = vsel %vm1351, %v2993, %v2992
    %v2995 = vsel %vm1398, %v2952, %v2949
    %v2996 = vsel %vm1400, %v2955, %v2995
    %v2997 = vsel %vm1402, %v2958, %v2996
    %v2998 = vsel %vm1404, %v2961, %v2997
    %v2999 = vsel %vm1406, %v2964, %v2998
    %v3000 = vsel %vm1408, %v2967, %v2999
    %v3001 = vsel %vm1410, %v2970, %v3000
    %v3002 = vsel %vm1398, %v2976, %v2973
    %v3003 = vsel %vm1400, %v2979, %v3002
    %v3004 = vsel %vm1402, %v2982, %v3003
    %v3005 = vsel %vm1404, %v2985, %v3004
    %v3006 = vsel %vm1406, %v2988, %v3005
    %v3007 = vsel %vm1408, %v2991, %v3006
    %v3008 = vsel %vm1410, %v2994, %v3007
    %v3009 = vsel %vm1419, %v3001, 0
    %v3011 = vsel %vm1419, %v3008, 0
    %3013 = vmatpush.msra.mxu0 0.0
    %3014 = vmatpush.msra.mxu0 0.0
    %3015 = vmatpush.msra.mxu0 0.0
    %3016 = vmatpush.msra.mxu0 0.0
    %3017 = vmatpush.msra.mxu0 0.0
    %3018 = vmatpush.msra.mxu0 0.0
    %3019 = vmatpush.msra.mxu0 0.0
    %3020 = vmatpush.msra.mxu0 0.0
    %3021 = vmatpush.msra.mxu0 0.0
    %3022 = vmatpush.msra.mxu0 0.0
    %3023 = vmatpush.msra.mxu0 0.0
    %3024 = vmatpush.msra.mxu0 0.0
    %3025 = vmatpush.msra.mxu0 0.0
    %3026 = vmatpush.msra.mxu0 0.0
    %3027 = vmatpush.msra.mxu0 %v1913
    %3028 = vmatpush.msra.mxu0 %v1910
    %3029 = vmatmul.f32.gmra.mxu0 %v3009
    %v3030 = vpop.f32.mrf.mxu0
    %v3031 = vadd.f32 %v2817, %v3030
    %3032 = vmatmul.f32.gmra.mxu0 %v3011
    %v3033 = vpop.f32.mrf.mxu0
    %v3034 = vadd.f32 %v2817, %v3033
    %3035 = vdwg.mxu0
    %v3036 = vtanh.pop %v3031
    %v3037 = vtanh.pop %v3034
    %3040 = vrot.lane.b32.xlu0 %v3036, 96
    %v3041 = vpop.permute.xlu0 %3040
    %3042 = vrot.lane.b32.xlu0 %v3037, 96
    %v3043 = vpop.permute.xlu0 %3042
    %vm3046 = vcmask 1048320
    %3047 = vst.msk [vmem:[#allocation2] sm:$0xff] %vm3046, %v3041
    %3048 = vst.msk [vmem:[#allocation2 + $0x10] sm:$0xff] %vm3046, %v3043
    %3049 = vset.pattern.permute.xlu0 1
    %3050 = vperm.xlu0 %3049, %v2783
    %v3051 = vpop.permute.xlu0 %3050
    %3052 = vset.pattern.permute.xlu0 1
    %3053 = vperm.xlu0 %3052, %v2784
    %v3054 = vpop.permute.xlu0 %3053
    %3055 = vset.pattern.permute.xlu0 1
    %3056 = vperm.xlu0 %3055, %v2785
    %v3057 = vpop.permute.xlu0 %3056
    %3058 = vset.pattern.permute.xlu0 1
    %3059 = vperm.xlu0 %3058, %v2786
    %v3060 = vpop.permute.xlu0 %3059
    %3061 = vset.pattern.permute.xlu0 1
    %3062 = vperm.xlu0 %3061, %v2787
    %v3063 = vpop.permute.xlu0 %3062
    %3064 = vset.pattern.permute.xlu0 1
    %3065 = vperm.xlu0 %3064, %v2788
    %v3066 = vpop.permute.xlu0 %3065
    %3067 = vset.pattern.permute.xlu0 1
    %3068 = vperm.xlu0 %3067, %v2789
    %v3069 = vpop.permute.xlu0 %3068
    %3070 = vset.pattern.permute.xlu0 1
    %3071 = vperm.xlu0 %3070, %v2790
    %v3072 = vpop.permute.xlu0 %3071
    %3073 = vset.pattern.permute.xlu0 1
    %3074 = vperm.xlu0 %3073, %v2791
    %v3075 = vpop.permute.xlu0 %3074
    %3076 = vset.pattern.permute.xlu0 1
    %3077 = vperm.xlu0 %3076, %v2792
    %v3078 = vpop.permute.xlu0 %3077
    %3079 = vset.pattern.permute.xlu0 1
    %3080 = vperm.xlu0 %3079, %v2793
    %v3081 = vpop.permute.xlu0 %3080
    %3082 = vset.pattern.permute.xlu0 1
    %3083 = vperm.xlu0 %3082, %v2794
    %v3084 = vpop.permute.xlu0 %3083
    %3085 = vset.pattern.permute.xlu0 1
    %3086 = vperm.xlu0 %3085, %v2795
    %v3087 = vpop.permute.xlu0 %3086
    %3088 = vset.pattern.permute.xlu0 1
    %3089 = vperm.xlu0 %3088, %v2796
    %v3090 = vpop.permute.xlu0 %3089
    %3091 = vset.pattern.permute.xlu0 1
    %3092 = vperm.xlu0 %3091, %v2797
    %v3093 = vpop.permute.xlu0 %3092
    %3094 = vset.pattern.permute.xlu0 1
    %3095 = vperm.xlu0 %3094, %v2798
    %v3096 = vpop.permute.xlu0 %3095
    %3097 = vset.pattern.permute.xlu0 1
    %3098 = vperm.xlu0 %3097, %v2799
    %v3099 = vpop.permute.xlu0 %3098
    %3100 = vset.pattern.permute.xlu0 1
    %3101 = vperm.xlu0 %3100, %v2800
    %v3102 = vpop.permute.xlu0 %3101
    %3103 = vset.pattern.permute.xlu0 1
    %3104 = vperm.xlu0 %3103, %v2801
    %v3105 = vpop.permute.xlu0 %3104
    %3106 = vset.pattern.permute.xlu0 1
    %3107 = vperm.xlu0 %3106, %v2802
    %v3108 = vpop.permute.xlu0 %3107
    %3109 = vset.pattern.permute.xlu0 1
    %3110 = vperm.xlu0 %3109, %v2803
    %v3111 = vpop.permute.xlu0 %3110
    %3112 = vset.pattern.permute.xlu0 1
    %3113 = vperm.xlu0 %3112, %v2804
    %v3114 = vpop.permute.xlu0 %3113
    %3115 = vset.pattern.permute.xlu0 1
    %3116 = vperm.xlu0 %3115, %v2805
    %v3117 = vpop.permute.xlu0 %3116
    %3118 = vset.pattern.permute.xlu0 1
    %3119 = vperm.xlu0 %3118, %v2806
    %v3120 = vpop.permute.xlu0 %3119
    %3121 = vset.pattern.permute.xlu0 1
    %3122 = vperm.xlu0 %3121, %v2807
    %v3123 = vpop.permute.xlu0 %3122
    %3124 = vset.pattern.permute.xlu0 1
    %3125 = vperm.xlu0 %3124, %v2808
    %v3126 = vpop.permute.xlu0 %3125
    %3127 = vset.pattern.permute.xlu0 1
    %3128 = vperm.xlu0 %3127, %v2809
    %v3129 = vpop.permute.xlu0 %3128
    %3130 = vset.pattern.permute.xlu0 1
    %3131 = vperm.xlu0 %3130, %v2810
    %v3132 = vpop.permute.xlu0 %3131
    %3133 = vset.pattern.permute.xlu0 1
    %3134 = vperm.xlu0 %3133, %v2811
    %v3135 = vpop.permute.xlu0 %3134
    %3136 = vset.pattern.permute.xlu0 1
    %3137 = vperm.xlu0 %3136, %v2812
    %v3138 = vpop.permute.xlu0 %3137
    %3139 = vset.pattern.permute.xlu0 1
    %3140 = vperm.xlu0 %3139, %v2813
    %v3141 = vpop.permute.xlu0 %3140
    %3142 = vset.pattern.permute.xlu0 1
    %3143 = vperm.xlu0 %3142, %v2814
    %v3144 = vpop.permute.xlu0 %3143
    %v3145 = vperm.slane %v3051, %v1347
    %v3146 = vperm.slane %v3054, %v1349
    %v3147 = vsel %vm1351, %v3146, %v3145
    %v3148 = vperm.slane %v3057, %v1347
    %v3149 = vperm.slane %v3060, %v1349
    %v3150 = vsel %vm1351, %v3149, %v3148
    %v3151 = vperm.slane %v3063, %v1347
    %v3152 = vperm.slane %v3066, %v1349
    %v3153 = vsel %vm1351, %v3152, %v3151
    %v3154 = vperm.slane %v3069, %v1347
    %v3155 = vperm.slane %v3072, %v1349
    %v3156 = vsel %vm1351, %v3155, %v3154
    %v3157 = vperm.slane %v3075, %v1347
    %v3158 = vperm.slane %v3078, %v1349
    %v3159 = vsel %vm1351, %v3158, %v3157
    %v3160 = vperm.slane %v3081, %v1347
    %v3161 = vperm.slane %v3084, %v1349
    %v3162 = vsel %vm1351, %v3161, %v3160
    %v3163 = vperm.slane %v3087, %v1347
    %v3164 = vperm.slane %v3090, %v1349
    %v3165 = vsel %vm1351, %v3164, %v3163
    %v3166 = vperm.slane %v3093, %v1347
    %v3167 = vperm.slane %v3096, %v1349
    %v3168 = vsel %vm1351, %v3167, %v3166
    %v3169 = vperm.slane %v3099, %v1347
    %v3170 = vperm.slane %v3102, %v1349
    %v3171 = vsel %vm1351, %v3170, %v3169
    %v3172 = vperm.slane %v3105, %v1347
    %v3173 = vperm.slane %v3108, %v1349
    %v3174 = vsel %vm1351, %v3173, %v3172
    %v3175 = vperm.slane %v3111, %v1347
    %v3176 = vperm.slane %v3114, %v1349
    %v3177 = vsel %vm1351, %v3176, %v3175
    %v3178 = vperm.slane %v3117, %v1347
    %v3179 = vperm.slane %v3120, %v1349
    %v3180 = vsel %vm1351, %v3179, %v3178
    %v3181 = vperm.slane %v3123, %v1347
    %v3182 = vperm.slane %v3126, %v1349
    %v3183 = vsel %vm1351, %v3182, %v3181
    %v3184 = vperm.slane %v3129, %v1347
    %v3185 = vperm.slane %v3132, %v1349
    %v3186 = vsel %vm1351, %v3185, %v3184
    %v3187 = vperm.slane %v3135, %v1347
    %v3188 = vperm.slane %v3138, %v1349
    %v3189 = vsel %vm1351, %v3188, %v3187
    %v3190 = vperm.slane %v3141, %v1347
    %v3191 = vperm.slane %v3144, %v1349
    %v3192 = vsel %vm1351, %v3191, %v3190
    %v3193 = vsel %vm1398, %v3150, %v3147
    %v3194 = vsel %vm1400, %v3153, %v3193
    %v3195 = vsel %vm1402, %v3156, %v3194
    %v3196 = vsel %vm1404, %v3159, %v3195
    %v3197 = vsel %vm1406, %v3162, %v3196
    %v3198 = vsel %vm1408, %v3165, %v3197
    %v3199 = vsel %vm1410, %v3168, %v3198
    %v3200 = vsel %vm1398, %v3174, %v3171
    %v3201 = vsel %vm1400, %v3177, %v3200
    %v3202 = vsel %vm1402, %v3180, %v3201
    %v3203 = vsel %vm1404, %v3183, %v3202
    %v3204 = vsel %vm1406, %v3186, %v3203
    %v3205 = vsel %vm1408, %v3189, %v3204
    %v3206 = vsel %vm1410, %v3192, %v3205
    %3209 = vrot.lane.b32.xlu0 %v1910, 96
    %v3210 = vpop.permute.xlu0 %3209
    %3211 = vrot.lane.b32.xlu0 %v1913, 96
    %v3212 = vpop.permute.xlu0 %3211
    %3215 = vrot.lane.b32.xlu0 %v2817, 96
    %v3216 = vpop.permute.xlu0 %3215
    %v3218 = vsel %vm1419, %v3199, 0
    %v3220 = vsel %vm1419, %v3206, 0
    %3222 = vmatpush.msra.mxu0 0.0
    %3223 = vmatpush.msra.mxu0 0.0
    %3224 = vmatpush.msra.mxu0 0.0
    %3225 = vmatpush.msra.mxu0 0.0
    %3226 = vmatpush.msra.mxu0 0.0
    %3227 = vmatpush.msra.mxu0 0.0
    %3228 = vmatpush.msra.mxu0 0.0
    %3229 = vmatpush.msra.mxu0 0.0
    %3230 = vmatpush.msra.mxu0 0.0
    %3231 = vmatpush.msra.mxu0 0.0
    %3232 = vmatpush.msra.mxu0 0.0
    %3233 = vmatpush.msra.mxu0 0.0
    %3234 = vmatpush.msra.mxu0 0.0
    %3235 = vmatpush.msra.mxu0 0.0
    %3236 = vmatpush.msra.mxu0 %v3212
    %3237 = vmatpush.msra.mxu0 %v3210
    %3238 = vmatmul.f32.gmra.mxu0 %v3218
    %v3239 = vpop.f32.mrf.mxu0
    %v3240 = vadd.f32 %v3216, %v3239
    %3241 = vmatmul.f32.gmra.mxu0 %v3220
    %v3242 = vpop.f32.mrf.mxu0
    %v3243 = vadd.f32 %v3216, %v3242
    %3244 = vdwg.mxu0
    %v3245 = vtanh.pop %v3240
    %v3246 = vtanh.pop %v3243
    %3247 = vst.msk [vmem:[#allocation2 + $0x8] sm:$0xff] %vm1449, %v3245
    %3248 = vst.msk [vmem:[#allocation2 + $0x18] sm:$0xff] %vm1449, %v3246
    %3249 = vset.pattern.permute.xlu0 2
    %3250 = vperm.xlu0 %3249, %v2783
    %v3251 = vpop.permute.xlu0 %3250
    %3252 = vset.pattern.permute.xlu0 2
    %3253 = vperm.xlu0 %3252, %v2784
    %v3254 = vpop.permute.xlu0 %3253
    %3255 = vset.pattern.permute.xlu0 2
    %3256 = vperm.xlu0 %3255, %v2785
    %v3257 = vpop.permute.xlu0 %3256
    %3258 = vset.pattern.permute.xlu0 2
    %3259 = vperm.xlu0 %3258, %v2786
    %v3260 = vpop.permute.xlu0 %3259
    %3261 = vset.pattern.permute.xlu0 2
    %3262 = vperm.xlu0 %3261, %v2787
    %v3263 = vpop.permute.xlu0 %3262
    %3264 = vset.pattern.permute.xlu0 2
    %3265 = vperm.xlu0 %3264, %v2788
    %v3266 = vpop.permute.xlu0 %3265
    %3267 = vset.pattern.permute.xlu0 2
    %3268 = vperm.xlu0 %3267, %v2789
    %v3269 = vpop.permute.xlu0 %3268
    %3270 = vset.pattern.permute.xlu0 2
    %3271 = vperm.xlu0 %3270, %v2790
    %v3272 = vpop.permute.xlu0 %3271
    %3273 = vset.pattern.permute.xlu0 2
    %3274 = vperm.xlu0 %3273, %v2791
    %v3275 = vpop.permute.xlu0 %3274
    %3276 = vset.pattern.permute.xlu0 2
    %3277 = vperm.xlu0 %3276, %v2792
    %v3278 = vpop.permute.xlu0 %3277
    %3279 = vset.pattern.permute.xlu0 2
    %3280 = vperm.xlu0 %3279, %v2793
    %v3281 = vpop.permute.xlu0 %3280
    %3282 = vset.pattern.permute.xlu0 2
    %3283 = vperm.xlu0 %3282, %v2794
    %v3284 = vpop.permute.xlu0 %3283
    %3285 = vset.pattern.permute.xlu0 2
    %3286 = vperm.xlu0 %3285, %v2795
    %v3287 = vpop.permute.xlu0 %3286
    %3288 = vset.pattern.permute.xlu0 2
    %3289 = vperm.xlu0 %3288, %v2796
    %v3290 = vpop.permute.xlu0 %3289
    %3291 = vset.pattern.permute.xlu0 2
    %3292 = vperm.xlu0 %3291, %v2797
    %v3293 = vpop.permute.xlu0 %3292
    %3294 = vset.pattern.permute.xlu0 2
    %3295 = vperm.xlu0 %3294, %v2798
    %v3296 = vpop.permute.xlu0 %3295
    %3297 = vset.pattern.permute.xlu0 2
    %3298 = vperm.xlu0 %3297, %v2799
    %v3299 = vpop.permute.xlu0 %3298
    %3300 = vset.pattern.permute.xlu0 2
    %3301 = vperm.xlu0 %3300, %v2800
    %v3302 = vpop.permute.xlu0 %3301
    %3303 = vset.pattern.permute.xlu0 2
    %3304 = vperm.xlu0 %3303, %v2801
    %v3305 = vpop.permute.xlu0 %3304
    %3306 = vset.pattern.permute.xlu0 2
    %3307 = vperm.xlu0 %3306, %v2802
    %v3308 = vpop.permute.xlu0 %3307
    %3309 = vset.pattern.permute.xlu0 2
    %3310 = vperm.xlu0 %3309, %v2803
    %v3311 = vpop.permute.xlu0 %3310
    %3312 = vset.pattern.permute.xlu0 2
    %3313 = vperm.xlu0 %3312, %v2804
    %v3314 = vpop.permute.xlu0 %3313
    %3315 = vset.pattern.permute.xlu0 2
    %3316 = vperm.xlu0 %3315, %v2805
    %v3317 = vpop.permute.xlu0 %3316
    %3318 = vset.pattern.permute.xlu0 2
    %3319 = vperm.xlu0 %3318, %v2806
    %v3320 = vpop.permute.xlu0 %3319
    %3321 = vset.pattern.permute.xlu0 2
    %3322 = vperm.xlu0 %3321, %v2807
    %v3323 = vpop.permute.xlu0 %3322
    %3324 = vset.pattern.permute.xlu0 2
    %3325 = vperm.xlu0 %3324, %v2808
    %v3326 = vpop.permute.xlu0 %3325
    %3327 = vset.pattern.permute.xlu0 2
    %3328 = vperm.xlu0 %3327, %v2809
    %v3329 = vpop.permute.xlu0 %3328
    %3330 = vset.pattern.permute.xlu0 2
    %3331 = vperm.xlu0 %3330, %v2810
    %v3332 = vpop.permute.xlu0 %3331
    %3333 = vset.pattern.permute.xlu0 2
    %3334 = vperm.xlu0 %3333, %v2811
    %v3335 = vpop.permute.xlu0 %3334
    %3336 = vset.pattern.permute.xlu0 2
    %3337 = vperm.xlu0 %3336, %v2812
    %v3338 = vpop.permute.xlu0 %3337
    %3339 = vset.pattern.permute.xlu0 2
    %3340 = vperm.xlu0 %3339, %v2813
    %v3341 = vpop.permute.xlu0 %3340
    %3342 = vset.pattern.permute.xlu0 2
    %3343 = vperm.xlu0 %3342, %v2814
    %v3344 = vpop.permute.xlu0 %3343
    %v3345 = vperm.slane %v3251, %v1347
    %v3346 = vperm.slane %v3254, %v1349
    %v3347 = vsel %vm1351, %v3346, %v3345
    %v3348 = vperm.slane %v3257, %v1347
    %v3349 = vperm.slane %v3260, %v1349
    %v3350 = vsel %vm1351, %v3349, %v3348
    %v3351 = vperm.slane %v3263, %v1347
    %v3352 = vperm.slane %v3266, %v1349
    %v3353 = vsel %vm1351, %v3352, %v3351
    %v3354 = vperm.slane %v3269, %v1347
    %v3355 = vperm.slane %v3272, %v1349
    %v3356 = vsel %vm1351, %v3355, %v3354
    %v3357 = vperm.slane %v3275, %v1347
    %v3358 = vperm.slane %v3278, %v1349
    %v3359 = vsel %vm1351, %v3358, %v3357
    %v3360 = vperm.slane %v3281, %v1347
    %v3361 = vperm.slane %v3284, %v1349
    %v3362 = vsel %vm1351, %v3361, %v3360
    %v3363 = vperm.slane %v3287, %v1347
    %v3364 = vperm.slane %v3290, %v1349
    %v3365 = vsel %vm1351, %v3364, %v3363
    %v3366 = vperm.slane %v3293, %v1347
    %v3367 = vperm.slane %v3296, %v1349
    %v3368 = vsel %vm1351, %v3367, %v3366
    %v3369 = vperm.slane %v3299, %v1347
    %v3370 = vperm.slane %v3302, %v1349
    %v3371 = vsel %vm1351, %v3370, %v3369
    %v3372 = vperm.slane %v3305, %v1347
    %v3373 = vperm.slane %v3308, %v1349
    %v3374 = vsel %vm1351, %v3373, %v3372
    %v3375 = vperm.slane %v3311, %v1347
    %v3376 = vperm.slane %v3314, %v1349
    %v3377 = vsel %vm1351, %v3376, %v3375
    %v3378 = vperm.slane %v3317, %v1347
    %v3379 = vperm.slane %v3320, %v1349
    %v3380 = vsel %vm1351, %v3379, %v3378
    %v3381 = vperm.slane %v3323, %v1347
    %v3382 = vperm.slane %v3326, %v1349
    %v3383 = vsel %vm1351, %v3382, %v3381
    %v3384 = vperm.slane %v3329, %v1347
    %v3385 = vperm.slane %v3332, %v1349
    %v3386 = vsel %vm1351, %v3385, %v3384
    %v3387 = vperm.slane %v3335, %v1347
    %v3388 = vperm.slane %v3338, %v1349
    %v3389 = vsel %vm1351, %v3388, %v3387
    %v3390 = vperm.slane %v3341, %v1347
    %v3391 = vperm.slane %v3344, %v1349
    %v3392 = vsel %vm1351, %v3391, %v3390
    %v3393 = vsel %vm1398, %v3350, %v3347
    %v3394 = vsel %vm1400, %v3353, %v3393
    %v3395 = vsel %vm1402, %v3356, %v3394
    %v3396 = vsel %vm1404, %v3359, %v3395
    %v3397 = vsel %vm1406, %v3362, %v3396
    %v3398 = vsel %vm1408, %v3365, %v3397
    %v3399 = vsel %vm1410, %v3368, %v3398
    %v3400 = vsel %vm1398, %v3374, %v3371
    %v3401 = vsel %vm1400, %v3377, %v3400
    %v3402 = vsel %vm1402, %v3380, %v3401
    %v3403 = vsel %vm1404, %v3383, %v3402
    %v3404 = vsel %vm1406, %v3386, %v3403
    %v3405 = vsel %vm1408, %v3389, %v3404
    %v3406 = vsel %vm1410, %v3392, %v3405
    %3407 = vrot.lane.b32.xlu0 %v1910, 64
    %v3408 = vpop.permute.xlu0 %3407
    %3409 = vrot.lane.b32.xlu0 %v1913, 64
    %v3410 = vpop.permute.xlu0 %3409
    %3413 = vrot.lane.b32.xlu0 %v2817, 64
    %v3414 = vpop.permute.xlu0 %3413
    %v3416 = vsel %vm1419, %v3399, 0
    %v3418 = vsel %vm1419, %v3406, 0
    %3420 = vmatpush.msra.mxu0 0.0
    %3421 = vmatpush.msra.mxu0 0.0
    %3422 = vmatpush.msra.mxu0 0.0
    %3423 = vmatpush.msra.mxu0 0.0
    %3424 = vmatpush.msra.mxu0 0.0
    %3425 = vmatpush.msra.mxu0 0.0
    %3426 = vmatpush.msra.mxu0 0.0
    %3427 = vmatpush.msra.mxu0 0.0
    %3428 = vmatpush.msra.mxu0 0.0
    %3429 = vmatpush.msra.mxu0 0.0
    %3430 = vmatpush.msra.mxu0 0.0
    %3431 = vmatpush.msra.mxu0 0.0
    %3432 = vmatpush.msra.mxu0 0.0
    %3433 = vmatpush.msra.mxu0 0.0
    %3434 = vmatpush.msra.mxu0 %v3410
    %3435 = vmatpush.msra.mxu0 %v3408
    %3436 = vmatmul.f32.gmra.mxu0 %v3416
    %v3437 = vpop.f32.mrf.mxu0
    %v3438 = vadd.f32 %v3414, %v3437
    %3439 = vmatmul.f32.gmra.mxu0 %v3418
    %v3440 = vpop.f32.mrf.mxu0
    %v3441 = vadd.f32 %v3414, %v3440
    %3442 = vdwg.mxu0
    %v3443 = vtanh.pop %v3438
    %v3444 = vtanh.pop %v3441
    %3447 = vrot.lane.b32.xlu0 %v3443, 32
    %v3448 = vpop.permute.xlu0 %3447
    %3449 = vrot.lane.b32.xlu0 %v3444, 32
    %v3450 = vpop.permute.xlu0 %3449
    %3453 = vst.msk [vmem:[#allocation2 + $0x8] sm:$0xff] %vm1658, %v3448
    %3454 = vst.msk [vmem:[#allocation2 + $0x18] sm:$0xff] %vm1658, %v3450
    %v3455 = vld [vmem:[#allocation2] sm:$0xff]
    %v3456 = vld [vmem:[#allocation2 + $0x8] sm:$0xff]
    %v3457 = vld [vmem:[#allocation2 + $0x10] sm:$0xff]
    %v3458 = vld [vmem:[#allocation2 + $0x18] sm:$0xff]
    %s3459 = sld [smem:[#allocation4]]
    %v3460 = vstv %s3459
    %vm3461 = vcmp.eq.s32.totalorder %v1347, %v3460
    %v3462 = vsel %vm3461, 1, 0
    %v3463 = vcvt.s32.f32 %v3462
    %v3465 = vsel %vm1419, %v3463, 0
    %3467 = vmatpush.msra.mxu0 0.0
    %3468 = vmatpush.msra.mxu0 0.0
    %3469 = vmatpush.msra.mxu0 0.0
    %3470 = vmatpush.msra.mxu0 0.0
    %3471 = vmatpush.msra.mxu0 0.0
    %3472 = vmatpush.msra.mxu0 0.0
    %3473 = vmatpush.msra.mxu0 0.0
    %3474 = vmatpush.msra.mxu0 0.0
    %3475 = vmatpush.msra.mxu0 0.0
    %3476 = vmatpush.msra.mxu0 0.0
    %3477 = vmatpush.msra.mxu0 0.0
    %3478 = vmatpush.msra.mxu0 0.0
    %3479 = vmatpush.msra.mxu0 0.0
    %3480 = vmatpush.msra.mxu0 0.0
    %3481 = vmatpush.msra.mxu0 %v3457
    %3482 = vmatpush.msra.mxu0 %v3455
    %3483 = vmatmul.f32.gmra.mxu0 %v3465
    %v3484 = vpop.f32.mrf.mxu0
    %v3485 = vadd.f32 0.0, %v3484
    %3486 = vdwg.mxu0
    %3487 = vmatpush.msra.mxu0 0.0
    %3488 = vmatpush.msra.mxu0 0.0
    %3489 = vmatpush.msra.mxu0 0.0
    %3490 = vmatpush.msra.mxu0 0.0
    %3491 = vmatpush.msra.mxu0 0.0
    %3492 = vmatpush.msra.mxu0 0.0
    %3493 = vmatpush.msra.mxu0 0.0
    %3494 = vmatpush.msra.mxu0 0.0
    %3495 = vmatpush.msra.mxu0 0.0
    %3496 = vmatpush.msra.mxu0 0.0
    %3497 = vmatpush.msra.mxu0 0.0
    %3498 = vmatpush.msra.mxu0 0.0
    %3499 = vmatpush.msra.mxu0 0.0
    %3500 = vmatpush.msra.mxu0 0.0
    %3501 = vmatpush.msra.mxu0 %v3458
    %3502 = vmatpush.msra.mxu0 %v3456
    %3503 = vmatmul.f32.gmra.mxu0 %v3465
    %v3504 = vpop.f32.mrf.mxu0
    %v3505 = vadd.f32 0.0, %v3504
    %3506 = vdwg.mxu0
    %v3509 = vrot.slane %v3505, 7
    %vm3510 = vcmask 1040384
    %v3511 = vsel %vm3510, %v3485, %v3509
    %v3513 = vlaneseq
    %vm3514 = vcmp.ge.s32.totalorder %v3513, 0
    %vm3515 = vcmp.lt.s32.totalorder %v3513, 192
    %vm3516 = vmand %vm3514, %vm3515
    %3517 = vst.msk [vmem:[#allocation3] ss:$2 sm:$0x3] %vm3516, %v3511
    %s3518 = sld [smem:[#allocation4 + $0x1]]
    %v3519 = vstv %s3518
    %vm3520 = vcmp.eq.s32.totalorder %v1347, %v3519
    %v3521 = vsel %vm3520, 1, 0
    %v3522 = vcvt.s32.f32 %v3521
    %v3524 = vsel %vm1419, %v3522, 0
    %3526 = vmatpush.msra.mxu0 0.0
    %3527 = vmatpush.msra.mxu0 0.0
    %3528 = vmatpush.msra.mxu0 0.0
    %3529 = vmatpush.msra.mxu0 0.0
    %3530 = vmatpush.msra.mxu0 0.0
    %3531 = vmatpush.msra.mxu0 0.0
    %3532 = vmatpush.msra.mxu0 0.0
    %3533 = vmatpush.msra.mxu0 0.0
    %3534 = vmatpush.msra.mxu0 0.0
    %3535 = vmatpush.msra.mxu0 0.0
    %3536 = vmatpush.msra.mxu0 0.0
    %3537 = vmatpush.msra.mxu0 0.0
    %3538 = vmatpush.msra.mxu0 0.0
    %3539 = vmatpush.msra.mxu0 0.0
    %3540 = vmatpush.msra.mxu0 %v3457
    %3541 = vmatpush.msra.mxu0 %v3455
    %3542 = vmatmul.f32.gmra.mxu0 %v3524
    %v3543 = vpop.f32.mrf.mxu0
    %v3544 = vadd.f32 0.0, %v3543
    %3545 = vdwg.mxu0
    %3546 = vmatpush.msra.mxu0 0.0
    %3547 = vmatpush.msra.mxu0 0.0
    %3548 = vmatpush.msra.mxu0 0.0
    %3549 = vmatpush.msra.mxu0 0.0
    %3550 = vmatpush.msra.mxu0 0.0
    %3551 = vmatpush.msra.mxu0 0.0
    %3552 = vmatpush.msra.mxu0 0.0
    %3553 = vmatpush.msra.mxu0 0.0
    %3554 = vmatpush.msra.mxu0 0.0
    %3555 = vmatpush.msra.mxu0 0.0
    %3556 = vmatpush.msra.mxu0 0.0
    %3557 = vmatpush.msra.mxu0 0.0
    %3558 = vmatpush.msra.mxu0 0.0
    %3559 = vmatpush.msra.mxu0 0.0
    %3560 = vmatpush.msra.mxu0 %v3458
    %3561 = vmatpush.msra.mxu0 %v3456
    %3562 = vmatmul.f32.gmra.mxu0 %v3524
    %v3563 = vpop.f32.mrf.mxu0
    %v3564 = vadd.f32 0.0, %v3563
    %3565 = vdwg.mxu0
    %v3568 = vrot.slane %v3564, 7
    %v3569 = vsel %vm3510, %v3544, %v3568
    %s3571 = scalar_lea.vmem [#allocation3], 1
    %3572 = vst.msk [vmem:[%s3571] ss:$2 sm:$0x3] %vm3516, %v3569
    %v3573 = vld [vmem:[#allocation3] sm:$0xf]
    %v3574 = vld [vmem:[%s15] sm:$0xff]
    %v3575 = vld [vmem:[%s15 + $0x8] sm:$0xff]
    %v3576 = vld [vmem:[%s15 + $0x10] sm:$0xff]
    %v3577 = vld [vmem:[%s15 + $0x18] sm:$0xff]
    %v3578 = vld [vmem:[%s15 + $0x20] sm:$0xff]
    %v3579 = vld [vmem:[%s15 + $0x28] sm:$0xff]
    %v3580 = vld [vmem:[%s15 + $0x30] sm:$0xff]
    %v3581 = vld [vmem:[%s15 + $0x38] sm:$0xff]
    %v3582 = vld [vmem:[%s15 + $0x40] sm:$0xff]
    %v3583 = vld [vmem:[%s15 + $0x48] sm:$0xff]
    %v3584 = vld [vmem:[%s15 + $0x50] sm:$0xff]
    %v3585 = vld [vmem:[%s15 + $0x58] sm:$0xff]
    %v3586 = vld [vmem:[%s15 + $0x60] sm:$0xff]
    %v3587 = vld [vmem:[%s15 + $0x68] sm:$0xff]
    %v3588 = vld [vmem:[%s15 + $0x70] sm:$0xff]
    %v3589 = vld [vmem:[%s15 + $0x78] sm:$0xff]
    %v3590 = vld [vmem:[%s15 + $0x80] sm:$0xff]
    %v3591 = vld [vmem:[%s15 + $0x88] sm:$0xff]
    %v3592 = vld [vmem:[%s15 + $0x90] sm:$0xff]
    %v3593 = vld [vmem:[%s15 + $0x98] sm:$0xff]
    %v3594 = vld [vmem:[%s15 + $0xa0] sm:$0xff]
    %v3595 = vld [vmem:[%s15 + $0xa8] sm:$0xff]
    %v3596 = vld [vmem:[%s15 + $0xb0] sm:$0xff]
    %v3597 = vld [vmem:[%s15 + $0xb8] sm:$0xff]
    %v3598 = vld [vmem:[%s16] sm:$0x1]
    %v3600 = vperm.slane %v3598, 0
    %3603 = vst [vmem:[#allocation1] ss:$4 sm:$0xff] %v3573
    %v3604 = vld.sshfl [vmem:[#allocation1] sm:$0xff pattern:$0x73625140]
    %v3605 = vld.sshfl [vmem:[#allocation1 + $0x8] sm:$0xff pattern:$0x73625140]
    %vm3607 = vcmask 523264
    %v3608 = vsel %vm3607, %v3605, 0
    %3610 = vmatpush.msra.mxu0 %v3589
    %3611 = vmatpush.msra.mxu0 %v3588
    %3612 = vmatpush.msra.mxu0 %v3587
    %3613 = vmatpush.msra.mxu0 %v3586
    %3614 = vmatpush.msra.mxu0 %v3585
    %3615 = vmatpush.msra.mxu0 %v3584
    %3616 = vmatpush.msra.mxu0 %v3583
    %3617 = vmatpush.msra.mxu0 %v3582
    %3618 = vmatpush.msra.mxu0 %v3581
    %3619 = vmatpush.msra.mxu0 %v3580
    %3620 = vmatpush.msra.mxu0 %v3579
    %3621 = vmatpush.msra.mxu0 %v3578
    %3622 = vmatpush.msra.mxu0 %v3577
    %3623 = vmatpush.msra.mxu0 %v3576
    %3624 = vmatpush.msra.mxu0 %v3575
    %3625 = vmatpush.msra.mxu0 %v3574
    %3626 = vmatmul.f32.gmra.mxu0 %v3604
    %v3627 = vpop.f32.mrf.mxu0
    %v3628 = vadd.f32 %v3600, %v3627
    %3629 = vdwg.mxu0
    %3630 = vmatpush.msra.mxu0 0.0
    %3631 = vmatpush.msra.mxu0 0.0
    %3632 = vmatpush.msra.mxu0 0.0
    %3633 = vmatpush.msra.mxu0 0.0
    %3634 = vmatpush.msra.mxu0 0.0
    %3635 = vmatpush.msra.mxu0 0.0
    %3636 = vmatpush.msra.mxu0 0.0
    %3637 = vmatpush.msra.mxu0 0.0
    %3638 = vmatpush.msra.mxu0 %v3597
    %3639 = vmatpush.msra.mxu0 %v3596
    %3640 = vmatpush.msra.mxu0 %v3595
    %3641 = vmatpush.msra.mxu0 %v3594
    %3642 = vmatpush.msra.mxu0 %v3593
    %3643 = vmatpush.msra.mxu0 %v3592
    %3644 = vmatpush.msra.mxu0 %v3591
    %3645 = vmatpush.msra.mxu0 %v3590
    %3646 = vmatmul.f32.gmra.mxu0 %v3608
    %v3647 = vpop.f32.mrf.mxu0
    %v3648 = vadd.f32 %v3628, %v3647
    %3649 = vdwg.mxu0
    %v3650 = vmax.f32 %v3648, 0.0
    %v3651 = vld [vmem:[%s17] sm:$0xff]
    %v3652 = vld [vmem:[%s17 + $0x8] sm:$0xff]
    %v3653 = vld [vmem:[%s17 + $0x10] sm:$0xff]
    %v3654 = vld [vmem:[%s17 + $0x18] sm:$0xff]
    %v3655 = vld [vmem:[%s18] sm:$0x1]
    %v3657 = vperm.slane %v3655, 0
    %v3660 = vsel %vm1449, %v3650, 0
    %3662 = vmatpush.msra.mxu0 0.0
    %3663 = vmatpush.msra.mxu0 0.0
    %3664 = vmatpush.msra.mxu0 0.0
    %3665 = vmatpush.msra.mxu0 0.0
    %3666 = vmatpush.msra.mxu0 0.0
    %3667 = vmatpush.msra.mxu0 0.0
    %3668 = vmatpush.msra.mxu0 0.0
    %3669 = vmatpush.msra.mxu0 0.0
    %3670 = vmatpush.msra.mxu0 0.0
    %3671 = vmatpush.msra.mxu0 0.0
    %3672 = vmatpush.msra.mxu0 0.0
    %3673 = vmatpush.msra.mxu0 0.0
    %3674 = vmatpush.msra.mxu0 %v3654
    %3675 = vmatpush.msra.mxu0 %v3653
    %3676 = vmatpush.msra.mxu0 %v3652
    %3677 = vmatpush.msra.mxu0 %v3651
    %3678 = vmatmul.f32.gmra.mxu0 %v3660
    %v3679 = vpop.f32.mrf.mxu0
    %v3680 = vadd.f32 %v3657, %v3679
    %3681 = vdwg.mxu0
    %vm3682 = vcmask 1041408
    %v3683 = vsel %vm3682, %v3680, -inf
    %3684 = vmax.xlane.f32.xlu0 %v3683
    %v3685 = vpop.xlane.xlu0 %3684
    %v3686 = vsub.f32 %v3680, %v3685
    %v3687 = vmul.f32 %v3686, 1.442695
    %v3688 = vpow.pop %v3687
    %v3689 = vsel %vm3682, %v3688, 0.0
    %3690 = vadd.xlane.f32.xlu0 %v3689
    %v3691 = vpop.xlane.xlu0 %3690
    %v3692 = vlog2.pop %v3691
    %v3693 = vmul.f32 %v3692, 0.6931472
    %v3694 = vsub.f32 %v3686, %v3693
    %3695 = vst [vmem:[#allocation7] sm:$0x3] %v3694
    // Predicated region
    $region82: #{tpu_custom_call.1} parent=1 // pred_check
      _
    $region83: #{tpu_custom_call.1} parent=1 // pred_check_branch
      %3697 = sbr.rel (0) target = $region85
    $region84: #{tpu_custom_call.1} parent=1 // pred_region
      %3699 = vsyncadd [#allocation5], 0
      %s3701 = sshll.u32 [#allocation7], 4
      %s3702 = int_to_ptr.vmem [resolvable:$true] %s3701
      %s3703 = sshll.u32 %s19, 4
      %s3704 = int_to_ptr.hbm [resolvable:$true] %s3703
      %3706 = dma.vmem_to_hbm [thread:$0]  %s3702, 32, %s3704, [#allocation5]
    $region85: #{tpu_custom_call.1} parent=1 // pred_fallthru
      _
    // Predicated region
    $region86: #{tpu_custom_call.1} parent=1 // pred_check
      _
    $region87: #{tpu_custom_call.1} parent=1 // pred_check_branch
      %3708 = sbr.rel (0) target = $region89
    $region88: #{tpu_custom_call.1} parent=1 // pred_region
      %3710 = dma.done [#allocation5], 32
    $region89: #{tpu_custom_call.1} parent=1 // pred_fallthru
      _
    %3711 = vsyncpa [#allocation5], 1
    %3712 = vsyncpa [#allocation6], 1

</llo_original>
